<compile_context>
chip_gen: v5e
topology: v5e:2x2
jax: 0.10.0
libtpu: 0.0.40
codegen_flags: <defaults>
</compile_context>

<pallas_src>
import functools

import jax
import jax.numpy as jnp
from jax.experimental import pallas as pl
from jax.experimental.pallas import tpu as pltpu

_LANE = 128


def _round_up(v, m):
    return (v + m - 1) // m * m


def _fused_extractor_kernel(x_ref, w1_ref, b1_ref, w2_ref, b2_ref, o_ref,
                            hid_ref, *, H, W, eps, inv_p):
    """Fused conv3x3+ReLU -> conv3x3+ReLU -> GeM(p=3); one image per grid step.

    x_ref  : (1, P, Cin)      spatially-flattened NHWC input, P = H*W + 2*(W+1)
                              with (W+1) zero rows of padding top and bottom.
    w1_ref : (9, Cin, Chid)   conv1 taps, tap index t = (dh)*3 + (dw).
    b1_ref : (1, Chid)
    w2_ref : (9, Chid, Coutp) conv2 taps, Cout padded to the 128-lane width.
    b2_ref : (1, Coutp)
    o_ref  : (1, 1, Coutp)    GeM-pooled feature vector (lane-dense).
    hid_ref: VMEM (P, Chid)   scratch holding the zero-row-padded conv1 output.
    """
    HW = H * W
    pad = W + 1
    Chid = w1_ref.shape[-1]
    Coutp = w2_ref.shape[-1]

    # Column-wrap masks for the flattened-row shift trick (only the ow = +/-1
    # taps can wrap across image rows; vertical overflow lands in the zero pad).
    r = jax.lax.broadcasted_iota(jnp.int32, (HW, 1), 0)
    w_idx = r % W
    mask_l = w_idx != 0          # invalid rows when the tap reaches column -1
    mask_r = w_idx != (W - 1)    # invalid rows when the tap reaches column W

    def conv3x3(load_rows, w_ref, cout):
        acc = jnp.zeros((HW, cout), jnp.float32)
        for oh in (-1, 0, 1):
            for ow in (-1, 0, 1):
                t = (oh + 1) * 3 + (ow + 1)
                k = oh * W + ow
                win = load_rows(pad + k)               # (HW, cin), static slice
                if ow == -1:
                    win = jnp.where(mask_l, win, 0.0)
                elif ow == 1:
                    win = jnp.where(mask_r, win, 0.0)
                acc = acc + jnp.dot(win, w_ref[t],
                                    preferred_element_type=jnp.float32)
        return acc

    # ---- conv1 (3x3, pad 1) + bias + ReLU, accumulated in f32 on the MXU ----
    acc1 = conv3x3(lambda s: x_ref[0, s:s + HW, :], w1_ref, Chid)
    h1 = jnp.maximum(acc1 + b1_ref[...], 0.0)          # (HW, Chid)

    # Keep conv1's activation resident in VMEM, re-padded with zero rows for
    # the next 3x3 conv (pads rewritten every step: safe under core-parallel).
    zpad = jnp.zeros((pad, Chid), jnp.float32)
    hid_ref[0:pad, :] = zpad
    hid_ref[pad + HW:pad + HW + pad, :] = zpad
    hid_ref[pad:pad + HW, :] = h1

    # ---- conv2 (3x3, pad 1) + bias + ReLU ------------------------------------
    acc2 = conv3x3(lambda s: hid_ref[s:s + HW, :], w2_ref, Coutp)
    h2 = jnp.maximum(acc2 + b2_ref[...], 0.0)          # (HW, Coutp)

    # ---- GeM pooling:  (mean_{hw} clamp(x, eps)^3)^(1/3) ---------------------
    h2 = jnp.maximum(h2, eps)
    cubes = h2 * h2 * h2                               # VPU multiplies, no pow
    s = jnp.sum(cubes, axis=0, keepdims=True) * (1.0 / HW)   # (1, Coutp)
    o_ref[0] = jnp.exp(jnp.log(s) * inv_p).astype(o_ref.dtype)


def extractor_forward(x_nchw, params, *, p=3.0, eps=1e-6):
    """Extractor.forward: features(x) -> GeM -> flatten, as one fused kernel."""
    assert p == 3.0, "kernel is specialized to the GeM default p == 3"
    N, Cin, H, W = x_nchw.shape
    w1, b1, w2, b2 = params["w1"], params["b1"], params["w2"], params["b2"]
    Chid = w1.shape[-1]
    Cout = w2.shape[-1]
    Coutp = _round_up(Cout, _LANE)                     # lane-dense output slab
    HW = H * W
    pad = W + 1
    P = HW + 2 * pad

    # Glue (pure layout work, done once in HBM):
    # NCHW -> NHWC (channels on lanes) -> flatten spatial -> zero row padding.
    x = jnp.transpose(x_nchw, (0, 2, 3, 1)).astype(jnp.float32)
    xf = jnp.pad(x.reshape(N, HW, Cin), ((0, 0), (pad, pad), (0, 0)))

    w1f = w1.reshape(9, Cin, Chid).astype(jnp.float32)
    b1f = b1.reshape(1, Chid).astype(jnp.float32)
    w2p = jnp.pad(w2, ((0, 0), (0, 0), (0, 0), (0, Coutp - Cout)))
    w2f = w2p.reshape(9, Chid, Coutp).astype(jnp.float32)
    b2f = jnp.pad(b2, (0, Coutp - Cout)).reshape(1, Coutp).astype(jnp.float32)

    flops = N * (2 * HW * 9 * Cin * Chid
                 + 2 * HW * 9 * Chid * Coutp
                 + 6 * HW * Coutp)
    bytes_accessed = 4 * (xf.size + w1f.size + b1f.size + w2f.size + b2f.size
                          + N * Coutp)

    kern = functools.partial(_fused_extractor_kernel, H=H, W=W,
                             eps=float(eps), inv_p=1.0 / float(p))

    out = pl.pallas_call(
        kern,
        out_shape=jax.ShapeDtypeStruct((N, 1, Coutp), jnp.float32),
        grid=(N,),
        in_specs=[
            pl.BlockSpec((1, P, Cin), lambda n: (n, 0, 0)),
            pl.BlockSpec((9, Cin, Chid), lambda n: (0, 0, 0)),
            pl.BlockSpec((1, Chid), lambda n: (0, 0)),
            pl.BlockSpec((9, Chid, Coutp), lambda n: (0, 0, 0)),
            pl.BlockSpec((1, Coutp), lambda n: (0, 0)),
        ],
        out_specs=pl.BlockSpec((1, 1, Coutp), lambda n: (n, 0, 0)),
        scratch_shapes=[pltpu.VMEM((P, Chid), jnp.float32)],
        compiler_params=pltpu.CompilerParams(
            dimension_semantics=("parallel",)),
        cost_estimate=pl.CostEstimate(
            flops=flops, transcendentals=2 * N * Coutp,
            bytes_accessed=bytes_accessed),
    )(xf, w1f, b1f, w2f, b2f)

    # Drop the lane padding; GeM already yields (N, n_features) == x.view(N,-1).
    return out.reshape(N, Coutp)[:, :Cout]


def _reference_forward(x_nchw, params, p=3.0, eps=1e-6):
    """Pure-JAX reference (lax conv + explicit GeM) for validation."""
    x = x_nchw
    for wk, bk in (("w1", "b1"), ("w2", "b2")):
        w = jnp.transpose(params[wk], (3, 2, 0, 1))  # HWIO -> OIHW
        x = jax.lax.conv_general_dilated(
            x, w, window_strides=(1, 1), padding="SAME",
            dimension_numbers=("NCHW", "OIHW", "NCHW"))
        x = jnp.maximum(x + params[bk][None, :, None, None], 0.0)
    x = jnp.maximum(x, eps) ** p
    x = jnp.mean(x, axis=(2, 3)) ** (1.0 / p)
    return x


if __name__ == "__main__":
    key = jax.random.PRNGKey(0)
    kx, k1, k2, k3, k4 = jax.random.split(key, 5)

    # Small shapes consistent with the module: batch=2, C_in=4, spatial=16,
    # n_features=32 (the synthetic backbone's output channel count).
    N, Cin, H, W = 2, 4, 16, 16
    Chid = 32
    n_features = 32

    x = jax.random.normal(kx, (N, Cin, H, W), dtype=jnp.float32)

    params = {
        "w1": 0.1 * jax.random.normal(k1, (3, 3, Cin, Chid), dtype=jnp.float32),
        "b1": 0.01 * jax.random.normal(k2, (Chid,), dtype=jnp.float32),
        "w2": 0.1 * jax.random.normal(k3, (3, 3, Chid, n_features),
                                      dtype=jnp.float32),
        "b2": 0.01 * jax.random.normal(k4, (n_features,), dtype=jnp.float32),
    }

    out = jax.block_until_ready(extractor_forward(x, params))
    ref = jax.block_until_ready(_reference_forward(x, params))

    assert out.shape == (N, n_features), out.shape
    assert jnp.allclose(out, ref, atol=1e-3, rtol=1e-3), (
        float(jnp.max(jnp.abs(out - ref))))

    print("KERNEL_OK")
</pallas_src>

<mosaic_0001>
module attributes {stable_mosaic.version = 11 : i64} {
  func.func @_fused_extractor_kernel(%arg0: i32, %arg1: memref<1x290x4xf32, #tpu.memory_space<vmem>>, %arg2: memref<9x4x32xf32, #tpu.memory_space<vmem>>, %arg3: memref<1x32xf32, #tpu.memory_space<vmem>>, %arg4: memref<9x32x128xf32, #tpu.memory_space<vmem>>, %arg5: memref<1x128xf32, #tpu.memory_space<vmem>>, %arg6: memref<1x1x128xf32, #tpu.memory_space<vmem>>, %arg7: memref<290x32xf32, #tpu.memory_space<vmem>>) attributes {dimension_semantics = [#tpu.dimension_semantics<parallel>], iteration_bounds = array<i64: 2>, scalar_prefetch = 0 : i64, scratch_operands = 1 : i64, tpu.core_type = #tpu.core_type<tc>, window_params = [{transform_indices = @transform_0, window_bounds = array<i64: 1, 290, 4>}, {pipeline_mode = #tpu.pipeline_mode<synchronous>, transform_indices = @transform_1, window_bounds = array<i64: 9, 4, 32>}, {pipeline_mode = #tpu.pipeline_mode<synchronous>, transform_indices = @transform_2, window_bounds = array<i64: 1, 32>}, {pipeline_mode = #tpu.pipeline_mode<synchronous>, transform_indices = @transform_3, window_bounds = array<i64: 9, 32, 128>}, {pipeline_mode = #tpu.pipeline_mode<synchronous>, transform_indices = @transform_4, window_bounds = array<i64: 1, 128>}, {transform_indices = @transform_5, window_bounds = array<i64: 1, 1, 128>}]} {
    %0 = tpu.iota {dimensions = array<i32: 0>} : vector<256x1xi32>
    %c16_i32 = arith.constant 16 : i32
    %c0_i32 = arith.constant 0 : i32
    %1 = arith.cmpi eq, %c16_i32, %c0_i32 : i32
    %c1_i32 = arith.constant 1 : i32
    %2 = arith.select %1, %c1_i32, %c16_i32 : i32
    %3 = vector.broadcast %2 : i32 to vector<256x1xi32>
    %4 = arith.remsi %0, %3 : vector<256x1xi32>
    %c0_i32_0 = arith.constant 0 : i32
    %5 = vector.broadcast %c0_i32_0 : i32 to vector<256x1xi32>
    %6 = arith.cmpi ne, %4, %5 : vector<256x1xi32>
    %c0_i32_1 = arith.constant 0 : i32
    %7 = vector.broadcast %c0_i32_1 : i32 to vector<256x1xi32>
    %8 = arith.cmpi slt, %4, %7 : vector<256x1xi32>
    %c0_i32_2 = arith.constant 0 : i32
    %9 = arith.cmpi slt, %2, %c0_i32_2 : i32
    %10 = vector.broadcast %9 : i1 to vector<256x1xi1>
    %11 = vector.broadcast %10 : vector<256x1xi1> to vector<256x1xi1>
    %12 = arith.xori %8, %11 : vector<256x1xi1>
    %13 = arith.andi %12, %6 : vector<256x1xi1>
    %14 = vector.broadcast %2 : i32 to vector<256x1xi32>
    %15 = arith.addi %4, %14 : vector<256x1xi32>
    %16 = arith.select %13, %15, %4 : vector<256x1xi1>, vector<256x1xi32>
    %c0_i32_3 = arith.constant 0 : i32
    %17 = vector.broadcast %c0_i32_3 : i32 to vector<256x1xi32>
    %18 = arith.cmpi ne, %16, %17 : vector<256x1xi32>
    %c15_i32 = arith.constant 15 : i32
    %19 = vector.broadcast %c15_i32 : i32 to vector<256x1xi32>
    %20 = arith.cmpi ne, %16, %19 : vector<256x1xi32>
    %cst = arith.constant 0.000000e+00 : f32
    %21 = vector.broadcast %cst : f32 to vector<256x32xf32>
    %c0 = arith.constant 0 : index
    %c0_4 = arith.constant 0 : index
    %c0_5 = arith.constant 0 : index
    %22 = vector.load %arg1[%c0, %c0_4, %c0_5] : memref<1x290x4xf32, #tpu.memory_space<vmem>>, vector<1x256x4xf32>
    %23 = vector.shape_cast %22 : vector<1x256x4xf32> to vector<256x4xf32>
    %cst_6 = arith.constant 0.000000e+00 : f32
    %24 = vector.shape_cast %18 : vector<256x1xi1> to vector<256x1xi1>
    %25 = vector.broadcast %24 : vector<256x1xi1> to vector<256x4xi1>
    %26 = vector.broadcast %cst_6 : f32 to vector<256x4xf32>
    %27 = arith.select %25, %23, %26 : vector<256x4xi1>, vector<256x4xf32>
    %c0_7 = arith.constant 0 : index
    %c0_8 = arith.constant 0 : index
    %c0_9 = arith.constant 0 : index
    %28 = vector.load %arg2[%c0_7, %c0_8, %c0_9] : memref<9x4x32xf32, #tpu.memory_space<vmem>>, vector<1x4x32xf32>
    %29 = vector.shape_cast %28 : vector<1x4x32xf32> to vector<4x32xf32>
    %cst_10 = arith.constant dense<0.000000e+00> : vector<256x32xf32>
    %30 = tpu.matmul %27, %29, %cst_10 {dimension_numbers = #tpu.dot_dimension_numbers<[1], [0], [0], [1], [0, 0, 1, 1], [], []>} : vector<256x4xf32>, vector<4x32xf32>, vector<256x32xf32> -> vector<256x32xf32>
    %31 = arith.addf %21, %30 : vector<256x32xf32>
    %c0_11 = arith.constant 0 : index
    %c1 = arith.constant 1 : index
    %c0_12 = arith.constant 0 : index
    %32 = vector.load %arg1[%c0_11, %c1, %c0_12] : memref<1x290x4xf32, #tpu.memory_space<vmem>>, vector<1x256x4xf32>
    %33 = vector.shape_cast %32 : vector<1x256x4xf32> to vector<256x4xf32>
    %c1_13 = arith.constant 1 : index
    %c0_14 = arith.constant 0 : index
    %c0_15 = arith.constant 0 : index
    %34 = vector.load %arg2[%c1_13, %c0_14, %c0_15] : memref<9x4x32xf32, #tpu.memory_space<vmem>>, vector<1x4x32xf32>
    %35 = vector.shape_cast %34 : vector<1x4x32xf32> to vector<4x32xf32>
    %cst_16 = arith.constant dense<0.000000e+00> : vector<256x32xf32>
    %36 = tpu.matmul %33, %35, %cst_16 {dimension_numbers = #tpu.dot_dimension_numbers<[1], [0], [0], [1], [0, 0, 1, 1], [], []>} : vector<256x4xf32>, vector<4x32xf32>, vector<256x32xf32> -> vector<256x32xf32>
    %37 = arith.addf %31, %36 : vector<256x32xf32>
    %c0_17 = arith.constant 0 : index
    %c2 = arith.constant 2 : index
    %c0_18 = arith.constant 0 : index
    %38 = vector.load %arg1[%c0_17, %c2, %c0_18] : memref<1x290x4xf32, #tpu.memory_space<vmem>>, vector<1x256x4xf32>
    %39 = vector.shape_cast %38 : vector<1x256x4xf32> to vector<256x4xf32>
    %cst_19 = arith.constant 0.000000e+00 : f32
    %40 = vector.shape_cast %20 : vector<256x1xi1> to vector<256x1xi1>
    %41 = vector.broadcast %40 : vector<256x1xi1> to vector<256x4xi1>
    %42 = vector.broadcast %cst_19 : f32 to vector<256x4xf32>
    %43 = arith.select %41, %39, %42 : vector<256x4xi1>, vector<256x4xf32>
    %c2_20 = arith.constant 2 : index
    %c0_21 = arith.constant 0 : index
    %c0_22 = arith.constant 0 : index
    %44 = vector.load %arg2[%c2_20, %c0_21, %c0_22] : memref<9x4x32xf32, #tpu.memory_space<vmem>>, vector<1x4x32xf32>
    %45 = vector.shape_cast %44 : vector<1x4x32xf32> to vector<4x32xf32>
    %cst_23 = arith.constant dense<0.000000e+00> : vector<256x32xf32>
    %46 = tpu.matmul %43, %45, %cst_23 {dimension_numbers = #tpu.dot_dimension_numbers<[1], [0], [0], [1], [0, 0, 1, 1], [], []>} : vector<256x4xf32>, vector<4x32xf32>, vector<256x32xf32> -> vector<256x32xf32>
    %47 = arith.addf %37, %46 : vector<256x32xf32>
    %c0_24 = arith.constant 0 : index
    %c16 = arith.constant 16 : index
    %c0_25 = arith.constant 0 : index
    %48 = vector.load %arg1[%c0_24, %c16, %c0_25] : memref<1x290x4xf32, #tpu.memory_space<vmem>>, vector<1x256x4xf32>
    %49 = vector.shape_cast %48 : vector<1x256x4xf32> to vector<256x4xf32>
    %cst_26 = arith.constant 0.000000e+00 : f32
    %50 = vector.shape_cast %18 : vector<256x1xi1> to vector<256x1xi1>
    %51 = vector.broadcast %50 : vector<256x1xi1> to vector<256x4xi1>
    %52 = vector.broadcast %cst_26 : f32 to vector<256x4xf32>
    %53 = arith.select %51, %49, %52 : vector<256x4xi1>, vector<256x4xf32>
    %c3 = arith.constant 3 : index
    %c0_27 = arith.constant 0 : index
    %c0_28 = arith.constant 0 : index
    %54 = vector.load %arg2[%c3, %c0_27, %c0_28] : memref<9x4x32xf32, #tpu.memory_space<vmem>>, vector<1x4x32xf32>
    %55 = vector.shape_cast %54 : vector<1x4x32xf32> to vector<4x32xf32>
    %cst_29 = arith.constant dense<0.000000e+00> : vector<256x32xf32>
    %56 = tpu.matmul %53, %55, %cst_29 {dimension_numbers = #tpu.dot_dimension_numbers<[1], [0], [0], [1], [0, 0, 1, 1], [], []>} : vector<256x4xf32>, vector<4x32xf32>, vector<256x32xf32> -> vector<256x32xf32>
    %57 = arith.addf %47, %56 : vector<256x32xf32>
    %c0_30 = arith.constant 0 : index
    %c17 = arith.constant 17 : index
    %c0_31 = arith.constant 0 : index
    %58 = vector.load %arg1[%c0_30, %c17, %c0_31] : memref<1x290x4xf32, #tpu.memory_space<vmem>>, vector<1x256x4xf32>
    %59 = vector.shape_cast %58 : vector<1x256x4xf32> to vector<256x4xf32>
    %c4 = arith.constant 4 : index
    %c0_32 = arith.constant 0 : index
    %c0_33 = arith.constant 0 : index
    %60 = vector.load %arg2[%c4, %c0_32, %c0_33] : memref<9x4x32xf32, #tpu.memory_space<vmem>>, vector<1x4x32xf32>
    %61 = vector.shape_cast %60 : vector<1x4x32xf32> to vector<4x32xf32>
    %cst_34 = arith.constant dense<0.000000e+00> : vector<256x32xf32>
    %62 = tpu.matmul %59, %61, %cst_34 {dimension_numbers = #tpu.dot_dimension_numbers<[1], [0], [0], [1], [0, 0, 1, 1], [], []>} : vector<256x4xf32>, vector<4x32xf32>, vector<256x32xf32> -> vector<256x32xf32>
    %63 = arith.addf %57, %62 : vector<256x32xf32>
    %c0_35 = arith.constant 0 : index
    %c18 = arith.constant 18 : index
    %c0_36 = arith.constant 0 : index
    %64 = vector.load %arg1[%c0_35, %c18, %c0_36] : memref<1x290x4xf32, #tpu.memory_space<vmem>>, vector<1x256x4xf32>
    %65 = vector.shape_cast %64 : vector<1x256x4xf32> to vector<256x4xf32>
    %cst_37 = arith.constant 0.000000e+00 : f32
    %66 = vector.shape_cast %20 : vector<256x1xi1> to vector<256x1xi1>
    %67 = vector.broadcast %66 : vector<256x1xi1> to vector<256x4xi1>
    %68 = vector.broadcast %cst_37 : f32 to vector<256x4xf32>
    %69 = arith.select %67, %65, %68 : vector<256x4xi1>, vector<256x4xf32>
    %c5 = arith.constant 5 : index
    %c0_38 = arith.constant 0 : index
    %c0_39 = arith.constant 0 : index
    %70 = vector.load %arg2[%c5, %c0_38, %c0_39] : memref<9x4x32xf32, #tpu.memory_space<vmem>>, vector<1x4x32xf32>
    %71 = vector.shape_cast %70 : vector<1x4x32xf32> to vector<4x32xf32>
    %cst_40 = arith.constant dense<0.000000e+00> : vector<256x32xf32>
    %72 = tpu.matmul %69, %71, %cst_40 {dimension_numbers = #tpu.dot_dimension_numbers<[1], [0], [0], [1], [0, 0, 1, 1], [], []>} : vector<256x4xf32>, vector<4x32xf32>, vector<256x32xf32> -> vector<256x32xf32>
    %73 = arith.addf %63, %72 : vector<256x32xf32>
    %c0_41 = arith.constant 0 : index
    %c32 = arith.constant 32 : index
    %c0_42 = arith.constant 0 : index
    %74 = vector.load %arg1[%c0_41, %c32, %c0_42] : memref<1x290x4xf32, #tpu.memory_space<vmem>>, vector<1x256x4xf32>
    %75 = vector.shape_cast %74 : vector<1x256x4xf32> to vector<256x4xf32>
    %cst_43 = arith.constant 0.000000e+00 : f32
    %76 = vector.shape_cast %18 : vector<256x1xi1> to vector<256x1xi1>
    %77 = vector.broadcast %76 : vector<256x1xi1> to vector<256x4xi1>
    %78 = vector.broadcast %cst_43 : f32 to vector<256x4xf32>
    %79 = arith.select %77, %75, %78 : vector<256x4xi1>, vector<256x4xf32>
    %c6 = arith.constant 6 : index
    %c0_44 = arith.constant 0 : index
    %c0_45 = arith.constant 0 : index
    %80 = vector.load %arg2[%c6, %c0_44, %c0_45] : memref<9x4x32xf32, #tpu.memory_space<vmem>>, vector<1x4x32xf32>
    %81 = vector.shape_cast %80 : vector<1x4x32xf32> to vector<4x32xf32>
    %cst_46 = arith.constant dense<0.000000e+00> : vector<256x32xf32>
    %82 = tpu.matmul %79, %81, %cst_46 {dimension_numbers = #tpu.dot_dimension_numbers<[1], [0], [0], [1], [0, 0, 1, 1], [], []>} : vector<256x4xf32>, vector<4x32xf32>, vector<256x32xf32> -> vector<256x32xf32>
    %83 = arith.addf %73, %82 : vector<256x32xf32>
    %c0_47 = arith.constant 0 : index
    %c33 = arith.constant 33 : index
    %c0_48 = arith.constant 0 : index
    %84 = vector.load %arg1[%c0_47, %c33, %c0_48] : memref<1x290x4xf32, #tpu.memory_space<vmem>>, vector<1x256x4xf32>
    %85 = vector.shape_cast %84 : vector<1x256x4xf32> to vector<256x4xf32>
    %c7 = arith.constant 7 : index
    %c0_49 = arith.constant 0 : index
    %c0_50 = arith.constant 0 : index
    %86 = vector.load %arg2[%c7, %c0_49, %c0_50] : memref<9x4x32xf32, #tpu.memory_space<vmem>>, vector<1x4x32xf32>
    %87 = vector.shape_cast %86 : vector<1x4x32xf32> to vector<4x32xf32>
    %cst_51 = arith.constant dense<0.000000e+00> : vector<256x32xf32>
    %88 = tpu.matmul %85, %87, %cst_51 {dimension_numbers = #tpu.dot_dimension_numbers<[1], [0], [0], [1], [0, 0, 1, 1], [], []>} : vector<256x4xf32>, vector<4x32xf32>, vector<256x32xf32> -> vector<256x32xf32>
    %89 = arith.addf %83, %88 : vector<256x32xf32>
    %c0_52 = arith.constant 0 : index
    %c34 = arith.constant 34 : index
    %c0_53 = arith.constant 0 : index
    %90 = vector.load %arg1[%c0_52, %c34, %c0_53] : memref<1x290x4xf32, #tpu.memory_space<vmem>>, vector<1x256x4xf32>
    %91 = vector.shape_cast %90 : vector<1x256x4xf32> to vector<256x4xf32>
    %cst_54 = arith.constant 0.000000e+00 : f32
    %92 = vector.shape_cast %20 : vector<256x1xi1> to vector<256x1xi1>
    %93 = vector.broadcast %92 : vector<256x1xi1> to vector<256x4xi1>
    %94 = vector.broadcast %cst_54 : f32 to vector<256x4xf32>
    %95 = arith.select %93, %91, %94 : vector<256x4xi1>, vector<256x4xf32>
    %c8 = arith.constant 8 : index
    %c0_55 = arith.constant 0 : index
    %c0_56 = arith.constant 0 : index
    %96 = vector.load %arg2[%c8, %c0_55, %c0_56] : memref<9x4x32xf32, #tpu.memory_space<vmem>>, vector<1x4x32xf32>
    %97 = vector.shape_cast %96 : vector<1x4x32xf32> to vector<4x32xf32>
    %cst_57 = arith.constant dense<0.000000e+00> : vector<256x32xf32>
    %98 = tpu.matmul %95, %97, %cst_57 {dimension_numbers = #tpu.dot_dimension_numbers<[1], [0], [0], [1], [0, 0, 1, 1], [], []>} : vector<256x4xf32>, vector<4x32xf32>, vector<256x32xf32> -> vector<256x32xf32>
    %99 = arith.addf %89, %98 : vector<256x32xf32>
    %c0_58 = arith.constant 0 : index
    %c0_59 = arith.constant 0 : index
    %100 = vector.load %arg3[%c0_58, %c0_59] : memref<1x32xf32, #tpu.memory_space<vmem>>, vector<1x32xf32>
    %101 = vector.broadcast %100 : vector<1x32xf32> to vector<256x32xf32>
    %102 = arith.addf %99, %101 : vector<256x32xf32>
    %cst_60 = arith.constant 0.000000e+00 : f32
    %103 = vector.broadcast %cst_60 : f32 to vector<256x32xf32>
    %104 = arith.maximumf %102, %103 : vector<256x32xf32>
    %cst_61 = arith.constant 0.000000e+00 : f32
    %105 = vector.broadcast %cst_61 : f32 to vector<17x32xf32>
    %c0_62 = arith.constant 0 : index
    %c0_63 = arith.constant 0 : index
    %106 = vector.load %arg7[%c0_62, %c0_63] : memref<290x32xf32, #tpu.memory_space<vmem>>, vector<17x32xf32>
    tpu.vector_store %arg7[%c0_62, %c0_63], %105 {strides = array<i32>} : memref<290x32xf32, #tpu.memory_space<vmem>>, vector<17x32xf32>,
    %c273 = arith.constant 273 : index
    %c0_64 = arith.constant 0 : index
    %107 = vector.load %arg7[%c273, %c0_64] : memref<290x32xf32, #tpu.memory_space<vmem>>, vector<17x32xf32>
    tpu.vector_store %arg7[%c273, %c0_64], %105 {strides = array<i32>} : memref<290x32xf32, #tpu.memory_space<vmem>>, vector<17x32xf32>,
    %c17_65 = arith.constant 17 : index
    %c0_66 = arith.constant 0 : index
    %108 = vector.load %arg7[%c17_65, %c0_66] : memref<290x32xf32, #tpu.memory_space<vmem>>, vector<256x32xf32>
    tpu.vector_store %arg7[%c17_65, %c0_66], %104 {strides = array<i32>} : memref<290x32xf32, #tpu.memory_space<vmem>>, vector<256x32xf32>,
    %cst_67 = arith.constant 0.000000e+00 : f32
    %109 = vector.broadcast %cst_67 : f32 to vector<256x128xf32>
    %c0_68 = arith.constant 0 : index
    %c0_69 = arith.constant 0 : index
    %110 = vector.load %arg7[%c0_68, %c0_69] : memref<290x32xf32, #tpu.memory_space<vmem>>, vector<256x32xf32>
    %cst_70 = arith.constant 0.000000e+00 : f32
    %111 = vector.shape_cast %18 : vector<256x1xi1> to vector<256x1xi1>
    %112 = vector.broadcast %111 : vector<256x1xi1> to vector<256x32xi1>
    %113 = vector.broadcast %cst_70 : f32 to vector<256x32xf32>
    %114 = arith.select %112, %110, %113 : vector<256x32xi1>, vector<256x32xf32>
    %c0_71 = arith.constant 0 : index
    %c0_72 = arith.constant 0 : index
    %c0_73 = arith.constant 0 : index
    %115 = vector.load %arg4[%c0_71, %c0_72, %c0_73] : memref<9x32x128xf32, #tpu.memory_space<vmem>>, vector<1x32x128xf32>
    %116 = vector.shape_cast %115 : vector<1x32x128xf32> to vector<32x128xf32>
    %cst_74 = arith.constant dense<0.000000e+00> : vector<256x128xf32>
    %117 = tpu.matmul %114, %116, %cst_74 {dimension_numbers = #tpu.dot_dimension_numbers<[1], [0], [0], [1], [0, 0, 1, 1], [], []>} : vector<256x32xf32>, vector<32x128xf32>, vector<256x128xf32> -> vector<256x128xf32>
    %118 = arith.addf %109, %117 : vector<256x128xf32>
    %c1_75 = arith.constant 1 : index
    %c0_76 = arith.constant 0 : index
    %119 = vector.load %arg7[%c1_75, %c0_76] : memref<290x32xf32, #tpu.memory_space<vmem>>, vector<256x32xf32>
    %c1_77 = arith.constant 1 : index
    %c0_78 = arith.constant 0 : index
    %c0_79 = arith.constant 0 : index
    %120 = vector.load %arg4[%c1_77, %c0_78, %c0_79] : memref<9x32x128xf32, #tpu.memory_space<vmem>>, vector<1x32x128xf32>
    %121 = vector.shape_cast %120 : vector<1x32x128xf32> to vector<32x128xf32>
    %cst_80 = arith.constant dense<0.000000e+00> : vector<256x128xf32>
    %122 = tpu.matmul %119, %121, %cst_80 {dimension_numbers = #tpu.dot_dimension_numbers<[1], [0], [0], [1], [0, 0, 1, 1], [], []>} : vector<256x32xf32>, vector<32x128xf32>, vector<256x128xf32> -> vector<256x128xf32>
    %123 = arith.addf %118, %122 : vector<256x128xf32>
    %c2_81 = arith.constant 2 : index
    %c0_82 = arith.constant 0 : index
    %124 = vector.load %arg7[%c2_81, %c0_82] : memref<290x32xf32, #tpu.memory_space<vmem>>, vector<256x32xf32>
    %cst_83 = arith.constant 0.000000e+00 : f32
    %125 = vector.shape_cast %20 : vector<256x1xi1> to vector<256x1xi1>
    %126 = vector.broadcast %125 : vector<256x1xi1> to vector<256x32xi1>
    %127 = vector.broadcast %cst_83 : f32 to vector<256x32xf32>
    %128 = arith.select %126, %124, %127 : vector<256x32xi1>, vector<256x32xf32>
    %c2_84 = arith.constant 2 : index
    %c0_85 = arith.constant 0 : index
    %c0_86 = arith.constant 0 : index
    %129 = vector.load %arg4[%c2_84, %c0_85, %c0_86] : memref<9x32x128xf32, #tpu.memory_space<vmem>>, vector<1x32x128xf32>
    %130 = vector.shape_cast %129 : vector<1x32x128xf32> to vector<32x128xf32>
    %cst_87 = arith.constant dense<0.000000e+00> : vector<256x128xf32>
    %131 = tpu.matmul %128, %130, %cst_87 {dimension_numbers = #tpu.dot_dimension_numbers<[1], [0], [0], [1], [0, 0, 1, 1], [], []>} : vector<256x32xf32>, vector<32x128xf32>, vector<256x128xf32> -> vector<256x128xf32>
    %132 = arith.addf %123, %131 : vector<256x128xf32>
    %c16_88 = arith.constant 16 : index
    %c0_89 = arith.constant 0 : index
    %133 = vector.load %arg7[%c16_88, %c0_89] : memref<290x32xf32, #tpu.memory_space<vmem>>, vector<256x32xf32>
    %cst_90 = arith.constant 0.000000e+00 : f32
    %134 = vector.shape_cast %18 : vector<256x1xi1> to vector<256x1xi1>
    %135 = vector.broadcast %134 : vector<256x1xi1> to vector<256x32xi1>
    %136 = vector.broadcast %cst_90 : f32 to vector<256x32xf32>
    %137 = arith.select %135, %133, %136 : vector<256x32xi1>, vector<256x32xf32>
    %c3_91 = arith.constant 3 : index
    %c0_92 = arith.constant 0 : index
    %c0_93 = arith.constant 0 : index
    %138 = vector.load %arg4[%c3_91, %c0_92, %c0_93] : memref<9x32x128xf32, #tpu.memory_space<vmem>>, vector<1x32x128xf32>
    %139 = vector.shape_cast %138 : vector<1x32x128xf32> to vector<32x128xf32>
    %cst_94 = arith.constant dense<0.000000e+00> : vector<256x128xf32>
    %140 = tpu.matmul %137, %139, %cst_94 {dimension_numbers = #tpu.dot_dimension_numbers<[1], [0], [0], [1], [0, 0, 1, 1], [], []>} : vector<256x32xf32>, vector<32x128xf32>, vector<256x128xf32> -> vector<256x128xf32>
    %141 = arith.addf %132, %140 : vector<256x128xf32>
    %c17_95 = arith.constant 17 : index
    %c0_96 = arith.constant 0 : index
    %142 = vector.load %arg7[%c17_95, %c0_96] : memref<290x32xf32, #tpu.memory_space<vmem>>, vector<256x32xf32>
    %c4_97 = arith.constant 4 : index
    %c0_98 = arith.constant 0 : index
    %c0_99 = arith.constant 0 : index
    %143 = vector.load %arg4[%c4_97, %c0_98, %c0_99] : memref<9x32x128xf32, #tpu.memory_space<vmem>>, vector<1x32x128xf32>
    %144 = vector.shape_cast %143 : vector<1x32x128xf32> to vector<32x128xf32>
    %cst_100 = arith.constant dense<0.000000e+00> : vector<256x128xf32>
    %145 = tpu.matmul %142, %144, %cst_100 {dimension_numbers = #tpu.dot_dimension_numbers<[1], [0], [0], [1], [0, 0, 1, 1], [], []>} : vector<256x32xf32>, vector<32x128xf32>, vector<256x128xf32> -> vector<256x128xf32>
    %146 = arith.addf %141, %145 : vector<256x128xf32>
    %c18_101 = arith.constant 18 : index
    %c0_102 = arith.constant 0 : index
    %147 = vector.load %arg7[%c18_101, %c0_102] : memref<290x32xf32, #tpu.memory_space<vmem>>, vector<256x32xf32>
    %cst_103 = arith.constant 0.000000e+00 : f32
    %148 = vector.shape_cast %20 : vector<256x1xi1> to vector<256x1xi1>
    %149 = vector.broadcast %148 : vector<256x1xi1> to vector<256x32xi1>
    %150 = vector.broadcast %cst_103 : f32 to vector<256x32xf32>
    %151 = arith.select %149, %147, %150 : vector<256x32xi1>, vector<256x32xf32>
    %c5_104 = arith.constant 5 : index
    %c0_105 = arith.constant 0 : index
    %c0_106 = arith.constant 0 : index
    %152 = vector.load %arg4[%c5_104, %c0_105, %c0_106] : memref<9x32x128xf32, #tpu.memory_space<vmem>>, vector<1x32x128xf32>
    %153 = vector.shape_cast %152 : vector<1x32x128xf32> to vector<32x128xf32>
    %cst_107 = arith.constant dense<0.000000e+00> : vector<256x128xf32>
    %154 = tpu.matmul %151, %153, %cst_107 {dimension_numbers = #tpu.dot_dimension_numbers<[1], [0], [0], [1], [0, 0, 1, 1], [], []>} : vector<256x32xf32>, vector<32x128xf32>, vector<256x128xf32> -> vector<256x128xf32>
    %155 = arith.addf %146, %154 : vector<256x128xf32>
    %c32_108 = arith.constant 32 : index
    %c0_109 = arith.constant 0 : index
    %156 = vector.load %arg7[%c32_108, %c0_109] : memref<290x32xf32, #tpu.memory_space<vmem>>, vector<256x32xf32>
    %cst_110 = arith.constant 0.000000e+00 : f32
    %157 = vector.shape_cast %18 : vector<256x1xi1> to vector<256x1xi1>
    %158 = vector.broadcast %157 : vector<256x1xi1> to vector<256x32xi1>
    %159 = vector.broadcast %cst_110 : f32 to vector<256x32xf32>
    %160 = arith.select %158, %156, %159 : vector<256x32xi1>, vector<256x32xf32>
    %c6_111 = arith.constant 6 : index
    %c0_112 = arith.constant 0 : index
    %c0_113 = arith.constant 0 : index
    %161 = vector.load %arg4[%c6_111, %c0_112, %c0_113] : memref<9x32x128xf32, #tpu.memory_space<vmem>>, vector<1x32x128xf32>
    %162 = vector.shape_cast %161 : vector<1x32x128xf32> to vector<32x128xf32>
    %cst_114 = arith.constant dense<0.000000e+00> : vector<256x128xf32>
    %163 = tpu.matmul %160, %162, %cst_114 {dimension_numbers = #tpu.dot_dimension_numbers<[1], [0], [0], [1], [0, 0, 1, 1], [], []>} : vector<256x32xf32>, vector<32x128xf32>, vector<256x128xf32> -> vector<256x128xf32>
    %164 = arith.addf %155, %163 : vector<256x128xf32>
    %c33_115 = arith.constant 33 : index
    %c0_116 = arith.constant 0 : index
    %165 = vector.load %arg7[%c33_115, %c0_116] : memref<290x32xf32, #tpu.memory_space<vmem>>, vector<256x32xf32>
    %c7_117 = arith.constant 7 : index
    %c0_118 = arith.constant 0 : index
    %c0_119 = arith.constant 0 : index
    %166 = vector.load %arg4[%c7_117, %c0_118, %c0_119] : memref<9x32x128xf32, #tpu.memory_space<vmem>>, vector<1x32x128xf32>
    %167 = vector.shape_cast %166 : vector<1x32x128xf32> to vector<32x128xf32>
    %cst_120 = arith.constant dense<0.000000e+00> : vector<256x128xf32>
    %168 = tpu.matmul %165, %167, %cst_120 {dimension_numbers = #tpu.dot_dimension_numbers<[1], [0], [0], [1], [0, 0, 1, 1], [], []>} : vector<256x32xf32>, vector<32x128xf32>, vector<256x128xf32> -> vector<256x128xf32>
    %169 = arith.addf %164, %168 : vector<256x128xf32>
    %c34_121 = arith.constant 34 : index
    %c0_122 = arith.constant 0 : index
    %170 = vector.load %arg7[%c34_121, %c0_122] : memref<290x32xf32, #tpu.memory_space<vmem>>, vector<256x32xf32>
    %cst_123 = arith.constant 0.000000e+00 : f32
    %171 = vector.shape_cast %20 : vector<256x1xi1> to vector<256x1xi1>
    %172 = vector.broadcast %171 : vector<256x1xi1> to vector<256x32xi1>
    %173 = vector.broadcast %cst_123 : f32 to vector<256x32xf32>
    %174 = arith.select %172, %170, %173 : vector<256x32xi1>, vector<256x32xf32>
    %c8_124 = arith.constant 8 : index
    %c0_125 = arith.constant 0 : index
    %c0_126 = arith.constant 0 : index
    %175 = vector.load %arg4[%c8_124, %c0_125, %c0_126] : memref<9x32x128xf32, #tpu.memory_space<vmem>>, vector<1x32x128xf32>
    %176 = vector.shape_cast %175 : vector<1x32x128xf32> to vector<32x128xf32>
    %cst_127 = arith.constant dense<0.000000e+00> : vector<256x128xf32>
    %177 = tpu.matmul %174, %176, %cst_127 {dimension_numbers = #tpu.dot_dimension_numbers<[1], [0], [0], [1], [0, 0, 1, 1], [], []>} : vector<256x32xf32>, vector<32x128xf32>, vector<256x128xf32> -> vector<256x128xf32>
    %178 = arith.addf %169, %177 : vector<256x128xf32>
    %c0_128 = arith.constant 0 : index
    %c0_129 = arith.constant 0 : index
    %179 = vector.load %arg5[%c0_128, %c0_129] : memref<1x128xf32, #tpu.memory_space<vmem>>, vector<1x128xf32>
    %180 = vector.broadcast %179 : vector<1x128xf32> to vector<256x128xf32>
    %181 = arith.addf %178, %180 : vector<256x128xf32>
    %cst_130 = arith.constant 0.000000e+00 : f32
    %182 = vector.broadcast %cst_130 : f32 to vector<256x128xf32>
    %183 = arith.maximumf %181, %182 : vector<256x128xf32>
    %cst_131 = arith.constant 9.99999997E-7 : f32
    %184 = vector.broadcast %cst_131 : f32 to vector<256x128xf32>
    %185 = arith.maximumf %183, %184 : vector<256x128xf32>
    %186 = arith.mulf %185, %185 : vector<256x128xf32>
    %187 = arith.mulf %186, %185 : vector<256x128xf32>
    %cst_132 = arith.constant dense<0.000000e+00> : vector<128xf32>
    %188 = vector.multi_reduction <add>, %187, %cst_132 [0] : vector<256x128xf32> to vector<128xf32>
    %189 = vector.shape_cast %188 : vector<128xf32> to vector<1x128xf32>
    %cst_133 = arith.constant 3.906250e-03 : f32
    %190 = vector.broadcast %cst_133 : f32 to vector<1x128xf32>
    %191 = arith.mulf %189, %190 : vector<1x128xf32>
    %192 = math.log %191 : vector<1x128xf32>
    %cst_134 = arith.constant 0.333333343 : f32
    %193 = vector.broadcast %cst_134 : f32 to vector<1x128xf32>
    %194 = arith.mulf %192, %193 : vector<1x128xf32>
    %195 = math.exp %194 : vector<1x128xf32>
    %c0_135 = arith.constant 0 : index
    %c0_136 = arith.constant 0 : index
    %c0_137 = arith.constant 0 : index
    %196 = vector.load %arg6[%c0_135, %c0_136, %c0_137] : memref<1x1x128xf32, #tpu.memory_space<vmem>>, vector<1x1x128xf32>
    %197 = vector.shape_cast %196 : vector<1x1x128xf32> to vector<1x128xf32>
    %198 = vector.shape_cast %195 : vector<1x128xf32> to vector<1x1x128xf32>
    tpu.vector_store %arg6[%c0_135, %c0_136, %c0_137], %198 {strides = array<i32>} : memref<1x1x128xf32, #tpu.memory_space<vmem>>, vector<1x1x128xf32>,
    return
  }
  func.func @transform_0(%arg0: i32) -> (i32, i32, i32) {
    %c0_i32 = arith.constant 0 : i32
    %c0_i32_0 = arith.constant 0 : i32
    %c0_i32_1 = arith.constant 0 : i32
    return %arg0, %c0_i32, %c0_i32_0 : i32, i32, i32
  }
  func.func @transform_1(%arg0: i32) -> (i32, i32, i32) {
    %c0_i32 = arith.constant 0 : i32
    %c0_i32_0 = arith.constant 0 : i32
    %c0_i32_1 = arith.constant 0 : i32
    %c0_i32_2 = arith.constant 0 : i32
    return %c0_i32, %c0_i32_0, %c0_i32_1 : i32, i32, i32
  }
  func.func @transform_2(%arg0: i32) -> (i32, i32) {
    %c0_i32 = arith.constant 0 : i32
    %c0_i32_0 = arith.constant 0 : i32
    %c0_i32_1 = arith.constant 0 : i32
    return %c0_i32, %c0_i32_0 : i32, i32
  }
  func.func @transform_3(%arg0: i32) -> (i32, i32, i32) {
    %c0_i32 = arith.constant 0 : i32
    %c0_i32_0 = arith.constant 0 : i32
    %c0_i32_1 = arith.constant 0 : i32
    %c0_i32_2 = arith.constant 0 : i32
    return %c0_i32, %c0_i32_0, %c0_i32_1 : i32, i32, i32
  }
  func.func @transform_4(%arg0: i32) -> (i32, i32) {
    %c0_i32 = arith.constant 0 : i32
    %c0_i32_0 = arith.constant 0 : i32
    %c0_i32_1 = arith.constant 0 : i32
    return %c0_i32, %c0_i32_0 : i32, i32
  }
  func.func @transform_5(%arg0: i32) -> (i32, i32, i32) {
    %c0_i32 = arith.constant 0 : i32
    %c0_i32_0 = arith.constant 0 : i32
    %c0_i32_1 = arith.constant 0 : i32
    return %arg0, %c0_i32, %c0_i32_0 : i32, i32, i32
  }
}

</mosaic_0001>

<llo_original>
// kernel: tpu_custom_call.1
$region0: #{tpu_custom_call.1}
  #allocation0 [shape = 'u32[]', space=smem, size = 0x4, offset = 0x4, fixed_abs, tag = 'smem constant byte address 0x4 - core index']
  #allocation1 [shape = 'u32[72,128]{1,0:T(1,128)}', space=vmem, size = 0x9000, scoped, tag = 'internal scratch']
  #allocation2 [shape = 'f32[290,32]{1,0:T(8,128)}', space=vmem, size = 0x25000, scoped, tag = 'scratch operand']
  %s0 = inlined_call_operand.vmem [shape: f32[2,290,4], index: 0, kind: input, shape index: {}]
  %s1 = inlined_call_operand.vmem [shape: f32[9,4,32], index: 1, kind: input, shape index: {}]
  %s2 = inlined_call_operand.vmem [shape: f32[1,32], index: 2, kind: input, shape index: {}]
  %s3 = inlined_call_operand.vmem [shape: f32[9,32,128], index: 3, kind: input, shape index: {}]
  %s4 = inlined_call_operand.vmem [shape: f32[1,128], index: 4, kind: input, shape index: {}]
  %s5 = inlined_call_operand.hbm [shape: f32[2,1,128], index: 5, kind: output, shape index: {}]
  %s6 = sld [smem:[#allocation0]]
  $region53: #{tpu_custom_call.1} parent=0
    _
  %s8 = ssub.s32 1, %s6
  %s9 = scalar_select 0, %s8, %s6
  $region1: #{tpu_custom_call.1} parent=0
    #allocation3 [shape = 'u8[1024]{0}', space=vmem, size = 0x400, scoped, tag = 'output window, operand 0']
    #allocation4 [shape = 's32[2]{0}', space=sflag, size = 0x8, scoped, tag = 'scoped memory for tpu_custom_call.1']
    %10 = vsyncpa [#allocation4], 0
    %s11 = scalar_lea.sflag [#allocation4], 1
    %12 = vsyncpa %s11, 0
    loop: start=0, step=1, limit=4
    $region2: #{tpu_custom_call.1} parent=1 // loop_pre_header
      _
    $region3: #{tpu_custom_call.1} parent=1 // loop_header
      %s14 = sphi 0, %s18
      %p15 = scmp.ge.s32.totalorder %s14, 4
      %s24 = sphi 0, %s26
      %s27 = sphi 0, %s24
      %s28 = sphi 0, %s27
      %s44 = sphi 0, %s28
      %s48 = sphi 0, %s48
      %s50 = sphi 0, %s48
      %s51 = sphi 0, %s50
      %s65 = sphi 0, %s51
      %s69 = sphi 0, %s69
      %s71 = sphi 0, %s69
      %s72 = sphi 0, %s71
      %s86 = sphi 0, %s72
      %s90 = sphi 0, %s90
      %s92 = sphi 0, %s90
      %s93 = sphi 0, %s92
      %s107 = sphi 0, %s93
      %s111 = sphi 0, %s111
      %s113 = sphi 0, %s111
      %s114 = sphi 0, %s113
      %s128 = sphi 0, %s114
      %s134 = sphi 0, %s136
      %s137 = sphi 0, %s134
      %s138 = sphi 0, %s137
      %s154 = sphi 0, %s138
    $region4: #{tpu_custom_call.1} parent=1 // loop_header_branch
      %17 = sbr.rel (%p15) target = $region8
    $region5: #{tpu_custom_call.1} parent=1 // loop_body
      %s19 = ssub.s32 %s14, 1
      %s20 = ssub.s32 %s14, 2
      %s21 = sadd.s32 %s14, 1
      %s22 = ssub.s32 %s14, %s21
      %p23 = scmp.eq.s32.totalorder %s22, 0
      %s25 = sadd.s32 %s24, 1
      %s26 = scalar_select %p23, %s24, %s25
      %p29 = pneg %p23
      %p30 = scmp.eq.s32.totalorder %s14, 1
      %p31 = por %p29, %p30
      %p32 = scmp.ne.s32.totalorder %s24, %s27
      %p33 = scmp.eq.s32.totalorder %s14, 0
      %p34 = por %p32, %p33
      %p35 = scmp.ne.s32.totalorder %s24, %s27
      %p36 = scmp.eq.s32.totalorder %s19, 1
      %p37 = por %p35, %p36
      %p38 = scmp.ne.s32.totalorder %s27, %s28
      %p39 = scmp.eq.s32.totalorder %s19, 0
      %p40 = por %p38, %p39
      %p41 = scmp.ne.s32.totalorder %s27, %s28
      %p42 = scmp.eq.s32.totalorder %s20, 1
      %p43 = por %p41, %p42
      %p45 = scmp.ne.s32.totalorder %s28, %s44
      %p46 = scmp.eq.s32.totalorder %s20, 0
      %p47 = por %p45, %p46
      %s49 = sadd.s32 %s48, 1
      %p52 = scmp.eq.s32.totalorder %s14, 1
      %p53 = scmp.ne.s32.totalorder %s48, %s50
      %p54 = scmp.eq.s32.totalorder %s14, 0
      %p55 = por %p53, %p54
      %p56 = scmp.ne.s32.totalorder %s48, %s50
      %p57 = scmp.eq.s32.totalorder %s19, 1
      %p58 = por %p56, %p57
      %p59 = scmp.ne.s32.totalorder %s50, %s51
      %p60 = scmp.eq.s32.totalorder %s19, 0
      %p61 = por %p59, %p60
      %p62 = scmp.ne.s32.totalorder %s50, %s51
      %p63 = scmp.eq.s32.totalorder %s20, 1
      %p64 = por %p62, %p63
      %p66 = scmp.ne.s32.totalorder %s51, %s65
      %p67 = scmp.eq.s32.totalorder %s20, 0
      %p68 = por %p66, %p67
      %s70 = sadd.s32 %s69, 1
      %p73 = scmp.eq.s32.totalorder %s14, 1
      %p74 = scmp.ne.s32.totalorder %s69, %s71
      %p75 = scmp.eq.s32.totalorder %s14, 0
      %p76 = por %p74, %p75
      %p77 = scmp.ne.s32.totalorder %s69, %s71
      %p78 = scmp.eq.s32.totalorder %s19, 1
      %p79 = por %p77, %p78
      %p80 = scmp.ne.s32.totalorder %s71, %s72
      %p81 = scmp.eq.s32.totalorder %s19, 0
      %p82 = por %p80, %p81
      %p83 = scmp.ne.s32.totalorder %s71, %s72
      %p84 = scmp.eq.s32.totalorder %s20, 1
      %p85 = por %p83, %p84
      %p87 = scmp.ne.s32.totalorder %s72, %s86
      %p88 = scmp.eq.s32.totalorder %s20, 0
      %p89 = por %p87, %p88
      %s91 = sadd.s32 %s90, 1
      %p94 = scmp.eq.s32.totalorder %s14, 1
      %p95 = scmp.ne.s32.totalorder %s90, %s92
      %p96 = scmp.eq.s32.totalorder %s14, 0
      %p97 = por %p95, %p96
      %p98 = scmp.ne.s32.totalorder %s90, %s92
      %p99 = scmp.eq.s32.totalorder %s19, 1
      %p100 = por %p98, %p99
      %p101 = scmp.ne.s32.totalorder %s92, %s93
      %p102 = scmp.eq.s32.totalorder %s19, 0
      %p103 = por %p101, %p102
      %p104 = scmp.ne.s32.totalorder %s92, %s93
      %p105 = scmp.eq.s32.totalorder %s20, 1
      %p106 = por %p104, %p105
      %p108 = scmp.ne.s32.totalorder %s93, %s107
      %p109 = scmp.eq.s32.totalorder %s20, 0
      %p110 = por %p108, %p109
      %s112 = sadd.s32 %s111, 1
      %p115 = scmp.eq.s32.totalorder %s14, 1
      %p116 = scmp.ne.s32.totalorder %s111, %s113
      %p117 = scmp.eq.s32.totalorder %s14, 0
      %p118 = por %p116, %p117
      %p119 = scmp.ne.s32.totalorder %s111, %s113
      %p120 = scmp.eq.s32.totalorder %s19, 1
      %p121 = por %p119, %p120
      %p122 = scmp.ne.s32.totalorder %s113, %s114
      %p123 = scmp.eq.s32.totalorder %s19, 0
      %p124 = por %p122, %p123
      %p125 = scmp.ne.s32.totalorder %s113, %s114
      %p126 = scmp.eq.s32.totalorder %s20, 1
      %p127 = por %p125, %p126
      %p129 = scmp.ne.s32.totalorder %s114, %s128
      %p130 = scmp.eq.s32.totalorder %s20, 0
      %p131 = por %p129, %p130
      %s132 = ssub.s32 %s14, %s21
      %p133 = scmp.eq.s32.totalorder %s132, 0
      %s135 = sadd.s32 %s134, 1
      %s136 = scalar_select %p133, %s134, %s135
      %p139 = pneg %p133
      %p140 = scmp.eq.s32.totalorder %s14, 1
      %p141 = por %p139, %p140
      %p142 = scmp.ne.s32.totalorder %s134, %s137
      %p143 = scmp.eq.s32.totalorder %s14, 0
      %p144 = por %p142, %p143
      %p145 = scmp.ne.s32.totalorder %s134, %s137
      %p146 = scmp.eq.s32.totalorder %s19, 1
      %p147 = por %p145, %p146
      %p148 = scmp.ne.s32.totalorder %s137, %s138
      %p149 = scmp.eq.s32.totalorder %s19, 0
      %p150 = por %p148, %p149
      %p151 = scmp.ne.s32.totalorder %s137, %s138
      %p152 = scmp.eq.s32.totalorder %s20, 1
      %p153 = por %p151, %p152
      %p155 = scmp.ne.s32.totalorder %s138, %s154
      %p156 = scmp.eq.s32.totalorder %s20, 0
      %p157 = por %p155, %p156
      %p158 = scmp.le.s32.totalorder 1, %s14
      %p159 = scmp.lt.s32.totalorder %s14, 3
      %p160 = pnand %p158, %p159
      %p161 = pneg %p160
      // Predicated region
      $region9: #{tpu_custom_call.1} parent=5 // pred_check
        _
      $region10: #{tpu_custom_call.1} parent=5 // pred_check_branch
        %163 = sbr.rel (%p160) target = $region12
      $region11: #{tpu_custom_call.1} parent=5 // pred_region
        %s164 = ssub.s32 %s14, 1
        // Predicated region
        $region13: #{tpu_custom_call.1} parent=11 // pred_check
          %p165 = pneg %p61
        $region14: #{tpu_custom_call.1} parent=11 // pred_check_branch
          %167 = sbr.rel (%p165) target = $region16
        $region15: #{tpu_custom_call.1} parent=11 // pred_region
          _
        $region16: #{tpu_custom_call.1} parent=11 // pred_fallthru
          _
        // Predicated region
        $region17: #{tpu_custom_call.1} parent=11 // pred_check
          %p168 = pneg %p82
        $region18: #{tpu_custom_call.1} parent=11 // pred_check_branch
          %170 = sbr.rel (%p168) target = $region20
        $region19: #{tpu_custom_call.1} parent=11 // pred_region
          _
        $region20: #{tpu_custom_call.1} parent=11 // pred_fallthru
          _
        // Predicated region
        $region21: #{tpu_custom_call.1} parent=11 // pred_check
          %p171 = pneg %p103
        $region22: #{tpu_custom_call.1} parent=11 // pred_check_branch
          %173 = sbr.rel (%p171) target = $region24
        $region23: #{tpu_custom_call.1} parent=11 // pred_region
          _
        $region24: #{tpu_custom_call.1} parent=11 // pred_fallthru
          _
        // Predicated region
        $region25: #{tpu_custom_call.1} parent=11 // pred_check
          %p174 = pneg %p124
        $region26: #{tpu_custom_call.1} parent=11 // pred_check_branch
          %176 = sbr.rel (%p174) target = $region28
        $region27: #{tpu_custom_call.1} parent=11 // pred_region
          _
        $region28: #{tpu_custom_call.1} parent=11 // pred_fallthru
          _
      $region12: #{tpu_custom_call.1} parent=5 // pred_fallthru
        _
      %p177 = scmp.lt.s32.totalorder %s14, 2
      // Predicated region
      $region29: #{tpu_custom_call.1} parent=5 // pred_check
        %p178 = pneg %p177
      $region30: #{tpu_custom_call.1} parent=5 // pred_check_branch
        %180 = sbr.rel (%p178) target = $region32
      $region31: #{tpu_custom_call.1} parent=5 // pred_region
        // Predicated region
        $region33: #{tpu_custom_call.1} parent=31 // pred_check
          %p181 = pneg %p34
        $region34: #{tpu_custom_call.1} parent=31 // pred_check_branch
          %183 = sbr.rel (%p181) target = $region36
        $region35: #{tpu_custom_call.1} parent=31 // pred_region
          %p184 = scmp.lt.s32.totalorder %s14, 1
          %s185 = scalar_select %p184, %s14, 1
          %s186 = smul.addr %s185, 37
          %s187 = smul.addr %s186, 8
          %s188 = scalar_lea.vmem %s0, %s187
        $region36: #{tpu_custom_call.1} parent=31 // pred_fallthru
          _
      $region32: #{tpu_custom_call.1} parent=5 // pred_fallthru
        _
      %p189 = scmp.le.s32.totalorder 1, %s14
      %p190 = scmp.lt.s32.totalorder %s14, 3
      %p191 = pnand %p189, %p190
      %p192 = pneg %p191
      // Predicated region
      $region37: #{tpu_custom_call.1} parent=5 // pred_check
        _
      $region38: #{tpu_custom_call.1} parent=5 // pred_check_branch
        %194 = sbr.rel (%p191) target = $region40
      $region39: #{tpu_custom_call.1} parent=5 // pred_region
        %s195 = ssub.s32 %s14, 1
        %p196 = scmp.lt.s32.totalorder %s19, 1
        %s197 = scalar_select %p196, %s19, 1
        %s198 = smul.addr %s197, 37
        %s199 = smul.addr %s198, 8
        %s200 = scalar_lea.vmem %s0, %s199
        %p201 = pneg %p40
        %p202 = pneg %p37
        %p203 = pneg %p61
        %p204 = pneg %p58
        %p205 = pneg %p82
        %p206 = pneg %p79
        %p207 = pneg %p103
        %p208 = pneg %p100
        %p209 = pneg %p124
        %p210 = pneg %p121
        %p211 = pneg %p150
        %p212 = pneg %p147
        %s213 = sand.u32 %s137, 1
        %s214 = scalar_lea.sflag [#allocation4], %s213
        %s215 = sand.u32 %s137, 1
        %s216 = scalar_lea.vmem [#allocation3], %s215
        %p217 = scmp.lt.s32.totalorder %s19, 1
        %s218 = scalar_select %p217, %s19, 1
        %s219 = smul.addr %s218, 37
        %s220 = smul.addr %s219, 8
        %s221 = scalar_lea.vmem %s0, %s220
        %v222 = vlaneseq
        %v223 = vshrl.u32 %v222, 7
        %v224 = vadd.s32 %v223, 8
        %v225 = vadd.s32 %v223, 16
        %v226 = vadd.s32 %v223, 24
        %v227 = vadd.s32 %v223, 32
        %v228 = vadd.s32 %v223, 40
        %v229 = vadd.s32 %v223, 48
        %v230 = vadd.s32 %v223, 56
        %v231 = vadd.s32 %v223, 64
        %v232 = vadd.s32 %v223, 72
        %v233 = vadd.s32 %v223, 80
        %v234 = vadd.s32 %v223, 88
        %v235 = vadd.s32 %v223, 96
        %v236 = vadd.s32 %v223, 104
        %v237 = vadd.s32 %v223, 112
        %v238 = vadd.s32 %v223, 120
        %v239 = vadd.s32 %v223, 128
        %v240 = vadd.s32 %v223, 136
        %v241 = vadd.s32 %v223, 144
        %v242 = vadd.s32 %v223, 152
        %v243 = vadd.s32 %v223, 160
        %v244 = vadd.s32 %v223, 168
        %v245 = vadd.s32 %v223, 176
        %v246 = vadd.s32 %v223, 184
        %v247 = vadd.s32 %v223, 192
        %v248 = vadd.s32 %v223, 200
        %v249 = vadd.s32 %v223, 208
        %v250 = vadd.s32 %v223, 216
        %v251 = vadd.s32 %v223, 224
        %v252 = vadd.s32 %v223, 232
        %v253 = vadd.s32 %v223, 240
        %v254 = vadd.s32 %v223, 248
        %vm255 = vcmp.lt.s32.totalorder %v223, 0
        %v256 = vsub.s32 0, %v223
        %v257 = vsel %vm255, %v256, %v223
        %v258 = vshrl.u32 %v257, 4
        %v259 = vand.u32 %v257, 15
        %v260 = vsub.s32 0, %v259
        %v261 = vsel %vm255, %v260, %v259
        %vm262 = vcmp.lt.s32.totalorder %v224, 0
        %v263 = vsub.s32 0, %v224
        %v264 = vsel %vm262, %v263, %v224
        %v265 = vshrl.u32 %v264, 4
        %v266 = vand.u32 %v264, 15
        %v267 = vsub.s32 0, %v266
        %v268 = vsel %vm262, %v267, %v266
        %vm269 = vcmp.lt.s32.totalorder %v225, 0
        %v270 = vsub.s32 0, %v225
        %v271 = vsel %vm269, %v270, %v225
        %v272 = vshrl.u32 %v271, 4
        %v273 = vand.u32 %v271, 15
        %v274 = vsub.s32 0, %v273
        %v275 = vsel %vm269, %v274, %v273
        %vm276 = vcmp.lt.s32.totalorder %v226, 0
        %v277 = vsub.s32 0, %v226
        %v278 = vsel %vm276, %v277, %v226
        %v279 = vshrl.u32 %v278, 4
        %v280 = vand.u32 %v278, 15
        %v281 = vsub.s32 0, %v280
        %v282 = vsel %vm276, %v281, %v280
        %vm283 = vcmp.lt.s32.totalorder %v227, 0
        %v284 = vsub.s32 0, %v227
        %v285 = vsel %vm283, %v284, %v227
        %v286 = vshrl.u32 %v285, 4
        %v287 = vand.u32 %v285, 15
        %v288 = vsub.s32 0, %v287
        %v289 = vsel %vm283, %v288, %v287
        %vm290 = vcmp.lt.s32.totalorder %v228, 0
        %v291 = vsub.s32 0, %v228
        %v292 = vsel %vm290, %v291, %v228
        %v293 = vshrl.u32 %v292, 4
        %v294 = vand.u32 %v292, 15
        %v295 = vsub.s32 0, %v294
        %v296 = vsel %vm290, %v295, %v294
        %vm297 = vcmp.lt.s32.totalorder %v229, 0
        %v298 = vsub.s32 0, %v229
        %v299 = vsel %vm297, %v298, %v229
        %v300 = vshrl.u32 %v299, 4
        %v301 = vand.u32 %v299, 15
        %v302 = vsub.s32 0, %v301
        %v303 = vsel %vm297, %v302, %v301
        %vm304 = vcmp.lt.s32.totalorder %v230, 0
        %v305 = vsub.s32 0, %v230
        %v306 = vsel %vm304, %v305, %v230
        %v307 = vshrl.u32 %v306, 4
        %v308 = vand.u32 %v306, 15
        %v309 = vsub.s32 0, %v308
        %v310 = vsel %vm304, %v309, %v308
        %vm311 = vcmp.lt.s32.totalorder %v231, 0
        %v312 = vsub.s32 0, %v231
        %v313 = vsel %vm311, %v312, %v231
        %v314 = vshrl.u32 %v313, 4
        %v315 = vand.u32 %v313, 15
        %v316 = vsub.s32 0, %v315
        %v317 = vsel %vm311, %v316, %v315
        %vm318 = vcmp.lt.s32.totalorder %v232, 0
        %v319 = vsub.s32 0, %v232
        %v320 = vsel %vm318, %v319, %v232
        %v321 = vshrl.u32 %v320, 4
        %v322 = vand.u32 %v320, 15
        %v323 = vsub.s32 0, %v322
        %v324 = vsel %vm318, %v323, %v322
        %vm325 = vcmp.lt.s32.totalorder %v233, 0
        %v326 = vsub.s32 0, %v233
        %v327 = vsel %vm325, %v326, %v233
        %v328 = vshrl.u32 %v327, 4
        %v329 = vand.u32 %v327, 15
        %v330 = vsub.s32 0, %v329
        %v331 = vsel %vm325, %v330, %v329
        %vm332 = vcmp.lt.s32.totalorder %v234, 0
        %v333 = vsub.s32 0, %v234
        %v334 = vsel %vm332, %v333, %v234
        %v335 = vshrl.u32 %v334, 4
        %v336 = vand.u32 %v334, 15
        %v337 = vsub.s32 0, %v336
        %v338 = vsel %vm332, %v337, %v336
        %vm339 = vcmp.lt.s32.totalorder %v235, 0
        %v340 = vsub.s32 0, %v235
        %v341 = vsel %vm339, %v340, %v235
        %v342 = vshrl.u32 %v341, 4
        %v343 = vand.u32 %v341, 15
        %v344 = vsub.s32 0, %v343
        %v345 = vsel %vm339, %v344, %v343
        %vm346 = vcmp.lt.s32.totalorder %v236, 0
        %v347 = vsub.s32 0, %v236
        %v348 = vsel %vm346, %v347, %v236
        %v349 = vshrl.u32 %v348, 4
        %v350 = vand.u32 %v348, 15
        %v351 = vsub.s32 0, %v350
        %v352 = vsel %vm346, %v351, %v350
        %vm353 = vcmp.lt.s32.totalorder %v237, 0
        %v354 = vsub.s32 0, %v237
        %v355 = vsel %vm353, %v354, %v237
        %v356 = vshrl.u32 %v355, 4
        %v357 = vand.u32 %v355, 15
        %v358 = vsub.s32 0, %v357
        %v359 = vsel %vm353, %v358, %v357
        %vm360 = vcmp.lt.s32.totalorder %v238, 0
        %v361 = vsub.s32 0, %v238
        %v362 = vsel %vm360, %v361, %v238
        %v363 = vshrl.u32 %v362, 4
        %v364 = vand.u32 %v362, 15
        %v365 = vsub.s32 0, %v364
        %v366 = vsel %vm360, %v365, %v364
        %vm367 = vcmp.lt.s32.totalorder %v239, 0
        %v368 = vsub.s32 0, %v239
        %v369 = vsel %vm367, %v368, %v239
        %v370 = vshrl.u32 %v369, 4
        %v371 = vand.u32 %v369, 15
        %v372 = vsub.s32 0, %v371
        %v373 = vsel %vm367, %v372, %v371
        %vm374 = vcmp.lt.s32.totalorder %v240, 0
        %v375 = vsub.s32 0, %v240
        %v376 = vsel %vm374, %v375, %v240
        %v377 = vshrl.u32 %v376, 4
        %v378 = vand.u32 %v376, 15
        %v379 = vsub.s32 0, %v378
        %v380 = vsel %vm374, %v379, %v378
        %vm381 = vcmp.lt.s32.totalorder %v241, 0
        %v382 = vsub.s32 0, %v241
        %v383 = vsel %vm381, %v382, %v241
        %v384 = vshrl.u32 %v383, 4
        %v385 = vand.u32 %v383, 15
        %v386 = vsub.s32 0, %v385
        %v387 = vsel %vm381, %v386, %v385
        %vm388 = vcmp.lt.s32.totalorder %v242, 0
        %v389 = vsub.s32 0, %v242
        %v390 = vsel %vm388, %v389, %v242
        %v391 = vshrl.u32 %v390, 4
        %v392 = vand.u32 %v390, 15
        %v393 = vsub.s32 0, %v392
        %v394 = vsel %vm388, %v393, %v392
        %vm395 = vcmp.lt.s32.totalorder %v243, 0
        %v396 = vsub.s32 0, %v243
        %v397 = vsel %vm395, %v396, %v243
        %v398 = vshrl.u32 %v397, 4
        %v399 = vand.u32 %v397, 15
        %v400 = vsub.s32 0, %v399
        %v401 = vsel %vm395, %v400, %v399
        %vm402 = vcmp.lt.s32.totalorder %v244, 0
        %v403 = vsub.s32 0, %v244
        %v404 = vsel %vm402, %v403, %v244
        %v405 = vshrl.u32 %v404, 4
        %v406 = vand.u32 %v404, 15
        %v407 = vsub.s32 0, %v406
        %v408 = vsel %vm402, %v407, %v406
        %vm409 = vcmp.lt.s32.totalorder %v245, 0
        %v410 = vsub.s32 0, %v245
        %v411 = vsel %vm409, %v410, %v245
        %v412 = vshrl.u32 %v411, 4
        %v413 = vand.u32 %v411, 15
        %v414 = vsub.s32 0, %v413
        %v415 = vsel %vm409, %v414, %v413
        %vm416 = vcmp.lt.s32.totalorder %v246, 0
        %v417 = vsub.s32 0, %v246
        %v418 = vsel %vm416, %v417, %v246
        %v419 = vshrl.u32 %v418, 4
        %v420 = vand.u32 %v418, 15
        %v421 = vsub.s32 0, %v420
        %v422 = vsel %vm416, %v421, %v420
        %vm423 = vcmp.lt.s32.totalorder %v247, 0
        %v424 = vsub.s32 0, %v247
        %v425 = vsel %vm423, %v424, %v247
        %v426 = vshrl.u32 %v425, 4
        %v427 = vand.u32 %v425, 15
        %v428 = vsub.s32 0, %v427
        %v429 = vsel %vm423, %v428, %v427
        %vm430 = vcmp.lt.s32.totalorder %v248, 0
        %v431 = vsub.s32 0, %v248
        %v432 = vsel %vm430, %v431, %v248
        %v433 = vshrl.u32 %v432, 4
        %v434 = vand.u32 %v432, 15
        %v435 = vsub.s32 0, %v434
        %v436 = vsel %vm430, %v435, %v434
        %vm437 = vcmp.lt.s32.totalorder %v249, 0
        %v438 = vsub.s32 0, %v249
        %v439 = vsel %vm437, %v438, %v249
        %v440 = vshrl.u32 %v439, 4
        %v441 = vand.u32 %v439, 15
        %v442 = vsub.s32 0, %v441
        %v443 = vsel %vm437, %v442, %v441
        %vm444 = vcmp.lt.s32.totalorder %v250, 0
        %v445 = vsub.s32 0, %v250
        %v446 = vsel %vm444, %v445, %v250
        %v447 = vshrl.u32 %v446, 4
        %v448 = vand.u32 %v446, 15
        %v449 = vsub.s32 0, %v448
        %v450 = vsel %vm444, %v449, %v448
        %vm451 = vcmp.lt.s32.totalorder %v251, 0
        %v452 = vsub.s32 0, %v251
        %v453 = vsel %vm451, %v452, %v251
        %v454 = vshrl.u32 %v453, 4
        %v455 = vand.u32 %v453, 15
        %v456 = vsub.s32 0, %v455
        %v457 = vsel %vm451, %v456, %v455
        %vm458 = vcmp.lt.s32.totalorder %v252, 0
        %v459 = vsub.s32 0, %v252
        %v460 = vsel %vm458, %v459, %v252
        %v461 = vshrl.u32 %v460, 4
        %v462 = vand.u32 %v460, 15
        %v463 = vsub.s32 0, %v462
        %v464 = vsel %vm458, %v463, %v462
        %vm465 = vcmp.lt.s32.totalorder %v253, 0
        %v466 = vsub.s32 0, %v253
        %v467 = vsel %vm465, %v466, %v253
        %v468 = vshrl.u32 %v467, 4
        %v469 = vand.u32 %v467, 15
        %v470 = vsub.s32 0, %v469
        %v471 = vsel %vm465, %v470, %v469
        %vm472 = vcmp.lt.s32.totalorder %v254, 0
        %v473 = vsub.s32 0, %v254
        %v474 = vsel %vm472, %v473, %v254
        %v475 = vshrl.u32 %v474, 4
        %v476 = vand.u32 %v474, 15
        %v477 = vsub.s32 0, %v476
        %v478 = vsel %vm472, %v477, %v476
        %vm479 = vcmp.ne.s32.totalorder %v261, 0
        %vm480 = vcmp.ne.s32.totalorder %v268, 0
        %vm481 = vcmp.ne.s32.totalorder %v275, 0
        %vm482 = vcmp.ne.s32.totalorder %v282, 0
        %vm483 = vcmp.ne.s32.totalorder %v289, 0
        %vm484 = vcmp.ne.s32.totalorder %v296, 0
        %vm485 = vcmp.ne.s32.totalorder %v303, 0
        %vm486 = vcmp.ne.s32.totalorder %v310, 0
        %vm487 = vcmp.ne.s32.totalorder %v317, 0
        %vm488 = vcmp.ne.s32.totalorder %v324, 0
        %vm489 = vcmp.ne.s32.totalorder %v331, 0
        %vm490 = vcmp.ne.s32.totalorder %v338, 0
        %vm491 = vcmp.ne.s32.totalorder %v345, 0
        %vm492 = vcmp.ne.s32.totalorder %v352, 0
        %vm493 = vcmp.ne.s32.totalorder %v359, 0
        %vm494 = vcmp.ne.s32.totalorder %v366, 0
        %vm495 = vcmp.ne.s32.totalorder %v373, 0
        %vm496 = vcmp.ne.s32.totalorder %v380, 0
        %vm497 = vcmp.ne.s32.totalorder %v387, 0
        %vm498 = vcmp.ne.s32.totalorder %v394, 0
        %vm499 = vcmp.ne.s32.totalorder %v401, 0
        %vm500 = vcmp.ne.s32.totalorder %v408, 0
        %vm501 = vcmp.ne.s32.totalorder %v415, 0
        %vm502 = vcmp.ne.s32.totalorder %v422, 0
        %vm503 = vcmp.ne.s32.totalorder %v429, 0
        %vm504 = vcmp.ne.s32.totalorder %v436, 0
        %vm505 = vcmp.ne.s32.totalorder %v443, 0
        %vm506 = vcmp.ne.s32.totalorder %v450, 0
        %vm507 = vcmp.ne.s32.totalorder %v457, 0
        %vm508 = vcmp.ne.s32.totalorder %v464, 0
        %vm509 = vcmp.ne.s32.totalorder %v471, 0
        %vm510 = vcmp.ne.s32.totalorder %v478, 0
        %vm511 = vcmp.lt.s32.totalorder %v261, 0
        %vm512 = vcmp.lt.s32.totalorder %v268, 0
        %vm513 = vcmp.lt.s32.totalorder %v275, 0
        %vm514 = vcmp.lt.s32.totalorder %v282, 0
        %vm515 = vcmp.lt.s32.totalorder %v289, 0
        %vm516 = vcmp.lt.s32.totalorder %v296, 0
        %vm517 = vcmp.lt.s32.totalorder %v303, 0
        %vm518 = vcmp.lt.s32.totalorder %v310, 0
        %vm519 = vcmp.lt.s32.totalorder %v317, 0
        %vm520 = vcmp.lt.s32.totalorder %v324, 0
        %vm521 = vcmp.lt.s32.totalorder %v331, 0
        %vm522 = vcmp.lt.s32.totalorder %v338, 0
        %vm523 = vcmp.lt.s32.totalorder %v345, 0
        %vm524 = vcmp.lt.s32.totalorder %v352, 0
        %vm525 = vcmp.lt.s32.totalorder %v359, 0
        %vm526 = vcmp.lt.s32.totalorder %v366, 0
        %vm527 = vcmp.lt.s32.totalorder %v373, 0
        %vm528 = vcmp.lt.s32.totalorder %v380, 0
        %vm529 = vcmp.lt.s32.totalorder %v387, 0
        %vm530 = vcmp.lt.s32.totalorder %v394, 0
        %vm531 = vcmp.lt.s32.totalorder %v401, 0
        %vm532 = vcmp.lt.s32.totalorder %v408, 0
        %vm533 = vcmp.lt.s32.totalorder %v415, 0
        %vm534 = vcmp.lt.s32.totalorder %v422, 0
        %vm535 = vcmp.lt.s32.totalorder %v429, 0
        %vm536 = vcmp.lt.s32.totalorder %v436, 0
        %vm537 = vcmp.lt.s32.totalorder %v443, 0
        %vm538 = vcmp.lt.s32.totalorder %v450, 0
        %vm539 = vcmp.lt.s32.totalorder %v457, 0
        %vm540 = vcmp.lt.s32.totalorder %v464, 0
        %vm541 = vcmp.lt.s32.totalorder %v471, 0
        %vm542 = vcmp.lt.s32.totalorder %v478, 0
        %vm543 = vmand %vm511, %vm479
        %vm544 = vmand %vm512, %vm480
        %vm545 = vmand %vm513, %vm481
        %vm546 = vmand %vm514, %vm482
        %vm547 = vmand %vm515, %vm483
        %vm548 = vmand %vm516, %vm484
        %vm549 = vmand %vm517, %vm485
        %vm550 = vmand %vm518, %vm486
        %vm551 = vmand %vm519, %vm487
        %vm552 = vmand %vm520, %vm488
        %vm553 = vmand %vm521, %vm489
        %vm554 = vmand %vm522, %vm490
        %vm555 = vmand %vm523, %vm491
        %vm556 = vmand %vm524, %vm492
        %vm557 = vmand %vm525, %vm493
        %vm558 = vmand %vm526, %vm494
        %vm559 = vmand %vm527, %vm495
        %vm560 = vmand %vm528, %vm496
        %vm561 = vmand %vm529, %vm497
        %vm562 = vmand %vm530, %vm498
        %vm563 = vmand %vm531, %vm499
        %vm564 = vmand %vm532, %vm500
        %vm565 = vmand %vm533, %vm501
        %vm566 = vmand %vm534, %vm502
        %vm567 = vmand %vm535, %vm503
        %vm568 = vmand %vm536, %vm504
        %vm569 = vmand %vm537, %vm505
        %vm570 = vmand %vm538, %vm506
        %vm571 = vmand %vm539, %vm507
        %vm572 = vmand %vm540, %vm508
        %vm573 = vmand %vm541, %vm509
        %vm574 = vmand %vm542, %vm510
        %v575 = vadd.s32 %v261, 16
        %v576 = vadd.s32 %v268, 16
        %v577 = vadd.s32 %v275, 16
        %v578 = vadd.s32 %v282, 16
        %v579 = vadd.s32 %v289, 16
        %v580 = vadd.s32 %v296, 16
        %v581 = vadd.s32 %v303, 16
        %v582 = vadd.s32 %v310, 16
        %v583 = vadd.s32 %v317, 16
        %v584 = vadd.s32 %v324, 16
        %v585 = vadd.s32 %v331, 16
        %v586 = vadd.s32 %v338, 16
        %v587 = vadd.s32 %v345, 16
        %v588 = vadd.s32 %v352, 16
        %v589 = vadd.s32 %v359, 16
        %v590 = vadd.s32 %v366, 16
        %v591 = vadd.s32 %v373, 16
        %v592 = vadd.s32 %v380, 16
        %v593 = vadd.s32 %v387, 16
        %v594 = vadd.s32 %v394, 16
        %v595 = vadd.s32 %v401, 16
        %v596 = vadd.s32 %v408, 16
        %v597 = vadd.s32 %v415, 16
        %v598 = vadd.s32 %v422, 16
        %v599 = vadd.s32 %v429, 16
        %v600 = vadd.s32 %v436, 16
        %v601 = vadd.s32 %v443, 16
        %v602 = vadd.s32 %v450, 16
        %v603 = vadd.s32 %v457, 16
        %v604 = vadd.s32 %v464, 16
        %v605 = vadd.s32 %v471, 16
        %v606 = vadd.s32 %v478, 16
        %v607 = vsel %vm543, %v575, %v261
        %v608 = vsel %vm544, %v576, %v268
        %v609 = vsel %vm545, %v577, %v275
        %v610 = vsel %vm546, %v578, %v282
        %v611 = vsel %vm547, %v579, %v289
        %v612 = vsel %vm548, %v580, %v296
        %v613 = vsel %vm549, %v581, %v303
        %v614 = vsel %vm550, %v582, %v310
        %v615 = vsel %vm551, %v583, %v317
        %v616 = vsel %vm552, %v584, %v324
        %v617 = vsel %vm553, %v585, %v331
        %v618 = vsel %vm554, %v586, %v338
        %v619 = vsel %vm555, %v587, %v345
        %v620 = vsel %vm556, %v588, %v352
        %v621 = vsel %vm557, %v589, %v359
        %v622 = vsel %vm558, %v590, %v366
        %v623 = vsel %vm559, %v591, %v373
        %v624 = vsel %vm560, %v592, %v380
        %v625 = vsel %vm561, %v593, %v387
        %v626 = vsel %vm562, %v594, %v394
        %v627 = vsel %vm563, %v595, %v401
        %v628 = vsel %vm564, %v596, %v408
        %v629 = vsel %vm565, %v597, %v415
        %v630 = vsel %vm566, %v598, %v422
        %v631 = vsel %vm567, %v599, %v429
        %v632 = vsel %vm568, %v600, %v436
        %v633 = vsel %vm569, %v601, %v443
        %v634 = vsel %vm570, %v602, %v450
        %v635 = vsel %vm571, %v603, %v457
        %v636 = vsel %vm572, %v604, %v464
        %v637 = vsel %vm573, %v605, %v471
        %v638 = vsel %vm574, %v606, %v478
        %vm639 = vcmp.ne.s32.totalorder %v607, 0
        %vm640 = vcmp.ne.s32.totalorder %v608, 0
        %vm641 = vcmp.ne.s32.totalorder %v609, 0
        %vm642 = vcmp.ne.s32.totalorder %v610, 0
        %vm643 = vcmp.ne.s32.totalorder %v611, 0
        %vm644 = vcmp.ne.s32.totalorder %v612, 0
        %vm645 = vcmp.ne.s32.totalorder %v613, 0
        %vm646 = vcmp.ne.s32.totalorder %v614, 0
        %vm647 = vcmp.ne.s32.totalorder %v615, 0
        %vm648 = vcmp.ne.s32.totalorder %v616, 0
        %vm649 = vcmp.ne.s32.totalorder %v617, 0
        %vm650 = vcmp.ne.s32.totalorder %v618, 0
        %vm651 = vcmp.ne.s32.totalorder %v619, 0
        %vm652 = vcmp.ne.s32.totalorder %v620, 0
        %vm653 = vcmp.ne.s32.totalorder %v621, 0
        %vm654 = vcmp.ne.s32.totalorder %v622, 0
        %vm655 = vcmp.ne.s32.totalorder %v623, 0
        %vm656 = vcmp.ne.s32.totalorder %v624, 0
        %vm657 = vcmp.ne.s32.totalorder %v625, 0
        %vm658 = vcmp.ne.s32.totalorder %v626, 0
        %vm659 = vcmp.ne.s32.totalorder %v627, 0
        %vm660 = vcmp.ne.s32.totalorder %v628, 0
        %vm661 = vcmp.ne.s32.totalorder %v629, 0
        %vm662 = vcmp.ne.s32.totalorder %v630, 0
        %vm663 = vcmp.ne.s32.totalorder %v631, 0
        %vm664 = vcmp.ne.s32.totalorder %v632, 0
        %vm665 = vcmp.ne.s32.totalorder %v633, 0
        %vm666 = vcmp.ne.s32.totalorder %v634, 0
        %vm667 = vcmp.ne.s32.totalorder %v635, 0
        %vm668 = vcmp.ne.s32.totalorder %v636, 0
        %vm669 = vcmp.ne.s32.totalorder %v637, 0
        %vm670 = vcmp.ne.s32.totalorder %v638, 0
        %vm671 = vcmp.ne.s32.totalorder %v607, 15
        %vm672 = vcmp.ne.s32.totalorder %v608, 15
        %vm673 = vcmp.ne.s32.totalorder %v609, 15
        %vm674 = vcmp.ne.s32.totalorder %v610, 15
        %vm675 = vcmp.ne.s32.totalorder %v611, 15
        %vm676 = vcmp.ne.s32.totalorder %v612, 15
        %vm677 = vcmp.ne.s32.totalorder %v613, 15
        %vm678 = vcmp.ne.s32.totalorder %v614, 15
        %vm679 = vcmp.ne.s32.totalorder %v615, 15
        %vm680 = vcmp.ne.s32.totalorder %v616, 15
        %vm681 = vcmp.ne.s32.totalorder %v617, 15
        %vm682 = vcmp.ne.s32.totalorder %v618, 15
        %vm683 = vcmp.ne.s32.totalorder %v619, 15
        %vm684 = vcmp.ne.s32.totalorder %v620, 15
        %vm685 = vcmp.ne.s32.totalorder %v621, 15
        %vm686 = vcmp.ne.s32.totalorder %v622, 15
        %vm687 = vcmp.ne.s32.totalorder %v623, 15
        %vm688 = vcmp.ne.s32.totalorder %v624, 15
        %vm689 = vcmp.ne.s32.totalorder %v625, 15
        %vm690 = vcmp.ne.s32.totalorder %v626, 15
        %vm691 = vcmp.ne.s32.totalorder %v627, 15
        %vm692 = vcmp.ne.s32.totalorder %v628, 15
        %vm693 = vcmp.ne.s32.totalorder %v629, 15
        %vm694 = vcmp.ne.s32.totalorder %v630, 15
        %vm695 = vcmp.ne.s32.totalorder %v631, 15
        %vm696 = vcmp.ne.s32.totalorder %v632, 15
        %vm697 = vcmp.ne.s32.totalorder %v633, 15
        %vm698 = vcmp.ne.s32.totalorder %v634, 15
        %vm699 = vcmp.ne.s32.totalorder %v635, 15
        %vm700 = vcmp.ne.s32.totalorder %v636, 15
        %vm701 = vcmp.ne.s32.totalorder %v637, 15
        %vm702 = vcmp.ne.s32.totalorder %v638, 15
        %v703 = vld [vmem:[%s221] sm:$0xff]
        %v704 = vld [vmem:[%s221 + $0x8] sm:$0xff]
        %v705 = vld [vmem:[%s221 + $0x10] sm:$0xff]
        %v706 = vld [vmem:[%s221 + $0x18] sm:$0xff]
        %v707 = vld [vmem:[%s221 + $0x20] sm:$0xff]
        %v708 = vld [vmem:[%s221 + $0x28] sm:$0xff]
        %v709 = vld [vmem:[%s221 + $0x30] sm:$0xff]
        %v710 = vld [vmem:[%s221 + $0x38] sm:$0xff]
        %v711 = vld [vmem:[%s221 + $0x40] sm:$0xff]
        %v712 = vld [vmem:[%s221 + $0x48] sm:$0xff]
        %v713 = vld [vmem:[%s221 + $0x50] sm:$0xff]
        %v714 = vld [vmem:[%s221 + $0x58] sm:$0xff]
        %v715 = vld [vmem:[%s221 + $0x60] sm:$0xff]
        %v716 = vld [vmem:[%s221 + $0x68] sm:$0xff]
        %v717 = vld [vmem:[%s221 + $0x70] sm:$0xff]
        %v718 = vld [vmem:[%s221 + $0x78] sm:$0xff]
        %v719 = vld [vmem:[%s221 + $0x80] sm:$0xff]
        %v720 = vld [vmem:[%s221 + $0x88] sm:$0xff]
        %v721 = vld [vmem:[%s221 + $0x90] sm:$0xff]
        %v722 = vld [vmem:[%s221 + $0x98] sm:$0xff]
        %v723 = vld [vmem:[%s221 + $0xa0] sm:$0xff]
        %v724 = vld [vmem:[%s221 + $0xa8] sm:$0xff]
        %v725 = vld [vmem:[%s221 + $0xb0] sm:$0xff]
        %v726 = vld [vmem:[%s221 + $0xb8] sm:$0xff]
        %v727 = vld [vmem:[%s221 + $0xc0] sm:$0xff]
        %v728 = vld [vmem:[%s221 + $0xc8] sm:$0xff]
        %v729 = vld [vmem:[%s221 + $0xd0] sm:$0xff]
        %v730 = vld [vmem:[%s221 + $0xd8] sm:$0xff]
        %v731 = vld [vmem:[%s221 + $0xe0] sm:$0xff]
        %v732 = vld [vmem:[%s221 + $0xe8] sm:$0xff]
        %v733 = vld [vmem:[%s221 + $0xf0] sm:$0xff]
        %v734 = vld [vmem:[%s221 + $0xf8] sm:$0xff]
        %v735 = vsel %vm639, 1, 0
        %v736 = vsel %vm640, 1, 0
        %v737 = vsel %vm641, 1, 0
        %v738 = vsel %vm642, 1, 0
        %v739 = vsel %vm643, 1, 0
        %v740 = vsel %vm644, 1, 0
        %v741 = vsel %vm645, 1, 0
        %v742 = vsel %vm646, 1, 0
        %v743 = vsel %vm647, 1, 0
        %v744 = vsel %vm648, 1, 0
        %v745 = vsel %vm649, 1, 0
        %v746 = vsel %vm650, 1, 0
        %v747 = vsel %vm651, 1, 0
        %v748 = vsel %vm652, 1, 0
        %v749 = vsel %vm653, 1, 0
        %v750 = vsel %vm654, 1, 0
        %v751 = vsel %vm655, 1, 0
        %v752 = vsel %vm656, 1, 0
        %v753 = vsel %vm657, 1, 0
        %v754 = vsel %vm658, 1, 0
        %v755 = vsel %vm659, 1, 0
        %v756 = vsel %vm660, 1, 0
        %v757 = vsel %vm661, 1, 0
        %v758 = vsel %vm662, 1, 0
        %v759 = vsel %vm663, 1, 0
        %v760 = vsel %vm664, 1, 0
        %v761 = vsel %vm665, 1, 0
        %v762 = vsel %vm666, 1, 0
        %v763 = vsel %vm667, 1, 0
        %v764 = vsel %vm668, 1, 0
        %v765 = vsel %vm669, 1, 0
        %v766 = vsel %vm670, 1, 0
        %vm767 = vcmp.eq.s32.totalorder %v735, 1
        %vm768 = vcmp.eq.s32.totalorder %v736, 1
        %vm769 = vcmp.eq.s32.totalorder %v737, 1
        %vm770 = vcmp.eq.s32.totalorder %v738, 1
        %vm771 = vcmp.eq.s32.totalorder %v739, 1
        %vm772 = vcmp.eq.s32.totalorder %v740, 1
        %vm773 = vcmp.eq.s32.totalorder %v741, 1
        %vm774 = vcmp.eq.s32.totalorder %v742, 1
        %vm775 = vcmp.eq.s32.totalorder %v743, 1
        %vm776 = vcmp.eq.s32.totalorder %v744, 1
        %vm777 = vcmp.eq.s32.totalorder %v745, 1
        %vm778 = vcmp.eq.s32.totalorder %v746, 1
        %vm779 = vcmp.eq.s32.totalorder %v747, 1
        %vm780 = vcmp.eq.s32.totalorder %v748, 1
        %vm781 = vcmp.eq.s32.totalorder %v749, 1
        %vm782 = vcmp.eq.s32.totalorder %v750, 1
        %vm783 = vcmp.eq.s32.totalorder %v751, 1
        %vm784 = vcmp.eq.s32.totalorder %v752, 1
        %vm785 = vcmp.eq.s32.totalorder %v753, 1
        %vm786 = vcmp.eq.s32.totalorder %v754, 1
        %vm787 = vcmp.eq.s32.totalorder %v755, 1
        %vm788 = vcmp.eq.s32.totalorder %v756, 1
        %vm789 = vcmp.eq.s32.totalorder %v757, 1
        %vm790 = vcmp.eq.s32.totalorder %v758, 1
        %vm791 = vcmp.eq.s32.totalorder %v759, 1
        %vm792 = vcmp.eq.s32.totalorder %v760, 1
        %vm793 = vcmp.eq.s32.totalorder %v761, 1
        %vm794 = vcmp.eq.s32.totalorder %v762, 1
        %vm795 = vcmp.eq.s32.totalorder %v763, 1
        %vm796 = vcmp.eq.s32.totalorder %v764, 1
        %vm797 = vcmp.eq.s32.totalorder %v765, 1
        %vm798 = vcmp.eq.s32.totalorder %v766, 1
        %v799 = vsel %vm767, %v703, 0.0
        %v800 = vsel %vm768, %v704, 0.0
        %v801 = vsel %vm769, %v705, 0.0
        %v802 = vsel %vm770, %v706, 0.0
        %v803 = vsel %vm771, %v707, 0.0
        %v804 = vsel %vm772, %v708, 0.0
        %v805 = vsel %vm773, %v709, 0.0
        %v806 = vsel %vm774, %v710, 0.0
        %v807 = vsel %vm775, %v711, 0.0
        %v808 = vsel %vm776, %v712, 0.0
        %v809 = vsel %vm777, %v713, 0.0
        %v810 = vsel %vm778, %v714, 0.0
        %v811 = vsel %vm779, %v715, 0.0
        %v812 = vsel %vm780, %v716, 0.0
        %v813 = vsel %vm781, %v717, 0.0
        %v814 = vsel %vm782, %v718, 0.0
        %v815 = vsel %vm783, %v719, 0.0
        %v816 = vsel %vm784, %v720, 0.0
        %v817 = vsel %vm785, %v721, 0.0
        %v818 = vsel %vm786, %v722, 0.0
        %v819 = vsel %vm787, %v723, 0.0
        %v820 = vsel %vm788, %v724, 0.0
        %v821 = vsel %vm789, %v725, 0.0
        %v822 = vsel %vm790, %v726, 0.0
        %v823 = vsel %vm791, %v727, 0.0
        %v824 = vsel %vm792, %v728, 0.0
        %v825 = vsel %vm793, %v729, 0.0
        %v826 = vsel %vm794, %v730, 0.0
        %v827 = vsel %vm795, %v731, 0.0
        %v828 = vsel %vm796, %v732, 0.0
        %v829 = vsel %vm797, %v733, 0.0
        %v830 = vsel %vm798, %v734, 0.0
        %v831 = vld [vmem:[%s1] sm:$0xf]
        %v832 = vld [vmem:[%s221 + $0x1] sm:$0xff]
        %v833 = vld [vmem:[%s221 + $0x9] sm:$0xff]
        %v834 = vld [vmem:[%s221 + $0x11] sm:$0xff]
        %v835 = vld [vmem:[%s221 + $0x19] sm:$0xff]
        %v836 = vld [vmem:[%s221 + $0x21] sm:$0xff]
        %v837 = vld [vmem:[%s221 + $0x29] sm:$0xff]
        %v838 = vld [vmem:[%s221 + $0x31] sm:$0xff]
        %v839 = vld [vmem:[%s221 + $0x39] sm:$0xff]
        %v840 = vld [vmem:[%s221 + $0x41] sm:$0xff]
        %v841 = vld [vmem:[%s221 + $0x49] sm:$0xff]
        %v842 = vld [vmem:[%s221 + $0x51] sm:$0xff]
        %v843 = vld [vmem:[%s221 + $0x59] sm:$0xff]
        %v844 = vld [vmem:[%s221 + $0x61] sm:$0xff]
        %v845 = vld [vmem:[%s221 + $0x69] sm:$0xff]
        %v846 = vld [vmem:[%s221 + $0x71] sm:$0xff]
        %v847 = vld [vmem:[%s221 + $0x79] sm:$0xff]
        %v848 = vld [vmem:[%s221 + $0x81] sm:$0xff]
        %v849 = vld [vmem:[%s221 + $0x89] sm:$0xff]
        %v850 = vld [vmem:[%s221 + $0x91] sm:$0xff]
        %v851 = vld [vmem:[%s221 + $0x99] sm:$0xff]
        %v852 = vld [vmem:[%s221 + $0xa1] sm:$0xff]
        %v853 = vld [vmem:[%s221 + $0xa9] sm:$0xff]
        %v854 = vld [vmem:[%s221 + $0xb1] sm:$0xff]
        %v855 = vld [vmem:[%s221 + $0xb9] sm:$0xff]
        %v856 = vld [vmem:[%s221 + $0xc1] sm:$0xff]
        %v857 = vld [vmem:[%s221 + $0xc9] sm:$0xff]
        %v858 = vld [vmem:[%s221 + $0xd1] sm:$0xff]
        %v859 = vld [vmem:[%s221 + $0xd9] sm:$0xff]
        %v860 = vld [vmem:[%s221 + $0xe1] sm:$0xff]
        %v861 = vld [vmem:[%s221 + $0xe9] sm:$0xff]
        %v862 = vld [vmem:[%s221 + $0xf1] sm:$0xff]
        %v863 = vld [vmem:[%s221 + $0xf9] sm:$0xff]
        %s864 = scalar_lea.vmem %s1, 4
        %v865 = vld [vmem:[%s864] sm:$0xf]
        %vm866 = vcmask 31744
        %v868 = vsel %vm866, %v832, 0
        %v871 = vsel %vm866, %v833, 0
        %v874 = vsel %vm866, %v834, 0
        %v877 = vsel %vm866, %v835, 0
        %v880 = vsel %vm866, %v836, 0
        %v883 = vsel %vm866, %v837, 0
        %v886 = vsel %vm866, %v838, 0
        %v889 = vsel %vm866, %v839, 0
        %v892 = vsel %vm866, %v840, 0
        %v895 = vsel %vm866, %v841, 0
        %v898 = vsel %vm866, %v842, 0
        %v901 = vsel %vm866, %v843, 0
        %v904 = vsel %vm866, %v844, 0
        %v907 = vsel %vm866, %v845, 0
        %v910 = vsel %vm866, %v846, 0
        %v913 = vsel %vm866, %v847, 0
        %v916 = vsel %vm866, %v848, 0
        %v919 = vsel %vm866, %v849, 0
        %v922 = vsel %vm866, %v850, 0
        %v925 = vsel %vm866, %v851, 0
        %v928 = vsel %vm866, %v852, 0
        %v931 = vsel %vm866, %v853, 0
        %v934 = vsel %vm866, %v854, 0
        %v937 = vsel %vm866, %v855, 0
        %v940 = vsel %vm866, %v856, 0
        %v943 = vsel %vm866, %v857, 0
        %v946 = vsel %vm866, %v858, 0
        %v949 = vsel %vm866, %v859, 0
        %v952 = vsel %vm866, %v860, 0
        %v955 = vsel %vm866, %v861, 0
        %v958 = vsel %vm866, %v862, 0
        %v961 = vsel %vm866, %v863, 0
        %vm963 = vcmask 1043456
        %v965 = vsel %vm963, %v865, 0
        %967 = vmatpush.msra.mxu0 0.0
        %968 = vmatpush.msra.mxu0 0.0
        %969 = vmatpush.msra.mxu0 0.0
        %970 = vmatpush.msra.mxu0 0.0
        %971 = vmatpush.msra.mxu0 0.0
        %972 = vmatpush.msra.mxu0 0.0
        %973 = vmatpush.msra.mxu0 0.0
        %974 = vmatpush.msra.mxu0 0.0
        %975 = vmatpush.msra.mxu0 0.0
        %976 = vmatpush.msra.mxu0 0.0
        %977 = vmatpush.msra.mxu0 0.0
        %978 = vmatpush.msra.mxu0 0.0
        %979 = vmatpush.msra.mxu0 0.0
        %980 = vmatpush.msra.mxu0 0.0
        %981 = vmatpush.msra.mxu0 0.0
        %982 = vmatpush.msra.mxu0 %v965
        %983 = vmatmul.f32.gmra.mxu0 %v868
        %v984 = vpop.f32.mrf.mxu0
        %v985 = vadd.f32 0.0, %v984
        %986 = vmatmul.f32.gmra.mxu0 %v871
        %v987 = vpop.f32.mrf.mxu0
        %v988 = vadd.f32 0.0, %v987
        %989 = vmatmul.f32.gmra.mxu0 %v874
        %v990 = vpop.f32.mrf.mxu0
        %v991 = vadd.f32 0.0, %v990
        %992 = vmatmul.f32.gmra.mxu0 %v877
        %v993 = vpop.f32.mrf.mxu0
        %v994 = vadd.f32 0.0, %v993
        %995 = vmatmul.f32.gmra.mxu0 %v880
        %v996 = vpop.f32.mrf.mxu0
        %v997 = vadd.f32 0.0, %v996
        %998 = vmatmul.f32.gmra.mxu0 %v883
        %v999 = vpop.f32.mrf.mxu0
        %v1000 = vadd.f32 0.0, %v999
        %1001 = vmatmul.f32.gmra.mxu0 %v886
        %v1002 = vpop.f32.mrf.mxu0
        %v1003 = vadd.f32 0.0, %v1002
        %1004 = vmatmul.f32.gmra.mxu0 %v889
        %v1005 = vpop.f32.mrf.mxu0
        %v1006 = vadd.f32 0.0, %v1005
        %1007 = vmatmul.f32.gmra.mxu0 %v892
        %v1008 = vpop.f32.mrf.mxu0
        %v1009 = vadd.f32 0.0, %v1008
        %1010 = vmatmul.f32.gmra.mxu0 %v895
        %v1011 = vpop.f32.mrf.mxu0
        %v1012 = vadd.f32 0.0, %v1011
        %1013 = vmatmul.f32.gmra.mxu0 %v898
        %v1014 = vpop.f32.mrf.mxu0
        %v1015 = vadd.f32 0.0, %v1014
        %1016 = vmatmul.f32.gmra.mxu0 %v901
        %v1017 = vpop.f32.mrf.mxu0
        %v1018 = vadd.f32 0.0, %v1017
        %1019 = vmatmul.f32.gmra.mxu0 %v904
        %v1020 = vpop.f32.mrf.mxu0
        %v1021 = vadd.f32 0.0, %v1020
        %1022 = vmatmul.f32.gmra.mxu0 %v907
        %v1023 = vpop.f32.mrf.mxu0
        %v1024 = vadd.f32 0.0, %v1023
        %1025 = vmatmul.f32.gmra.mxu0 %v910
        %v1026 = vpop.f32.mrf.mxu0
        %v1027 = vadd.f32 0.0, %v1026
        %1028 = vmatmul.f32.gmra.mxu0 %v913
        %v1029 = vpop.f32.mrf.mxu0
        %v1030 = vadd.f32 0.0, %v1029
        %1031 = vmatmul.f32.gmra.mxu0 %v916
        %v1032 = vpop.f32.mrf.mxu0
        %v1033 = vadd.f32 0.0, %v1032
        %1034 = vmatmul.f32.gmra.mxu0 %v919
        %v1035 = vpop.f32.mrf.mxu0
        %v1036 = vadd.f32 0.0, %v1035
        %1037 = vmatmul.f32.gmra.mxu0 %v922
        %v1038 = vpop.f32.mrf.mxu0
        %v1039 = vadd.f32 0.0, %v1038
        %1040 = vmatmul.f32.gmra.mxu0 %v925
        %v1041 = vpop.f32.mrf.mxu0
        %v1042 = vadd.f32 0.0, %v1041
        %1043 = vmatmul.f32.gmra.mxu0 %v928
        %v1044 = vpop.f32.mrf.mxu0
        %v1045 = vadd.f32 0.0, %v1044
        %1046 = vmatmul.f32.gmra.mxu0 %v931
        %v1047 = vpop.f32.mrf.mxu0
        %v1048 = vadd.f32 0.0, %v1047
        %1049 = vmatmul.f32.gmra.mxu0 %v934
        %v1050 = vpop.f32.mrf.mxu0
        %v1051 = vadd.f32 0.0, %v1050
        %1052 = vmatmul.f32.gmra.mxu0 %v937
        %v1053 = vpop.f32.mrf.mxu0
        %v1054 = vadd.f32 0.0, %v1053
        %1055 = vmatmul.f32.gmra.mxu0 %v940
        %v1056 = vpop.f32.mrf.mxu0
        %v1057 = vadd.f32 0.0, %v1056
        %1058 = vmatmul.f32.gmra.mxu0 %v943
        %v1059 = vpop.f32.mrf.mxu0
        %v1060 = vadd.f32 0.0, %v1059
        %1061 = vmatmul.f32.gmra.mxu0 %v946
        %v1062 = vpop.f32.mrf.mxu0
        %v1063 = vadd.f32 0.0, %v1062
        %1064 = vmatmul.f32.gmra.mxu0 %v949
        %v1065 = vpop.f32.mrf.mxu0
        %v1066 = vadd.f32 0.0, %v1065
        %1067 = vmatmul.f32.gmra.mxu0 %v952
        %v1068 = vpop.f32.mrf.mxu0
        %v1069 = vadd.f32 0.0, %v1068
        %1070 = vmatmul.f32.gmra.mxu0 %v955
        %v1071 = vpop.f32.mrf.mxu0
        %v1072 = vadd.f32 0.0, %v1071
        %1073 = vmatmul.f32.gmra.mxu0 %v958
        %v1074 = vpop.f32.mrf.mxu0
        %v1075 = vadd.f32 0.0, %v1074
        %1076 = vmatmul.f32.gmra.mxu0 %v961
        %v1077 = vpop.f32.mrf.mxu0
        %v1078 = vadd.f32 0.0, %v1077
        %1079 = vdwg.mxu0
        %v1081 = vsel %vm866, %v799, 0
        %v1084 = vsel %vm866, %v800, 0
        %v1087 = vsel %vm866, %v801, 0
        %v1090 = vsel %vm866, %v802, 0
        %v1093 = vsel %vm866, %v803, 0
        %v1096 = vsel %vm866, %v804, 0
        %v1099 = vsel %vm866, %v805, 0
        %v1102 = vsel %vm866, %v806, 0
        %v1105 = vsel %vm866, %v807, 0
        %v1108 = vsel %vm866, %v808, 0
        %v1111 = vsel %vm866, %v809, 0
        %v1114 = vsel %vm866, %v810, 0
        %v1117 = vsel %vm866, %v811, 0
        %v1120 = vsel %vm866, %v812, 0
        %v1123 = vsel %vm866, %v813, 0
        %v1126 = vsel %vm866, %v814, 0
        %v1129 = vsel %vm866, %v815, 0
        %v1132 = vsel %vm866, %v816, 0
        %v1135 = vsel %vm866, %v817, 0
        %v1138 = vsel %vm866, %v818, 0
        %v1141 = vsel %vm866, %v819, 0
        %v1144 = vsel %vm866, %v820, 0
        %v1147 = vsel %vm866, %v821, 0
        %v1150 = vsel %vm866, %v822, 0
        %v1153 = vsel %vm866, %v823, 0
        %v1156 = vsel %vm866, %v824, 0
        %v1159 = vsel %vm866, %v825, 0
        %v1162 = vsel %vm866, %v826, 0
        %v1165 = vsel %vm866, %v827, 0
        %v1168 = vsel %vm866, %v828, 0
        %v1171 = vsel %vm866, %v829, 0
        %v1174 = vsel %vm866, %v830, 0
        %v1177 = vsel %vm963, %v831, 0
        %1179 = vmatpush.msra.mxu0 0.0
        %1180 = vmatpush.msra.mxu0 0.0
        %1181 = vmatpush.msra.mxu0 0.0
        %1182 = vmatpush.msra.mxu0 0.0
        %1183 = vmatpush.msra.mxu0 0.0
        %1184 = vmatpush.msra.mxu0 0.0
        %1185 = vmatpush.msra.mxu0 0.0
        %1186 = vmatpush.msra.mxu0 0.0
        %1187 = vmatpush.msra.mxu0 0.0
        %1188 = vmatpush.msra.mxu0 0.0
        %1189 = vmatpush.msra.mxu0 0.0
        %1190 = vmatpush.msra.mxu0 0.0
        %1191 = vmatpush.msra.mxu0 0.0
        %1192 = vmatpush.msra.mxu0 0.0
        %1193 = vmatpush.msra.mxu0 0.0
        %1194 = vmatpush.msra.mxu0 %v1177
        %1195 = vmatmul.f32.gmra.mxu0 %v1081
        %v1196 = vpop.f32.mrf.mxu0
        %v1197 = vadd.f32 %v985, %v1196
        %1198 = vmatmul.f32.gmra.mxu0 %v1084
        %v1199 = vpop.f32.mrf.mxu0
        %v1200 = vadd.f32 %v988, %v1199
        %1201 = vmatmul.f32.gmra.mxu0 %v1087
        %v1202 = vpop.f32.mrf.mxu0
        %v1203 = vadd.f32 %v991, %v1202
        %1204 = vmatmul.f32.gmra.mxu0 %v1090
        %v1205 = vpop.f32.mrf.mxu0
        %v1206 = vadd.f32 %v994, %v1205
        %1207 = vmatmul.f32.gmra.mxu0 %v1093
        %v1208 = vpop.f32.mrf.mxu0
        %v1209 = vadd.f32 %v997, %v1208
        %1210 = vmatmul.f32.gmra.mxu0 %v1096
        %v1211 = vpop.f32.mrf.mxu0
        %v1212 = vadd.f32 %v1000, %v1211
        %1213 = vmatmul.f32.gmra.mxu0 %v1099
        %v1214 = vpop.f32.mrf.mxu0
        %v1215 = vadd.f32 %v1003, %v1214
        %1216 = vmatmul.f32.gmra.mxu0 %v1102
        %v1217 = vpop.f32.mrf.mxu0
        %v1218 = vadd.f32 %v1006, %v1217
        %1219 = vmatmul.f32.gmra.mxu0 %v1105
        %v1220 = vpop.f32.mrf.mxu0
        %v1221 = vadd.f32 %v1009, %v1220
        %1222 = vmatmul.f32.gmra.mxu0 %v1108
        %v1223 = vpop.f32.mrf.mxu0
        %v1224 = vadd.f32 %v1012, %v1223
        %1225 = vmatmul.f32.gmra.mxu0 %v1111
        %v1226 = vpop.f32.mrf.mxu0
        %v1227 = vadd.f32 %v1015, %v1226
        %1228 = vmatmul.f32.gmra.mxu0 %v1114
        %v1229 = vpop.f32.mrf.mxu0
        %v1230 = vadd.f32 %v1018, %v1229
        %1231 = vmatmul.f32.gmra.mxu0 %v1117
        %v1232 = vpop.f32.mrf.mxu0
        %v1233 = vadd.f32 %v1021, %v1232
        %1234 = vmatmul.f32.gmra.mxu0 %v1120
        %v1235 = vpop.f32.mrf.mxu0
        %v1236 = vadd.f32 %v1024, %v1235
        %1237 = vmatmul.f32.gmra.mxu0 %v1123
        %v1238 = vpop.f32.mrf.mxu0
        %v1239 = vadd.f32 %v1027, %v1238
        %1240 = vmatmul.f32.gmra.mxu0 %v1126
        %v1241 = vpop.f32.mrf.mxu0
        %v1242 = vadd.f32 %v1030, %v1241
        %1243 = vmatmul.f32.gmra.mxu0 %v1129
        %v1244 = vpop.f32.mrf.mxu0
        %v1245 = vadd.f32 %v1033, %v1244
        %1246 = vmatmul.f32.gmra.mxu0 %v1132
        %v1247 = vpop.f32.mrf.mxu0
        %v1248 = vadd.f32 %v1036, %v1247
        %1249 = vmatmul.f32.gmra.mxu0 %v1135
        %v1250 = vpop.f32.mrf.mxu0
        %v1251 = vadd.f32 %v1039, %v1250
        %1252 = vmatmul.f32.gmra.mxu0 %v1138
        %v1253 = vpop.f32.mrf.mxu0
        %v1254 = vadd.f32 %v1042, %v1253
        %1255 = vmatmul.f32.gmra.mxu0 %v1141
        %v1256 = vpop.f32.mrf.mxu0
        %v1257 = vadd.f32 %v1045, %v1256
        %1258 = vmatmul.f32.gmra.mxu0 %v1144
        %v1259 = vpop.f32.mrf.mxu0
        %v1260 = vadd.f32 %v1048, %v1259
        %1261 = vmatmul.f32.gmra.mxu0 %v1147
        %v1262 = vpop.f32.mrf.mxu0
        %v1263 = vadd.f32 %v1051, %v1262
        %1264 = vmatmul.f32.gmra.mxu0 %v1150
        %v1265 = vpop.f32.mrf.mxu0
        %v1266 = vadd.f32 %v1054, %v1265
        %1267 = vmatmul.f32.gmra.mxu0 %v1153
        %v1268 = vpop.f32.mrf.mxu0
        %v1269 = vadd.f32 %v1057, %v1268
        %1270 = vmatmul.f32.gmra.mxu0 %v1156
        %v1271 = vpop.f32.mrf.mxu0
        %v1272 = vadd.f32 %v1060, %v1271
        %1273 = vmatmul.f32.gmra.mxu0 %v1159
        %v1274 = vpop.f32.mrf.mxu0
        %v1275 = vadd.f32 %v1063, %v1274
        %1276 = vmatmul.f32.gmra.mxu0 %v1162
        %v1277 = vpop.f32.mrf.mxu0
        %v1278 = vadd.f32 %v1066, %v1277
        %1279 = vmatmul.f32.gmra.mxu0 %v1165
        %v1280 = vpop.f32.mrf.mxu0
        %v1281 = vadd.f32 %v1069, %v1280
        %1282 = vmatmul.f32.gmra.mxu0 %v1168
        %v1283 = vpop.f32.mrf.mxu0
        %v1284 = vadd.f32 %v1072, %v1283
        %1285 = vmatmul.f32.gmra.mxu0 %v1171
        %v1286 = vpop.f32.mrf.mxu0
        %v1287 = vadd.f32 %v1075, %v1286
        %1288 = vmatmul.f32.gmra.mxu0 %v1174
        %v1289 = vpop.f32.mrf.mxu0
        %v1290 = vadd.f32 %v1078, %v1289
        %1291 = vdwg.mxu0
        %v1292 = vld [vmem:[%s221 + $0x2] sm:$0xff]
        %v1293 = vld [vmem:[%s221 + $0xa] sm:$0xff]
        %v1294 = vld [vmem:[%s221 + $0x12] sm:$0xff]
        %v1295 = vld [vmem:[%s221 + $0x1a] sm:$0xff]
        %v1296 = vld [vmem:[%s221 + $0x22] sm:$0xff]
        %v1297 = vld [vmem:[%s221 + $0x2a] sm:$0xff]
        %v1298 = vld [vmem:[%s221 + $0x32] sm:$0xff]
        %v1299 = vld [vmem:[%s221 + $0x3a] sm:$0xff]
        %v1300 = vld [vmem:[%s221 + $0x42] sm:$0xff]
        %v1301 = vld [vmem:[%s221 + $0x4a] sm:$0xff]
        %v1302 = vld [vmem:[%s221 + $0x52] sm:$0xff]
        %v1303 = vld [vmem:[%s221 + $0x5a] sm:$0xff]
        %v1304 = vld [vmem:[%s221 + $0x62] sm:$0xff]
        %v1305 = vld [vmem:[%s221 + $0x6a] sm:$0xff]
        %v1306 = vld [vmem:[%s221 + $0x72] sm:$0xff]
        %v1307 = vld [vmem:[%s221 + $0x7a] sm:$0xff]
        %v1308 = vld [vmem:[%s221 + $0x82] sm:$0xff]
        %v1309 = vld [vmem:[%s221 + $0x8a] sm:$0xff]
        %v1310 = vld [vmem:[%s221 + $0x92] sm:$0xff]
        %v1311 = vld [vmem:[%s221 + $0x9a] sm:$0xff]
        %v1312 = vld [vmem:[%s221 + $0xa2] sm:$0xff]
        %v1313 = vld [vmem:[%s221 + $0xaa] sm:$0xff]
        %v1314 = vld [vmem:[%s221 + $0xb2] sm:$0xff]
        %v1315 = vld [vmem:[%s221 + $0xba] sm:$0xff]
        %v1316 = vld [vmem:[%s221 + $0xc2] sm:$0xff]
        %v1317 = vld [vmem:[%s221 + $0xca] sm:$0xff]
        %v1318 = vld [vmem:[%s221 + $0xd2] sm:$0xff]
        %v1319 = vld [vmem:[%s221 + $0xda] sm:$0xff]
        %v1320 = vld [vmem:[%s221 + $0xe2] sm:$0xff]
        %v1321 = vld [vmem:[%s221 + $0xea] sm:$0xff]
        %v1322 = vld [vmem:[%s221 + $0xf2] sm:$0xff]
        %v1323 = vld [vmem:[%s221 + $0xfa] sm:$0xff]
        %v1324 = vsel %vm671, 1, 0
        %v1325 = vsel %vm672, 1, 0
        %v1326 = vsel %vm673, 1, 0
        %v1327 = vsel %vm674, 1, 0
        %v1328 = vsel %vm675, 1, 0
        %v1329 = vsel %vm676, 1, 0
        %v1330 = vsel %vm677, 1, 0
        %v1331 = vsel %vm678, 1, 0
        %v1332 = vsel %vm679, 1, 0
        %v1333 = vsel %vm680, 1, 0
        %v1334 = vsel %vm681, 1, 0
        %v1335 = vsel %vm682, 1, 0
        %v1336 = vsel %vm683, 1, 0
        %v1337 = vsel %vm684, 1, 0
        %v1338 = vsel %vm685, 1, 0
        %v1339 = vsel %vm686, 1, 0
        %v1340 = vsel %vm687, 1, 0
        %v1341 = vsel %vm688, 1, 0
        %v1342 = vsel %vm689, 1, 0
        %v1343 = vsel %vm690, 1, 0
        %v1344 = vsel %vm691, 1, 0
        %v1345 = vsel %vm692, 1, 0
        %v1346 = vsel %vm693, 1, 0
        %v1347 = vsel %vm694, 1, 0
        %v1348 = vsel %vm695, 1, 0
        %v1349 = vsel %vm696, 1, 0
        %v1350 = vsel %vm697, 1, 0
        %v1351 = vsel %vm698, 1, 0
        %v1352 = vsel %vm699, 1, 0
        %v1353 = vsel %vm700, 1, 0
        %v1354 = vsel %vm701, 1, 0
        %v1355 = vsel %vm702, 1, 0
        %vm1356 = vcmp.eq.s32.totalorder %v1324, 1
        %vm1357 = vcmp.eq.s32.totalorder %v1325, 1
        %vm1358 = vcmp.eq.s32.totalorder %v1326, 1
        %vm1359 = vcmp.eq.s32.totalorder %v1327, 1
        %vm1360 = vcmp.eq.s32.totalorder %v1328, 1
        %vm1361 = vcmp.eq.s32.totalorder %v1329, 1
        %vm1362 = vcmp.eq.s32.totalorder %v1330, 1
        %vm1363 = vcmp.eq.s32.totalorder %v1331, 1
        %vm1364 = vcmp.eq.s32.totalorder %v1332, 1
        %vm1365 = vcmp.eq.s32.totalorder %v1333, 1
        %vm1366 = vcmp.eq.s32.totalorder %v1334, 1
        %vm1367 = vcmp.eq.s32.totalorder %v1335, 1
        %vm1368 = vcmp.eq.s32.totalorder %v1336, 1
        %vm1369 = vcmp.eq.s32.totalorder %v1337, 1
        %vm1370 = vcmp.eq.s32.totalorder %v1338, 1
        %vm1371 = vcmp.eq.s32.totalorder %v1339, 1
        %vm1372 = vcmp.eq.s32.totalorder %v1340, 1
        %vm1373 = vcmp.eq.s32.totalorder %v1341, 1
        %vm1374 = vcmp.eq.s32.totalorder %v1342, 1
        %vm1375 = vcmp.eq.s32.totalorder %v1343, 1
        %vm1376 = vcmp.eq.s32.totalorder %v1344, 1
        %vm1377 = vcmp.eq.s32.totalorder %v1345, 1
        %vm1378 = vcmp.eq.s32.totalorder %v1346, 1
        %vm1379 = vcmp.eq.s32.totalorder %v1347, 1
        %vm1380 = vcmp.eq.s32.totalorder %v1348, 1
        %vm1381 = vcmp.eq.s32.totalorder %v1349, 1
        %vm1382 = vcmp.eq.s32.totalorder %v1350, 1
        %vm1383 = vcmp.eq.s32.totalorder %v1351, 1
        %vm1384 = vcmp.eq.s32.totalorder %v1352, 1
        %vm1385 = vcmp.eq.s32.totalorder %v1353, 1
        %vm1386 = vcmp.eq.s32.totalorder %v1354, 1
        %vm1387 = vcmp.eq.s32.totalorder %v1355, 1
        %v1388 = vsel %vm1356, %v1292, 0.0
        %v1389 = vsel %vm1357, %v1293, 0.0
        %v1390 = vsel %vm1358, %v1294, 0.0
        %v1391 = vsel %vm1359, %v1295, 0.0
        %v1392 = vsel %vm1360, %v1296, 0.0
        %v1393 = vsel %vm1361, %v1297, 0.0
        %v1394 = vsel %vm1362, %v1298, 0.0
        %v1395 = vsel %vm1363, %v1299, 0.0
        %v1396 = vsel %vm1364, %v1300, 0.0
        %v1397 = vsel %vm1365, %v1301, 0.0
        %v1398 = vsel %vm1366, %v1302, 0.0
        %v1399 = vsel %vm1367, %v1303, 0.0
        %v1400 = vsel %vm1368, %v1304, 0.0
        %v1401 = vsel %vm1369, %v1305, 0.0
        %v1402 = vsel %vm1370, %v1306, 0.0
        %v1403 = vsel %vm1371, %v1307, 0.0
        %v1404 = vsel %vm1372, %v1308, 0.0
        %v1405 = vsel %vm1373, %v1309, 0.0
        %v1406 = vsel %vm1374, %v1310, 0.0
        %v1407 = vsel %vm1375, %v1311, 0.0
        %v1408 = vsel %vm1376, %v1312, 0.0
        %v1409 = vsel %vm1377, %v1313, 0.0
        %v1410 = vsel %vm1378, %v1314, 0.0
        %v1411 = vsel %vm1379, %v1315, 0.0
        %v1412 = vsel %vm1380, %v1316, 0.0
        %v1413 = vsel %vm1381, %v1317, 0.0
        %v1414 = vsel %vm1382, %v1318, 0.0
        %v1415 = vsel %vm1383, %v1319, 0.0
        %v1416 = vsel %vm1384, %v1320, 0.0
        %v1417 = vsel %vm1385, %v1321, 0.0
        %v1418 = vsel %vm1386, %v1322, 0.0
        %v1419 = vsel %vm1387, %v1323, 0.0
        %s1420 = scalar_lea.vmem %s1, 8
        %v1421 = vld [vmem:[%s1420] sm:$0xf]
        %v1423 = vsel %vm866, %v1388, 0
        %v1426 = vsel %vm866, %v1389, 0
        %v1429 = vsel %vm866, %v1390, 0
        %v1432 = vsel %vm866, %v1391, 0
        %v1435 = vsel %vm866, %v1392, 0
        %v1438 = vsel %vm866, %v1393, 0
        %v1441 = vsel %vm866, %v1394, 0
        %v1444 = vsel %vm866, %v1395, 0
        %v1447 = vsel %vm866, %v1396, 0
        %v1450 = vsel %vm866, %v1397, 0
        %v1453 = vsel %vm866, %v1398, 0
        %v1456 = vsel %vm866, %v1399, 0
        %v1459 = vsel %vm866, %v1400, 0
        %v1462 = vsel %vm866, %v1401, 0
        %v1465 = vsel %vm866, %v1402, 0
        %v1468 = vsel %vm866, %v1403, 0
        %v1471 = vsel %vm866, %v1404, 0
        %v1474 = vsel %vm866, %v1405, 0
        %v1477 = vsel %vm866, %v1406, 0
        %v1480 = vsel %vm866, %v1407, 0
        %v1483 = vsel %vm866, %v1408, 0
        %v1486 = vsel %vm866, %v1409, 0
        %v1489 = vsel %vm866, %v1410, 0
        %v1492 = vsel %vm866, %v1411, 0
        %v1495 = vsel %vm866, %v1412, 0
        %v1498 = vsel %vm866, %v1413, 0
        %v1501 = vsel %vm866, %v1414, 0
        %v1504 = vsel %vm866, %v1415, 0
        %v1507 = vsel %vm866, %v1416, 0
        %v1510 = vsel %vm866, %v1417, 0
        %v1513 = vsel %vm866, %v1418, 0
        %v1516 = vsel %vm866, %v1419, 0
        %v1519 = vsel %vm963, %v1421, 0
        %1521 = vmatpush.msra.mxu0 0.0
        %1522 = vmatpush.msra.mxu0 0.0
        %1523 = vmatpush.msra.mxu0 0.0
        %1524 = vmatpush.msra.mxu0 0.0
        %1525 = vmatpush.msra.mxu0 0.0
        %1526 = vmatpush.msra.mxu0 0.0
        %1527 = vmatpush.msra.mxu0 0.0
        %1528 = vmatpush.msra.mxu0 0.0
        %1529 = vmatpush.msra.mxu0 0.0
        %1530 = vmatpush.msra.mxu0 0.0
        %1531 = vmatpush.msra.mxu0 0.0
        %1532 = vmatpush.msra.mxu0 0.0
        %1533 = vmatpush.msra.mxu0 0.0
        %1534 = vmatpush.msra.mxu0 0.0
        %1535 = vmatpush.msra.mxu0 0.0
        %1536 = vmatpush.msra.mxu0 %v1519
        %1537 = vmatmul.f32.gmra.mxu0 %v1423
        %v1538 = vpop.f32.mrf.mxu0
        %v1539 = vadd.f32 0.0, %v1538
        %1540 = vmatmul.f32.gmra.mxu0 %v1426
        %v1541 = vpop.f32.mrf.mxu0
        %v1542 = vadd.f32 0.0, %v1541
        %1543 = vmatmul.f32.gmra.mxu0 %v1429
        %v1544 = vpop.f32.mrf.mxu0
        %v1545 = vadd.f32 0.0, %v1544
        %1546 = vmatmul.f32.gmra.mxu0 %v1432
        %v1547 = vpop.f32.mrf.mxu0
        %v1548 = vadd.f32 0.0, %v1547
        %1549 = vmatmul.f32.gmra.mxu0 %v1435
        %v1550 = vpop.f32.mrf.mxu0
        %v1551 = vadd.f32 0.0, %v1550
        %1552 = vmatmul.f32.gmra.mxu0 %v1438
        %v1553 = vpop.f32.mrf.mxu0
        %v1554 = vadd.f32 0.0, %v1553
        %1555 = vmatmul.f32.gmra.mxu0 %v1441
        %v1556 = vpop.f32.mrf.mxu0
        %v1557 = vadd.f32 0.0, %v1556
        %1558 = vmatmul.f32.gmra.mxu0 %v1444
        %v1559 = vpop.f32.mrf.mxu0
        %v1560 = vadd.f32 0.0, %v1559
        %1561 = vmatmul.f32.gmra.mxu0 %v1447
        %v1562 = vpop.f32.mrf.mxu0
        %v1563 = vadd.f32 0.0, %v1562
        %1564 = vmatmul.f32.gmra.mxu0 %v1450
        %v1565 = vpop.f32.mrf.mxu0
        %v1566 = vadd.f32 0.0, %v1565
        %1567 = vmatmul.f32.gmra.mxu0 %v1453
        %v1568 = vpop.f32.mrf.mxu0
        %v1569 = vadd.f32 0.0, %v1568
        %1570 = vmatmul.f32.gmra.mxu0 %v1456
        %v1571 = vpop.f32.mrf.mxu0
        %v1572 = vadd.f32 0.0, %v1571
        %1573 = vmatmul.f32.gmra.mxu0 %v1459
        %v1574 = vpop.f32.mrf.mxu0
        %v1575 = vadd.f32 0.0, %v1574
        %1576 = vmatmul.f32.gmra.mxu0 %v1462
        %v1577 = vpop.f32.mrf.mxu0
        %v1578 = vadd.f32 0.0, %v1577
        %1579 = vmatmul.f32.gmra.mxu0 %v1465
        %v1580 = vpop.f32.mrf.mxu0
        %v1581 = vadd.f32 0.0, %v1580
        %1582 = vmatmul.f32.gmra.mxu0 %v1468
        %v1583 = vpop.f32.mrf.mxu0
        %v1584 = vadd.f32 0.0, %v1583
        %1585 = vmatmul.f32.gmra.mxu0 %v1471
        %v1586 = vpop.f32.mrf.mxu0
        %v1587 = vadd.f32 0.0, %v1586
        %1588 = vmatmul.f32.gmra.mxu0 %v1474
        %v1589 = vpop.f32.mrf.mxu0
        %v1590 = vadd.f32 0.0, %v1589
        %1591 = vmatmul.f32.gmra.mxu0 %v1477
        %v1592 = vpop.f32.mrf.mxu0
        %v1593 = vadd.f32 0.0, %v1592
        %1594 = vmatmul.f32.gmra.mxu0 %v1480
        %v1595 = vpop.f32.mrf.mxu0
        %v1596 = vadd.f32 0.0, %v1595
        %1597 = vmatmul.f32.gmra.mxu0 %v1483
        %v1598 = vpop.f32.mrf.mxu0
        %v1599 = vadd.f32 0.0, %v1598
        %1600 = vmatmul.f32.gmra.mxu0 %v1486
        %v1601 = vpop.f32.mrf.mxu0
        %v1602 = vadd.f32 0.0, %v1601
        %1603 = vmatmul.f32.gmra.mxu0 %v1489
        %v1604 = vpop.f32.mrf.mxu0
        %v1605 = vadd.f32 0.0, %v1604
        %1606 = vmatmul.f32.gmra.mxu0 %v1492
        %v1607 = vpop.f32.mrf.mxu0
        %v1608 = vadd.f32 0.0, %v1607
        %1609 = vmatmul.f32.gmra.mxu0 %v1495
        %v1610 = vpop.f32.mrf.mxu0
        %v1611 = vadd.f32 0.0, %v1610
        %1612 = vmatmul.f32.gmra.mxu0 %v1498
        %v1613 = vpop.f32.mrf.mxu0
        %v1614 = vadd.f32 0.0, %v1613
        %1615 = vmatmul.f32.gmra.mxu0 %v1501
        %v1616 = vpop.f32.mrf.mxu0
        %v1617 = vadd.f32 0.0, %v1616
        %1618 = vmatmul.f32.gmra.mxu0 %v1504
        %v1619 = vpop.f32.mrf.mxu0
        %v1620 = vadd.f32 0.0, %v1619
        %1621 = vmatmul.f32.gmra.mxu0 %v1507
        %v1622 = vpop.f32.mrf.mxu0
        %v1623 = vadd.f32 0.0, %v1622
        %1624 = vmatmul.f32.gmra.mxu0 %v1510
        %v1625 = vpop.f32.mrf.mxu0
        %v1626 = vadd.f32 0.0, %v1625
        %1627 = vmatmul.f32.gmra.mxu0 %v1513
        %v1628 = vpop.f32.mrf.mxu0
        %v1629 = vadd.f32 0.0, %v1628
        %1630 = vmatmul.f32.gmra.mxu0 %v1516
        %v1631 = vpop.f32.mrf.mxu0
        %v1632 = vadd.f32 0.0, %v1631
        %1633 = vdwg.mxu0
        %v1634 = vadd.f32 %v1197, %v1539
        %v1635 = vadd.f32 %v1200, %v1542
        %v1636 = vadd.f32 %v1203, %v1545
        %v1637 = vadd.f32 %v1206, %v1548
        %v1638 = vadd.f32 %v1209, %v1551
        %v1639 = vadd.f32 %v1212, %v1554
        %v1640 = vadd.f32 %v1215, %v1557
        %v1641 = vadd.f32 %v1218, %v1560
        %v1642 = vadd.f32 %v1221, %v1563
        %v1643 = vadd.f32 %v1224, %v1566
        %v1644 = vadd.f32 %v1227, %v1569
        %v1645 = vadd.f32 %v1230, %v1572
        %v1646 = vadd.f32 %v1233, %v1575
        %v1647 = vadd.f32 %v1236, %v1578
        %v1648 = vadd.f32 %v1239, %v1581
        %v1649 = vadd.f32 %v1242, %v1584
        %v1650 = vadd.f32 %v1245, %v1587
        %v1651 = vadd.f32 %v1248, %v1590
        %v1652 = vadd.f32 %v1251, %v1593
        %v1653 = vadd.f32 %v1254, %v1596
        %v1654 = vadd.f32 %v1257, %v1599
        %v1655 = vadd.f32 %v1260, %v1602
        %v1656 = vadd.f32 %v1263, %v1605
        %v1657 = vadd.f32 %v1266, %v1608
        %v1658 = vadd.f32 %v1269, %v1611
        %v1659 = vadd.f32 %v1272, %v1614
        %v1660 = vadd.f32 %v1275, %v1617
        %v1661 = vadd.f32 %v1278, %v1620
        %v1662 = vadd.f32 %v1281, %v1623
        %v1663 = vadd.f32 %v1284, %v1626
        %v1664 = vadd.f32 %v1287, %v1629
        %v1665 = vadd.f32 %v1290, %v1632
        %v1666 = vld [vmem:[%s221 + $0x10] sm:$0xff]
        %v1667 = vld [vmem:[%s221 + $0x18] sm:$0xff]
        %v1668 = vld [vmem:[%s221 + $0x20] sm:$0xff]
        %v1669 = vld [vmem:[%s221 + $0x28] sm:$0xff]
        %v1670 = vld [vmem:[%s221 + $0x30] sm:$0xff]
        %v1671 = vld [vmem:[%s221 + $0x38] sm:$0xff]
        %v1672 = vld [vmem:[%s221 + $0x40] sm:$0xff]
        %v1673 = vld [vmem:[%s221 + $0x48] sm:$0xff]
        %v1674 = vld [vmem:[%s221 + $0x50] sm:$0xff]
        %v1675 = vld [vmem:[%s221 + $0x58] sm:$0xff]
        %v1676 = vld [vmem:[%s221 + $0x60] sm:$0xff]
        %v1677 = vld [vmem:[%s221 + $0x68] sm:$0xff]
        %v1678 = vld [vmem:[%s221 + $0x70] sm:$0xff]
        %v1679 = vld [vmem:[%s221 + $0x78] sm:$0xff]
        %v1680 = vld [vmem:[%s221 + $0x80] sm:$0xff]
        %v1681 = vld [vmem:[%s221 + $0x88] sm:$0xff]
        %v1682 = vld [vmem:[%s221 + $0x90] sm:$0xff]
        %v1683 = vld [vmem:[%s221 + $0x98] sm:$0xff]
        %v1684 = vld [vmem:[%s221 + $0xa0] sm:$0xff]
        %v1685 = vld [vmem:[%s221 + $0xa8] sm:$0xff]
        %v1686 = vld [vmem:[%s221 + $0xb0] sm:$0xff]
        %v1687 = vld [vmem:[%s221 + $0xb8] sm:$0xff]
        %v1688 = vld [vmem:[%s221 + $0xc0] sm:$0xff]
        %v1689 = vld [vmem:[%s221 + $0xc8] sm:$0xff]
        %v1690 = vld [vmem:[%s221 + $0xd0] sm:$0xff]
        %v1691 = vld [vmem:[%s221 + $0xd8] sm:$0xff]
        %v1692 = vld [vmem:[%s221 + $0xe0] sm:$0xff]
        %v1693 = vld [vmem:[%s221 + $0xe8] sm:$0xff]
        %v1694 = vld [vmem:[%s221 + $0xf0] sm:$0xff]
        %v1695 = vld [vmem:[%s221 + $0xf8] sm:$0xff]
        %v1696 = vld [vmem:[%s221 + $0x100] sm:$0xff]
        %v1697 = vld [vmem:[%s221 + $0x108] sm:$0xff]
        %v1698 = vsel %vm767, %v1666, 0.0
        %v1699 = vsel %vm768, %v1667, 0.0
        %v1700 = vsel %vm769, %v1668, 0.0
        %v1701 = vsel %vm770, %v1669, 0.0
        %v1702 = vsel %vm771, %v1670, 0.0
        %v1703 = vsel %vm772, %v1671, 0.0
        %v1704 = vsel %vm773, %v1672, 0.0
        %v1705 = vsel %vm774, %v1673, 0.0
        %v1706 = vsel %vm775, %v1674, 0.0
        %v1707 = vsel %vm776, %v1675, 0.0
        %v1708 = vsel %vm777, %v1676, 0.0
        %v1709 = vsel %vm778, %v1677, 0.0
        %v1710 = vsel %vm779, %v1678, 0.0
        %v1711 = vsel %vm780, %v1679, 0.0
        %v1712 = vsel %vm781, %v1680, 0.0
        %v1713 = vsel %vm782, %v1681, 0.0
        %v1714 = vsel %vm783, %v1682, 0.0
        %v1715 = vsel %vm784, %v1683, 0.0
        %v1716 = vsel %vm785, %v1684, 0.0
        %v1717 = vsel %vm786, %v1685, 0.0
        %v1718 = vsel %vm787, %v1686, 0.0
        %v1719 = vsel %vm788, %v1687, 0.0
        %v1720 = vsel %vm789, %v1688, 0.0
        %v1721 = vsel %vm790, %v1689, 0.0
        %v1722 = vsel %vm791, %v1690, 0.0
        %v1723 = vsel %vm792, %v1691, 0.0
        %v1724 = vsel %vm793, %v1692, 0.0
        %v1725 = vsel %vm794, %v1693, 0.0
        %v1726 = vsel %vm795, %v1694, 0.0
        %v1727 = vsel %vm796, %v1695, 0.0
        %v1728 = vsel %vm797, %v1696, 0.0
        %v1729 = vsel %vm798, %v1697, 0.0
        %s1730 = scalar_lea.vmem %s1, 12
        %v1731 = vld [vmem:[%s1730] sm:$0xf]
        %v1733 = vsel %vm866, %v1698, 0
        %v1736 = vsel %vm866, %v1699, 0
        %v1739 = vsel %vm866, %v1700, 0
        %v1742 = vsel %vm866, %v1701, 0
        %v1745 = vsel %vm866, %v1702, 0
        %v1748 = vsel %vm866, %v1703, 0
        %v1751 = vsel %vm866, %v1704, 0
        %v1754 = vsel %vm866, %v1705, 0
        %v1757 = vsel %vm866, %v1706, 0
        %v1760 = vsel %vm866, %v1707, 0
        %v1763 = vsel %vm866, %v1708, 0
        %v1766 = vsel %vm866, %v1709, 0
        %v1769 = vsel %vm866, %v1710, 0
        %v1772 = vsel %vm866, %v1711, 0
        %v1775 = vsel %vm866, %v1712, 0
        %v1778 = vsel %vm866, %v1713, 0
        %v1781 = vsel %vm866, %v1714, 0
        %v1784 = vsel %vm866, %v1715, 0
        %v1787 = vsel %vm866, %v1716, 0
        %v1790 = vsel %vm866, %v1717, 0
        %v1793 = vsel %vm866, %v1718, 0
        %v1796 = vsel %vm866, %v1719, 0
        %v1799 = vsel %vm866, %v1720, 0
        %v1802 = vsel %vm866, %v1721, 0
        %v1805 = vsel %vm866, %v1722, 0
        %v1808 = vsel %vm866, %v1723, 0
        %v1811 = vsel %vm866, %v1724, 0
        %v1814 = vsel %vm866, %v1725, 0
        %v1817 = vsel %vm866, %v1726, 0
        %v1820 = vsel %vm866, %v1727, 0
        %v1823 = vsel %vm866, %v1728, 0
        %v1826 = vsel %vm866, %v1729, 0
        %v1829 = vsel %vm963, %v1731, 0
        %1831 = vmatpush.msra.mxu0 0.0
        %1832 = vmatpush.msra.mxu0 0.0
        %1833 = vmatpush.msra.mxu0 0.0
        %1834 = vmatpush.msra.mxu0 0.0
        %1835 = vmatpush.msra.mxu0 0.0
        %1836 = vmatpush.msra.mxu0 0.0
        %1837 = vmatpush.msra.mxu0 0.0
        %1838 = vmatpush.msra.mxu0 0.0
        %1839 = vmatpush.msra.mxu0 0.0
        %1840 = vmatpush.msra.mxu0 0.0
        %1841 = vmatpush.msra.mxu0 0.0
        %1842 = vmatpush.msra.mxu0 0.0
        %1843 = vmatpush.msra.mxu0 0.0
        %1844 = vmatpush.msra.mxu0 0.0
        %1845 = vmatpush.msra.mxu0 0.0
        %1846 = vmatpush.msra.mxu0 %v1829
        %1847 = vmatmul.f32.gmra.mxu0 %v1733
        %v1848 = vpop.f32.mrf.mxu0
        %v1849 = vadd.f32 0.0, %v1848
        %1850 = vmatmul.f32.gmra.mxu0 %v1736
        %v1851 = vpop.f32.mrf.mxu0
        %v1852 = vadd.f32 0.0, %v1851
        %1853 = vmatmul.f32.gmra.mxu0 %v1739
        %v1854 = vpop.f32.mrf.mxu0
        %v1855 = vadd.f32 0.0, %v1854
        %1856 = vmatmul.f32.gmra.mxu0 %v1742
        %v1857 = vpop.f32.mrf.mxu0
        %v1858 = vadd.f32 0.0, %v1857
        %1859 = vmatmul.f32.gmra.mxu0 %v1745
        %v1860 = vpop.f32.mrf.mxu0
        %v1861 = vadd.f32 0.0, %v1860
        %1862 = vmatmul.f32.gmra.mxu0 %v1748
        %v1863 = vpop.f32.mrf.mxu0
        %v1864 = vadd.f32 0.0, %v1863
        %1865 = vmatmul.f32.gmra.mxu0 %v1751
        %v1866 = vpop.f32.mrf.mxu0
        %v1867 = vadd.f32 0.0, %v1866
        %1868 = vmatmul.f32.gmra.mxu0 %v1754
        %v1869 = vpop.f32.mrf.mxu0
        %v1870 = vadd.f32 0.0, %v1869
        %1871 = vmatmul.f32.gmra.mxu0 %v1757
        %v1872 = vpop.f32.mrf.mxu0
        %v1873 = vadd.f32 0.0, %v1872
        %1874 = vmatmul.f32.gmra.mxu0 %v1760
        %v1875 = vpop.f32.mrf.mxu0
        %v1876 = vadd.f32 0.0, %v1875
        %1877 = vmatmul.f32.gmra.mxu0 %v1763
        %v1878 = vpop.f32.mrf.mxu0
        %v1879 = vadd.f32 0.0, %v1878
        %1880 = vmatmul.f32.gmra.mxu0 %v1766
        %v1881 = vpop.f32.mrf.mxu0
        %v1882 = vadd.f32 0.0, %v1881
        %1883 = vmatmul.f32.gmra.mxu0 %v1769
        %v1884 = vpop.f32.mrf.mxu0
        %v1885 = vadd.f32 0.0, %v1884
        %1886 = vmatmul.f32.gmra.mxu0 %v1772
        %v1887 = vpop.f32.mrf.mxu0
        %v1888 = vadd.f32 0.0, %v1887
        %1889 = vmatmul.f32.gmra.mxu0 %v1775
        %v1890 = vpop.f32.mrf.mxu0
        %v1891 = vadd.f32 0.0, %v1890
        %1892 = vmatmul.f32.gmra.mxu0 %v1778
        %v1893 = vpop.f32.mrf.mxu0
        %v1894 = vadd.f32 0.0, %v1893
        %1895 = vmatmul.f32.gmra.mxu0 %v1781
        %v1896 = vpop.f32.mrf.mxu0
        %v1897 = vadd.f32 0.0, %v1896
        %1898 = vmatmul.f32.gmra.mxu0 %v1784
        %v1899 = vpop.f32.mrf.mxu0
        %v1900 = vadd.f32 0.0, %v1899
        %1901 = vmatmul.f32.gmra.mxu0 %v1787
        %v1902 = vpop.f32.mrf.mxu0
        %v1903 = vadd.f32 0.0, %v1902
        %1904 = vmatmul.f32.gmra.mxu0 %v1790
        %v1905 = vpop.f32.mrf.mxu0
        %v1906 = vadd.f32 0.0, %v1905
        %1907 = vmatmul.f32.gmra.mxu0 %v1793
        %v1908 = vpop.f32.mrf.mxu0
        %v1909 = vadd.f32 0.0, %v1908
        %1910 = vmatmul.f32.gmra.mxu0 %v1796
        %v1911 = vpop.f32.mrf.mxu0
        %v1912 = vadd.f32 0.0, %v1911
        %1913 = vmatmul.f32.gmra.mxu0 %v1799
        %v1914 = vpop.f32.mrf.mxu0
        %v1915 = vadd.f32 0.0, %v1914
        %1916 = vmatmul.f32.gmra.mxu0 %v1802
        %v1917 = vpop.f32.mrf.mxu0
        %v1918 = vadd.f32 0.0, %v1917
        %1919 = vmatmul.f32.gmra.mxu0 %v1805
        %v1920 = vpop.f32.mrf.mxu0
        %v1921 = vadd.f32 0.0, %v1920
        %1922 = vmatmul.f32.gmra.mxu0 %v1808
        %v1923 = vpop.f32.mrf.mxu0
        %v1924 = vadd.f32 0.0, %v1923
        %1925 = vmatmul.f32.gmra.mxu0 %v1811
        %v1926 = vpop.f32.mrf.mxu0
        %v1927 = vadd.f32 0.0, %v1926
        %1928 = vmatmul.f32.gmra.mxu0 %v1814
        %v1929 = vpop.f32.mrf.mxu0
        %v1930 = vadd.f32 0.0, %v1929
        %1931 = vmatmul.f32.gmra.mxu0 %v1817
        %v1932 = vpop.f32.mrf.mxu0
        %v1933 = vadd.f32 0.0, %v1932
        %1934 = vmatmul.f32.gmra.mxu0 %v1820
        %v1935 = vpop.f32.mrf.mxu0
        %v1936 = vadd.f32 0.0, %v1935
        %1937 = vmatmul.f32.gmra.mxu0 %v1823
        %v1938 = vpop.f32.mrf.mxu0
        %v1939 = vadd.f32 0.0, %v1938
        %1940 = vmatmul.f32.gmra.mxu0 %v1826
        %v1941 = vpop.f32.mrf.mxu0
        %v1942 = vadd.f32 0.0, %v1941
        %1943 = vdwg.mxu0
        %v1944 = vadd.f32 %v1634, %v1849
        %v1945 = vadd.f32 %v1635, %v1852
        %v1946 = vadd.f32 %v1636, %v1855
        %v1947 = vadd.f32 %v1637, %v1858
        %v1948 = vadd.f32 %v1638, %v1861
        %v1949 = vadd.f32 %v1639, %v1864
        %v1950 = vadd.f32 %v1640, %v1867
        %v1951 = vadd.f32 %v1641, %v1870
        %v1952 = vadd.f32 %v1642, %v1873
        %v1953 = vadd.f32 %v1643, %v1876
        %v1954 = vadd.f32 %v1644, %v1879
        %v1955 = vadd.f32 %v1645, %v1882
        %v1956 = vadd.f32 %v1646, %v1885
        %v1957 = vadd.f32 %v1647, %v1888
        %v1958 = vadd.f32 %v1648, %v1891
        %v1959 = vadd.f32 %v1649, %v1894
        %v1960 = vadd.f32 %v1650, %v1897
        %v1961 = vadd.f32 %v1651, %v1900
        %v1962 = vadd.f32 %v1652, %v1903
        %v1963 = vadd.f32 %v1653, %v1906
        %v1964 = vadd.f32 %v1654, %v1909
        %v1965 = vadd.f32 %v1655, %v1912
        %v1966 = vadd.f32 %v1656, %v1915
        %v1967 = vadd.f32 %v1657, %v1918
        %v1968 = vadd.f32 %v1658, %v1921
        %v1969 = vadd.f32 %v1659, %v1924
        %v1970 = vadd.f32 %v1660, %v1927
        %v1971 = vadd.f32 %v1661, %v1930
        %v1972 = vadd.f32 %v1662, %v1933
        %v1973 = vadd.f32 %v1663, %v1936
        %v1974 = vadd.f32 %v1664, %v1939
        %v1975 = vadd.f32 %v1665, %v1942
        %v1976 = vld [vmem:[%s221 + $0x11] sm:$0xff]
        %v1977 = vld [vmem:[%s221 + $0x19] sm:$0xff]
        %v1978 = vld [vmem:[%s221 + $0x21] sm:$0xff]
        %v1979 = vld [vmem:[%s221 + $0x29] sm:$0xff]
        %v1980 = vld [vmem:[%s221 + $0x31] sm:$0xff]
        %v1981 = vld [vmem:[%s221 + $0x39] sm:$0xff]
        %v1982 = vld [vmem:[%s221 + $0x41] sm:$0xff]
        %v1983 = vld [vmem:[%s221 + $0x49] sm:$0xff]
        %v1984 = vld [vmem:[%s221 + $0x51] sm:$0xff]
        %v1985 = vld [vmem:[%s221 + $0x59] sm:$0xff]
        %v1986 = vld [vmem:[%s221 + $0x61] sm:$0xff]
        %v1987 = vld [vmem:[%s221 + $0x69] sm:$0xff]
        %v1988 = vld [vmem:[%s221 + $0x71] sm:$0xff]
        %v1989 = vld [vmem:[%s221 + $0x79] sm:$0xff]
        %v1990 = vld [vmem:[%s221 + $0x81] sm:$0xff]
        %v1991 = vld [vmem:[%s221 + $0x89] sm:$0xff]
        %v1992 = vld [vmem:[%s221 + $0x91] sm:$0xff]
        %v1993 = vld [vmem:[%s221 + $0x99] sm:$0xff]
        %v1994 = vld [vmem:[%s221 + $0xa1] sm:$0xff]
        %v1995 = vld [vmem:[%s221 + $0xa9] sm:$0xff]
        %v1996 = vld [vmem:[%s221 + $0xb1] sm:$0xff]
        %v1997 = vld [vmem:[%s221 + $0xb9] sm:$0xff]
        %v1998 = vld [vmem:[%s221 + $0xc1] sm:$0xff]
        %v1999 = vld [vmem:[%s221 + $0xc9] sm:$0xff]
        %v2000 = vld [vmem:[%s221 + $0xd1] sm:$0xff]
        %v2001 = vld [vmem:[%s221 + $0xd9] sm:$0xff]
        %v2002 = vld [vmem:[%s221 + $0xe1] sm:$0xff]
        %v2003 = vld [vmem:[%s221 + $0xe9] sm:$0xff]
        %v2004 = vld [vmem:[%s221 + $0xf1] sm:$0xff]
        %v2005 = vld [vmem:[%s221 + $0xf9] sm:$0xff]
        %v2006 = vld [vmem:[%s221 + $0x101] sm:$0xff]
        %v2007 = vld [vmem:[%s221 + $0x109] sm:$0xff]
        %s2008 = scalar_lea.vmem %s1, 16
        %v2009 = vld [vmem:[%s2008] sm:$0xf]
        %v2011 = vsel %vm866, %v1976, 0
        %v2014 = vsel %vm866, %v1977, 0
        %v2017 = vsel %vm866, %v1978, 0
        %v2020 = vsel %vm866, %v1979, 0
        %v2023 = vsel %vm866, %v1980, 0
        %v2026 = vsel %vm866, %v1981, 0
        %v2029 = vsel %vm866, %v1982, 0
        %v2032 = vsel %vm866, %v1983, 0
        %v2035 = vsel %vm866, %v1984, 0
        %v2038 = vsel %vm866, %v1985, 0
        %v2041 = vsel %vm866, %v1986, 0
        %v2044 = vsel %vm866, %v1987, 0
        %v2047 = vsel %vm866, %v1988, 0
        %v2050 = vsel %vm866, %v1989, 0
        %v2053 = vsel %vm866, %v1990, 0
        %v2056 = vsel %vm866, %v1991, 0
        %v2059 = vsel %vm866, %v1992, 0
        %v2062 = vsel %vm866, %v1993, 0
        %v2065 = vsel %vm866, %v1994, 0
        %v2068 = vsel %vm866, %v1995, 0
        %v2071 = vsel %vm866, %v1996, 0
        %v2074 = vsel %vm866, %v1997, 0
        %v2077 = vsel %vm866, %v1998, 0
        %v2080 = vsel %vm866, %v1999, 0
        %v2083 = vsel %vm866, %v2000, 0
        %v2086 = vsel %vm866, %v2001, 0
        %v2089 = vsel %vm866, %v2002, 0
        %v2092 = vsel %vm866, %v2003, 0
        %v2095 = vsel %vm866, %v2004, 0
        %v2098 = vsel %vm866, %v2005, 0
        %v2101 = vsel %vm866, %v2006, 0
        %v2104 = vsel %vm866, %v2007, 0
        %v2107 = vsel %vm963, %v2009, 0
        %2109 = vmatpush.msra.mxu0 0.0
        %2110 = vmatpush.msra.mxu0 0.0
        %2111 = vmatpush.msra.mxu0 0.0
        %2112 = vmatpush.msra.mxu0 0.0
        %2113 = vmatpush.msra.mxu0 0.0
        %2114 = vmatpush.msra.mxu0 0.0
        %2115 = vmatpush.msra.mxu0 0.0
        %2116 = vmatpush.msra.mxu0 0.0
        %2117 = vmatpush.msra.mxu0 0.0
        %2118 = vmatpush.msra.mxu0 0.0
        %2119 = vmatpush.msra.mxu0 0.0
        %2120 = vmatpush.msra.mxu0 0.0
        %2121 = vmatpush.msra.mxu0 0.0
        %2122 = vmatpush.msra.mxu0 0.0
        %2123 = vmatpush.msra.mxu0 0.0
        %2124 = vmatpush.msra.mxu0 %v2107
        %2125 = vmatmul.f32.gmra.mxu0 %v2011
        %v2126 = vpop.f32.mrf.mxu0
        %v2127 = vadd.f32 0.0, %v2126
        %2128 = vmatmul.f32.gmra.mxu0 %v2014
        %v2129 = vpop.f32.mrf.mxu0
        %v2130 = vadd.f32 0.0, %v2129
        %2131 = vmatmul.f32.gmra.mxu0 %v2017
        %v2132 = vpop.f32.mrf.mxu0
        %v2133 = vadd.f32 0.0, %v2132
        %2134 = vmatmul.f32.gmra.mxu0 %v2020
        %v2135 = vpop.f32.mrf.mxu0
        %v2136 = vadd.f32 0.0, %v2135
        %2137 = vmatmul.f32.gmra.mxu0 %v2023
        %v2138 = vpop.f32.mrf.mxu0
        %v2139 = vadd.f32 0.0, %v2138
        %2140 = vmatmul.f32.gmra.mxu0 %v2026
        %v2141 = vpop.f32.mrf.mxu0
        %v2142 = vadd.f32 0.0, %v2141
        %2143 = vmatmul.f32.gmra.mxu0 %v2029
        %v2144 = vpop.f32.mrf.mxu0
        %v2145 = vadd.f32 0.0, %v2144
        %2146 = vmatmul.f32.gmra.mxu0 %v2032
        %v2147 = vpop.f32.mrf.mxu0
        %v2148 = vadd.f32 0.0, %v2147
        %2149 = vmatmul.f32.gmra.mxu0 %v2035
        %v2150 = vpop.f32.mrf.mxu0
        %v2151 = vadd.f32 0.0, %v2150
        %2152 = vmatmul.f32.gmra.mxu0 %v2038
        %v2153 = vpop.f32.mrf.mxu0
        %v2154 = vadd.f32 0.0, %v2153
        %2155 = vmatmul.f32.gmra.mxu0 %v2041
        %v2156 = vpop.f32.mrf.mxu0
        %v2157 = vadd.f32 0.0, %v2156
        %2158 = vmatmul.f32.gmra.mxu0 %v2044
        %v2159 = vpop.f32.mrf.mxu0
        %v2160 = vadd.f32 0.0, %v2159
        %2161 = vmatmul.f32.gmra.mxu0 %v2047
        %v2162 = vpop.f32.mrf.mxu0
        %v2163 = vadd.f32 0.0, %v2162
        %2164 = vmatmul.f32.gmra.mxu0 %v2050
        %v2165 = vpop.f32.mrf.mxu0
        %v2166 = vadd.f32 0.0, %v2165
        %2167 = vmatmul.f32.gmra.mxu0 %v2053
        %v2168 = vpop.f32.mrf.mxu0
        %v2169 = vadd.f32 0.0, %v2168
        %2170 = vmatmul.f32.gmra.mxu0 %v2056
        %v2171 = vpop.f32.mrf.mxu0
        %v2172 = vadd.f32 0.0, %v2171
        %2173 = vmatmul.f32.gmra.mxu0 %v2059
        %v2174 = vpop.f32.mrf.mxu0
        %v2175 = vadd.f32 0.0, %v2174
        %2176 = vmatmul.f32.gmra.mxu0 %v2062
        %v2177 = vpop.f32.mrf.mxu0
        %v2178 = vadd.f32 0.0, %v2177
        %2179 = vmatmul.f32.gmra.mxu0 %v2065
        %v2180 = vpop.f32.mrf.mxu0
        %v2181 = vadd.f32 0.0, %v2180
        %2182 = vmatmul.f32.gmra.mxu0 %v2068
        %v2183 = vpop.f32.mrf.mxu0
        %v2184 = vadd.f32 0.0, %v2183
        %2185 = vmatmul.f32.gmra.mxu0 %v2071
        %v2186 = vpop.f32.mrf.mxu0
        %v2187 = vadd.f32 0.0, %v2186
        %2188 = vmatmul.f32.gmra.mxu0 %v2074
        %v2189 = vpop.f32.mrf.mxu0
        %v2190 = vadd.f32 0.0, %v2189
        %2191 = vmatmul.f32.gmra.mxu0 %v2077
        %v2192 = vpop.f32.mrf.mxu0
        %v2193 = vadd.f32 0.0, %v2192
        %2194 = vmatmul.f32.gmra.mxu0 %v2080
        %v2195 = vpop.f32.mrf.mxu0
        %v2196 = vadd.f32 0.0, %v2195
        %2197 = vmatmul.f32.gmra.mxu0 %v2083
        %v2198 = vpop.f32.mrf.mxu0
        %v2199 = vadd.f32 0.0, %v2198
        %2200 = vmatmul.f32.gmra.mxu0 %v2086
        %v2201 = vpop.f32.mrf.mxu0
        %v2202 = vadd.f32 0.0, %v2201
        %2203 = vmatmul.f32.gmra.mxu0 %v2089
        %v2204 = vpop.f32.mrf.mxu0
        %v2205 = vadd.f32 0.0, %v2204
        %2206 = vmatmul.f32.gmra.mxu0 %v2092
        %v2207 = vpop.f32.mrf.mxu0
        %v2208 = vadd.f32 0.0, %v2207
        %2209 = vmatmul.f32.gmra.mxu0 %v2095
        %v2210 = vpop.f32.mrf.mxu0
        %v2211 = vadd.f32 0.0, %v2210
        %2212 = vmatmul.f32.gmra.mxu0 %v2098
        %v2213 = vpop.f32.mrf.mxu0
        %v2214 = vadd.f32 0.0, %v2213
        %2215 = vmatmul.f32.gmra.mxu0 %v2101
        %v2216 = vpop.f32.mrf.mxu0
        %v2217 = vadd.f32 0.0, %v2216
        %2218 = vmatmul.f32.gmra.mxu0 %v2104
        %v2219 = vpop.f32.mrf.mxu0
        %v2220 = vadd.f32 0.0, %v2219
        %2221 = vdwg.mxu0
        %v2222 = vadd.f32 %v1944, %v2127
        %v2223 = vadd.f32 %v1945, %v2130
        %v2224 = vadd.f32 %v1946, %v2133
        %v2225 = vadd.f32 %v1947, %v2136
        %v2226 = vadd.f32 %v1948, %v2139
        %v2227 = vadd.f32 %v1949, %v2142
        %v2228 = vadd.f32 %v1950, %v2145
        %v2229 = vadd.f32 %v1951, %v2148
        %v2230 = vadd.f32 %v1952, %v2151
        %v2231 = vadd.f32 %v1953, %v2154
        %v2232 = vadd.f32 %v1954, %v2157
        %v2233 = vadd.f32 %v1955, %v2160
        %v2234 = vadd.f32 %v1956, %v2163
        %v2235 = vadd.f32 %v1957, %v2166
        %v2236 = vadd.f32 %v1958, %v2169
        %v2237 = vadd.f32 %v1959, %v2172
        %v2238 = vadd.f32 %v1960, %v2175
        %v2239 = vadd.f32 %v1961, %v2178
        %v2240 = vadd.f32 %v1962, %v2181
        %v2241 = vadd.f32 %v1963, %v2184
        %v2242 = vadd.f32 %v1964, %v2187
        %v2243 = vadd.f32 %v1965, %v2190
        %v2244 = vadd.f32 %v1966, %v2193
        %v2245 = vadd.f32 %v1967, %v2196
        %v2246 = vadd.f32 %v1968, %v2199
        %v2247 = vadd.f32 %v1969, %v2202
        %v2248 = vadd.f32 %v1970, %v2205
        %v2249 = vadd.f32 %v1971, %v2208
        %v2250 = vadd.f32 %v1972, %v2211
        %v2251 = vadd.f32 %v1973, %v2214
        %v2252 = vadd.f32 %v1974, %v2217
        %v2253 = vadd.f32 %v1975, %v2220
        %v2254 = vld [vmem:[%s221 + $0x12] sm:$0xff]
        %v2255 = vld [vmem:[%s221 + $0x1a] sm:$0xff]
        %v2256 = vld [vmem:[%s221 + $0x22] sm:$0xff]
        %v2257 = vld [vmem:[%s221 + $0x2a] sm:$0xff]
        %v2258 = vld [vmem:[%s221 + $0x32] sm:$0xff]
        %v2259 = vld [vmem:[%s221 + $0x3a] sm:$0xff]
        %v2260 = vld [vmem:[%s221 + $0x42] sm:$0xff]
        %v2261 = vld [vmem:[%s221 + $0x4a] sm:$0xff]
        %v2262 = vld [vmem:[%s221 + $0x52] sm:$0xff]
        %v2263 = vld [vmem:[%s221 + $0x5a] sm:$0xff]
        %v2264 = vld [vmem:[%s221 + $0x62] sm:$0xff]
        %v2265 = vld [vmem:[%s221 + $0x6a] sm:$0xff]
        %v2266 = vld [vmem:[%s221 + $0x72] sm:$0xff]
        %v2267 = vld [vmem:[%s221 + $0x7a] sm:$0xff]
        %v2268 = vld [vmem:[%s221 + $0x82] sm:$0xff]
        %v2269 = vld [vmem:[%s221 + $0x8a] sm:$0xff]
        %v2270 = vld [vmem:[%s221 + $0x92] sm:$0xff]
        %v2271 = vld [vmem:[%s221 + $0x9a] sm:$0xff]
        %v2272 = vld [vmem:[%s221 + $0xa2] sm:$0xff]
        %v2273 = vld [vmem:[%s221 + $0xaa] sm:$0xff]
        %v2274 = vld [vmem:[%s221 + $0xb2] sm:$0xff]
        %v2275 = vld [vmem:[%s221 + $0xba] sm:$0xff]
        %v2276 = vld [vmem:[%s221 + $0xc2] sm:$0xff]
        %v2277 = vld [vmem:[%s221 + $0xca] sm:$0xff]
        %v2278 = vld [vmem:[%s221 + $0xd2] sm:$0xff]
        %v2279 = vld [vmem:[%s221 + $0xda] sm:$0xff]
        %v2280 = vld [vmem:[%s221 + $0xe2] sm:$0xff]
        %v2281 = vld [vmem:[%s221 + $0xea] sm:$0xff]
        %v2282 = vld [vmem:[%s221 + $0xf2] sm:$0xff]
        %v2283 = vld [vmem:[%s221 + $0xfa] sm:$0xff]
        %v2284 = vld [vmem:[%s221 + $0x102] sm:$0xff]
        %v2285 = vld [vmem:[%s221 + $0x10a] sm:$0xff]
        %v2286 = vsel %vm1356, %v2254, 0.0
        %v2287 = vsel %vm1357, %v2255, 0.0
        %v2288 = vsel %vm1358, %v2256, 0.0
        %v2289 = vsel %vm1359, %v2257, 0.0
        %v2290 = vsel %vm1360, %v2258, 0.0
        %v2291 = vsel %vm1361, %v2259, 0.0
        %v2292 = vsel %vm1362, %v2260, 0.0
        %v2293 = vsel %vm1363, %v2261, 0.0
        %v2294 = vsel %vm1364, %v2262, 0.0
        %v2295 = vsel %vm1365, %v2263, 0.0
        %v2296 = vsel %vm1366, %v2264, 0.0
        %v2297 = vsel %vm1367, %v2265, 0.0
        %v2298 = vsel %vm1368, %v2266, 0.0
        %v2299 = vsel %vm1369, %v2267, 0.0
        %v2300 = vsel %vm1370, %v2268, 0.0
        %v2301 = vsel %vm1371, %v2269, 0.0
        %v2302 = vsel %vm1372, %v2270, 0.0
        %v2303 = vsel %vm1373, %v2271, 0.0
        %v2304 = vsel %vm1374, %v2272, 0.0
        %v2305 = vsel %vm1375, %v2273, 0.0
        %v2306 = vsel %vm1376, %v2274, 0.0
        %v2307 = vsel %vm1377, %v2275, 0.0
        %v2308 = vsel %vm1378, %v2276, 0.0
        %v2309 = vsel %vm1379, %v2277, 0.0
        %v2310 = vsel %vm1380, %v2278, 0.0
        %v2311 = vsel %vm1381, %v2279, 0.0
        %v2312 = vsel %vm1382, %v2280, 0.0
        %v2313 = vsel %vm1383, %v2281, 0.0
        %v2314 = vsel %vm1384, %v2282, 0.0
        %v2315 = vsel %vm1385, %v2283, 0.0
        %v2316 = vsel %vm1386, %v2284, 0.0
        %v2317 = vsel %vm1387, %v2285, 0.0
        %s2318 = scalar_lea.vmem %s1, 20
        %v2319 = vld [vmem:[%s2318] sm:$0xf]
        %v2321 = vsel %vm866, %v2286, 0
        %v2324 = vsel %vm866, %v2287, 0
        %v2327 = vsel %vm866, %v2288, 0
        %v2330 = vsel %vm866, %v2289, 0
        %v2333 = vsel %vm866, %v2290, 0
        %v2336 = vsel %vm866, %v2291, 0
        %v2339 = vsel %vm866, %v2292, 0
        %v2342 = vsel %vm866, %v2293, 0
        %v2345 = vsel %vm866, %v2294, 0
        %v2348 = vsel %vm866, %v2295, 0
        %v2351 = vsel %vm866, %v2296, 0
        %v2354 = vsel %vm866, %v2297, 0
        %v2357 = vsel %vm866, %v2298, 0
        %v2360 = vsel %vm866, %v2299, 0
        %v2363 = vsel %vm866, %v2300, 0
        %v2366 = vsel %vm866, %v2301, 0
        %v2369 = vsel %vm866, %v2302, 0
        %v2372 = vsel %vm866, %v2303, 0
        %v2375 = vsel %vm866, %v2304, 0
        %v2378 = vsel %vm866, %v2305, 0
        %v2381 = vsel %vm866, %v2306, 0
        %v2384 = vsel %vm866, %v2307, 0
        %v2387 = vsel %vm866, %v2308, 0
        %v2390 = vsel %vm866, %v2309, 0
        %v2393 = vsel %vm866, %v2310, 0
        %v2396 = vsel %vm866, %v2311, 0
        %v2399 = vsel %vm866, %v2312, 0
        %v2402 = vsel %vm866, %v2313, 0
        %v2405 = vsel %vm866, %v2314, 0
        %v2408 = vsel %vm866, %v2315, 0
        %v2411 = vsel %vm866, %v2316, 0
        %v2414 = vsel %vm866, %v2317, 0
        %v2417 = vsel %vm963, %v2319, 0
        %2419 = vmatpush.msra.mxu0 0.0
        %2420 = vmatpush.msra.mxu0 0.0
        %2421 = vmatpush.msra.mxu0 0.0
        %2422 = vmatpush.msra.mxu0 0.0
        %2423 = vmatpush.msra.mxu0 0.0
        %2424 = vmatpush.msra.mxu0 0.0
        %2425 = vmatpush.msra.mxu0 0.0
        %2426 = vmatpush.msra.mxu0 0.0
        %2427 = vmatpush.msra.mxu0 0.0
        %2428 = vmatpush.msra.mxu0 0.0
        %2429 = vmatpush.msra.mxu0 0.0
        %2430 = vmatpush.msra.mxu0 0.0
        %2431 = vmatpush.msra.mxu0 0.0
        %2432 = vmatpush.msra.mxu0 0.0
        %2433 = vmatpush.msra.mxu0 0.0
        %2434 = vmatpush.msra.mxu0 %v2417
        %2435 = vmatmul.f32.gmra.mxu0 %v2321
        %v2436 = vpop.f32.mrf.mxu0
        %v2437 = vadd.f32 0.0, %v2436
        %2438 = vmatmul.f32.gmra.mxu0 %v2324
        %v2439 = vpop.f32.mrf.mxu0
        %v2440 = vadd.f32 0.0, %v2439
        %2441 = vmatmul.f32.gmra.mxu0 %v2327
        %v2442 = vpop.f32.mrf.mxu0
        %v2443 = vadd.f32 0.0, %v2442
        %2444 = vmatmul.f32.gmra.mxu0 %v2330
        %v2445 = vpop.f32.mrf.mxu0
        %v2446 = vadd.f32 0.0, %v2445
        %2447 = vmatmul.f32.gmra.mxu0 %v2333
        %v2448 = vpop.f32.mrf.mxu0
        %v2449 = vadd.f32 0.0, %v2448
        %2450 = vmatmul.f32.gmra.mxu0 %v2336
        %v2451 = vpop.f32.mrf.mxu0
        %v2452 = vadd.f32 0.0, %v2451
        %2453 = vmatmul.f32.gmra.mxu0 %v2339
        %v2454 = vpop.f32.mrf.mxu0
        %v2455 = vadd.f32 0.0, %v2454
        %2456 = vmatmul.f32.gmra.mxu0 %v2342
        %v2457 = vpop.f32.mrf.mxu0
        %v2458 = vadd.f32 0.0, %v2457
        %2459 = vmatmul.f32.gmra.mxu0 %v2345
        %v2460 = vpop.f32.mrf.mxu0
        %v2461 = vadd.f32 0.0, %v2460
        %2462 = vmatmul.f32.gmra.mxu0 %v2348
        %v2463 = vpop.f32.mrf.mxu0
        %v2464 = vadd.f32 0.0, %v2463
        %2465 = vmatmul.f32.gmra.mxu0 %v2351
        %v2466 = vpop.f32.mrf.mxu0
        %v2467 = vadd.f32 0.0, %v2466
        %2468 = vmatmul.f32.gmra.mxu0 %v2354
        %v2469 = vpop.f32.mrf.mxu0
        %v2470 = vadd.f32 0.0, %v2469
        %2471 = vmatmul.f32.gmra.mxu0 %v2357
        %v2472 = vpop.f32.mrf.mxu0
        %v2473 = vadd.f32 0.0, %v2472
        %2474 = vmatmul.f32.gmra.mxu0 %v2360
        %v2475 = vpop.f32.mrf.mxu0
        %v2476 = vadd.f32 0.0, %v2475
        %2477 = vmatmul.f32.gmra.mxu0 %v2363
        %v2478 = vpop.f32.mrf.mxu0
        %v2479 = vadd.f32 0.0, %v2478
        %2480 = vmatmul.f32.gmra.mxu0 %v2366
        %v2481 = vpop.f32.mrf.mxu0
        %v2482 = vadd.f32 0.0, %v2481
        %2483 = vmatmul.f32.gmra.mxu0 %v2369
        %v2484 = vpop.f32.mrf.mxu0
        %v2485 = vadd.f32 0.0, %v2484
        %2486 = vmatmul.f32.gmra.mxu0 %v2372
        %v2487 = vpop.f32.mrf.mxu0
        %v2488 = vadd.f32 0.0, %v2487
        %2489 = vmatmul.f32.gmra.mxu0 %v2375
        %v2490 = vpop.f32.mrf.mxu0
        %v2491 = vadd.f32 0.0, %v2490
        %2492 = vmatmul.f32.gmra.mxu0 %v2378
        %v2493 = vpop.f32.mrf.mxu0
        %v2494 = vadd.f32 0.0, %v2493
        %2495 = vmatmul.f32.gmra.mxu0 %v2381
        %v2496 = vpop.f32.mrf.mxu0
        %v2497 = vadd.f32 0.0, %v2496
        %2498 = vmatmul.f32.gmra.mxu0 %v2384
        %v2499 = vpop.f32.mrf.mxu0
        %v2500 = vadd.f32 0.0, %v2499
        %2501 = vmatmul.f32.gmra.mxu0 %v2387
        %v2502 = vpop.f32.mrf.mxu0
        %v2503 = vadd.f32 0.0, %v2502
        %2504 = vmatmul.f32.gmra.mxu0 %v2390
        %v2505 = vpop.f32.mrf.mxu0
        %v2506 = vadd.f32 0.0, %v2505
        %2507 = vmatmul.f32.gmra.mxu0 %v2393
        %v2508 = vpop.f32.mrf.mxu0
        %v2509 = vadd.f32 0.0, %v2508
        %2510 = vmatmul.f32.gmra.mxu0 %v2396
        %v2511 = vpop.f32.mrf.mxu0
        %v2512 = vadd.f32 0.0, %v2511
        %2513 = vmatmul.f32.gmra.mxu0 %v2399
        %v2514 = vpop.f32.mrf.mxu0
        %v2515 = vadd.f32 0.0, %v2514
        %2516 = vmatmul.f32.gmra.mxu0 %v2402
        %v2517 = vpop.f32.mrf.mxu0
        %v2518 = vadd.f32 0.0, %v2517
        %2519 = vmatmul.f32.gmra.mxu0 %v2405
        %v2520 = vpop.f32.mrf.mxu0
        %v2521 = vadd.f32 0.0, %v2520
        %2522 = vmatmul.f32.gmra.mxu0 %v2408
        %v2523 = vpop.f32.mrf.mxu0
        %v2524 = vadd.f32 0.0, %v2523
        %2525 = vmatmul.f32.gmra.mxu0 %v2411
        %v2526 = vpop.f32.mrf.mxu0
        %v2527 = vadd.f32 0.0, %v2526
        %2528 = vmatmul.f32.gmra.mxu0 %v2414
        %v2529 = vpop.f32.mrf.mxu0
        %v2530 = vadd.f32 0.0, %v2529
        %2531 = vdwg.mxu0
        %v2532 = vadd.f32 %v2222, %v2437
        %v2533 = vadd.f32 %v2223, %v2440
        %v2534 = vadd.f32 %v2224, %v2443
        %v2535 = vadd.f32 %v2225, %v2446
        %v2536 = vadd.f32 %v2226, %v2449
        %v2537 = vadd.f32 %v2227, %v2452
        %v2538 = vadd.f32 %v2228, %v2455
        %v2539 = vadd.f32 %v2229, %v2458
        %v2540 = vadd.f32 %v2230, %v2461
        %v2541 = vadd.f32 %v2231, %v2464
        %v2542 = vadd.f32 %v2232, %v2467
        %v2543 = vadd.f32 %v2233, %v2470
        %v2544 = vadd.f32 %v2234, %v2473
        %v2545 = vadd.f32 %v2235, %v2476
        %v2546 = vadd.f32 %v2236, %v2479
        %v2547 = vadd.f32 %v2237, %v2482
        %v2548 = vadd.f32 %v2238, %v2485
        %v2549 = vadd.f32 %v2239, %v2488
        %v2550 = vadd.f32 %v2240, %v2491
        %v2551 = vadd.f32 %v2241, %v2494
        %v2552 = vadd.f32 %v2242, %v2497
        %v2553 = vadd.f32 %v2243, %v2500
        %v2554 = vadd.f32 %v2244, %v2503
        %v2555 = vadd.f32 %v2245, %v2506
        %v2556 = vadd.f32 %v2246, %v2509
        %v2557 = vadd.f32 %v2247, %v2512
        %v2558 = vadd.f32 %v2248, %v2515
        %v2559 = vadd.f32 %v2249, %v2518
        %v2560 = vadd.f32 %v2250, %v2521
        %v2561 = vadd.f32 %v2251, %v2524
        %v2562 = vadd.f32 %v2252, %v2527
        %v2563 = vadd.f32 %v2253, %v2530
        %v2564 = vld [vmem:[%s221 + $0x20] sm:$0xff]
        %v2565 = vld [vmem:[%s221 + $0x28] sm:$0xff]
        %v2566 = vld [vmem:[%s221 + $0x30] sm:$0xff]
        %v2567 = vld [vmem:[%s221 + $0x38] sm:$0xff]
        %v2568 = vld [vmem:[%s221 + $0x40] sm:$0xff]
        %v2569 = vld [vmem:[%s221 + $0x48] sm:$0xff]
        %v2570 = vld [vmem:[%s221 + $0x50] sm:$0xff]
        %v2571 = vld [vmem:[%s221 + $0x58] sm:$0xff]
        %v2572 = vld [vmem:[%s221 + $0x60] sm:$0xff]
        %v2573 = vld [vmem:[%s221 + $0x68] sm:$0xff]
        %v2574 = vld [vmem:[%s221 + $0x70] sm:$0xff]
        %v2575 = vld [vmem:[%s221 + $0x78] sm:$0xff]
        %v2576 = vld [vmem:[%s221 + $0x80] sm:$0xff]
        %v2577 = vld [vmem:[%s221 + $0x88] sm:$0xff]
        %v2578 = vld [vmem:[%s221 + $0x90] sm:$0xff]
        %v2579 = vld [vmem:[%s221 + $0x98] sm:$0xff]
        %v2580 = vld [vmem:[%s221 + $0xa0] sm:$0xff]
        %v2581 = vld [vmem:[%s221 + $0xa8] sm:$0xff]
        %v2582 = vld [vmem:[%s221 + $0xb0] sm:$0xff]
        %v2583 = vld [vmem:[%s221 + $0xb8] sm:$0xff]
        %v2584 = vld [vmem:[%s221 + $0xc0] sm:$0xff]
        %v2585 = vld [vmem:[%s221 + $0xc8] sm:$0xff]
        %v2586 = vld [vmem:[%s221 + $0xd0] sm:$0xff]
        %v2587 = vld [vmem:[%s221 + $0xd8] sm:$0xff]
        %v2588 = vld [vmem:[%s221 + $0xe0] sm:$0xff]
        %v2589 = vld [vmem:[%s221 + $0xe8] sm:$0xff]
        %v2590 = vld [vmem:[%s221 + $0xf0] sm:$0xff]
        %v2591 = vld [vmem:[%s221 + $0xf8] sm:$0xff]
        %v2592 = vld [vmem:[%s221 + $0x100] sm:$0xff]
        %v2593 = vld [vmem:[%s221 + $0x108] sm:$0xff]
        %v2594 = vld [vmem:[%s221 + $0x110] sm:$0xff]
        %v2595 = vld [vmem:[%s221 + $0x118] sm:$0xff]
        %v2596 = vsel %vm767, %v2564, 0.0
        %v2597 = vsel %vm768, %v2565, 0.0
        %v2598 = vsel %vm769, %v2566, 0.0
        %v2599 = vsel %vm770, %v2567, 0.0
        %v2600 = vsel %vm771, %v2568, 0.0
        %v2601 = vsel %vm772, %v2569, 0.0
        %v2602 = vsel %vm773, %v2570, 0.0
        %v2603 = vsel %vm774, %v2571, 0.0
        %v2604 = vsel %vm775, %v2572, 0.0
        %v2605 = vsel %vm776, %v2573, 0.0
        %v2606 = vsel %vm777, %v2574, 0.0
        %v2607 = vsel %vm778, %v2575, 0.0
        %v2608 = vsel %vm779, %v2576, 0.0
        %v2609 = vsel %vm780, %v2577, 0.0
        %v2610 = vsel %vm781, %v2578, 0.0
        %v2611 = vsel %vm782, %v2579, 0.0
        %v2612 = vsel %vm783, %v2580, 0.0
        %v2613 = vsel %vm784, %v2581, 0.0
        %v2614 = vsel %vm785, %v2582, 0.0
        %v2615 = vsel %vm786, %v2583, 0.0
        %v2616 = vsel %vm787, %v2584, 0.0
        %v2617 = vsel %vm788, %v2585, 0.0
        %v2618 = vsel %vm789, %v2586, 0.0
        %v2619 = vsel %vm790, %v2587, 0.0
        %v2620 = vsel %vm791, %v2588, 0.0
        %v2621 = vsel %vm792, %v2589, 0.0
        %v2622 = vsel %vm793, %v2590, 0.0
        %v2623 = vsel %vm794, %v2591, 0.0
        %v2624 = vsel %vm795, %v2592, 0.0
        %v2625 = vsel %vm796, %v2593, 0.0
        %v2626 = vsel %vm797, %v2594, 0.0
        %v2627 = vsel %vm798, %v2595, 0.0
        %s2628 = scalar_lea.vmem %s1, 24
        %v2629 = vld [vmem:[%s2628] sm:$0xf]
        %v2631 = vsel %vm866, %v2596, 0
        %v2634 = vsel %vm866, %v2597, 0
        %v2637 = vsel %vm866, %v2598, 0
        %v2640 = vsel %vm866, %v2599, 0
        %v2643 = vsel %vm866, %v2600, 0
        %v2646 = vsel %vm866, %v2601, 0
        %v2649 = vsel %vm866, %v2602, 0
        %v2652 = vsel %vm866, %v2603, 0
        %v2655 = vsel %vm866, %v2604, 0
        %v2658 = vsel %vm866, %v2605, 0
        %v2661 = vsel %vm866, %v2606, 0
        %v2664 = vsel %vm866, %v2607, 0
        %v2667 = vsel %vm866, %v2608, 0
        %v2670 = vsel %vm866, %v2609, 0
        %v2673 = vsel %vm866, %v2610, 0
        %v2676 = vsel %vm866, %v2611, 0
        %v2679 = vsel %vm866, %v2612, 0
        %v2682 = vsel %vm866, %v2613, 0
        %v2685 = vsel %vm866, %v2614, 0
        %v2688 = vsel %vm866, %v2615, 0
        %v2691 = vsel %vm866, %v2616, 0
        %v2694 = vsel %vm866, %v2617, 0
        %v2697 = vsel %vm866, %v2618, 0
        %v2700 = vsel %vm866, %v2619, 0
        %v2703 = vsel %vm866, %v2620, 0
        %v2706 = vsel %vm866, %v2621, 0
        %v2709 = vsel %vm866, %v2622, 0
        %v2712 = vsel %vm866, %v2623, 0
        %v2715 = vsel %vm866, %v2624, 0
        %v2718 = vsel %vm866, %v2625, 0
        %v2721 = vsel %vm866, %v2626, 0
        %v2724 = vsel %vm866, %v2627, 0
        %v2727 = vsel %vm963, %v2629, 0
        %2729 = vmatpush.msra.mxu0 0.0
        %2730 = vmatpush.msra.mxu0 0.0
        %2731 = vmatpush.msra.mxu0 0.0
        %2732 = vmatpush.msra.mxu0 0.0
        %2733 = vmatpush.msra.mxu0 0.0
        %2734 = vmatpush.msra.mxu0 0.0
        %2735 = vmatpush.msra.mxu0 0.0
        %2736 = vmatpush.msra.mxu0 0.0
        %2737 = vmatpush.msra.mxu0 0.0
        %2738 = vmatpush.msra.mxu0 0.0
        %2739 = vmatpush.msra.mxu0 0.0
        %2740 = vmatpush.msra.mxu0 0.0
        %2741 = vmatpush.msra.mxu0 0.0
        %2742 = vmatpush.msra.mxu0 0.0
        %2743 = vmatpush.msra.mxu0 0.0
        %2744 = vmatpush.msra.mxu0 %v2727
        %2745 = vmatmul.f32.gmra.mxu0 %v2631
        %v2746 = vpop.f32.mrf.mxu0
        %v2747 = vadd.f32 0.0, %v2746
        %2748 = vmatmul.f32.gmra.mxu0 %v2634
        %v2749 = vpop.f32.mrf.mxu0
        %v2750 = vadd.f32 0.0, %v2749
        %2751 = vmatmul.f32.gmra.mxu0 %v2637
        %v2752 = vpop.f32.mrf.mxu0
        %v2753 = vadd.f32 0.0, %v2752
        %2754 = vmatmul.f32.gmra.mxu0 %v2640
        %v2755 = vpop.f32.mrf.mxu0
        %v2756 = vadd.f32 0.0, %v2755
        %2757 = vmatmul.f32.gmra.mxu0 %v2643
        %v2758 = vpop.f32.mrf.mxu0
        %v2759 = vadd.f32 0.0, %v2758
        %2760 = vmatmul.f32.gmra.mxu0 %v2646
        %v2761 = vpop.f32.mrf.mxu0
        %v2762 = vadd.f32 0.0, %v2761
        %2763 = vmatmul.f32.gmra.mxu0 %v2649
        %v2764 = vpop.f32.mrf.mxu0
        %v2765 = vadd.f32 0.0, %v2764
        %2766 = vmatmul.f32.gmra.mxu0 %v2652
        %v2767 = vpop.f32.mrf.mxu0
        %v2768 = vadd.f32 0.0, %v2767
        %2769 = vmatmul.f32.gmra.mxu0 %v2655
        %v2770 = vpop.f32.mrf.mxu0
        %v2771 = vadd.f32 0.0, %v2770
        %2772 = vmatmul.f32.gmra.mxu0 %v2658
        %v2773 = vpop.f32.mrf.mxu0
        %v2774 = vadd.f32 0.0, %v2773
        %2775 = vmatmul.f32.gmra.mxu0 %v2661
        %v2776 = vpop.f32.mrf.mxu0
        %v2777 = vadd.f32 0.0, %v2776
        %2778 = vmatmul.f32.gmra.mxu0 %v2664
        %v2779 = vpop.f32.mrf.mxu0
        %v2780 = vadd.f32 0.0, %v2779
        %2781 = vmatmul.f32.gmra.mxu0 %v2667
        %v2782 = vpop.f32.mrf.mxu0
        %v2783 = vadd.f32 0.0, %v2782
        %2784 = vmatmul.f32.gmra.mxu0 %v2670
        %v2785 = vpop.f32.mrf.mxu0
        %v2786 = vadd.f32 0.0, %v2785
        %2787 = vmatmul.f32.gmra.mxu0 %v2673
        %v2788 = vpop.f32.mrf.mxu0
        %v2789 = vadd.f32 0.0, %v2788
        %2790 = vmatmul.f32.gmra.mxu0 %v2676
        %v2791 = vpop.f32.mrf.mxu0
        %v2792 = vadd.f32 0.0, %v2791
        %2793 = vmatmul.f32.gmra.mxu0 %v2679
        %v2794 = vpop.f32.mrf.mxu0
        %v2795 = vadd.f32 0.0, %v2794
        %2796 = vmatmul.f32.gmra.mxu0 %v2682
        %v2797 = vpop.f32.mrf.mxu0
        %v2798 = vadd.f32 0.0, %v2797
        %2799 = vmatmul.f32.gmra.mxu0 %v2685
        %v2800 = vpop.f32.mrf.mxu0
        %v2801 = vadd.f32 0.0, %v2800
        %2802 = vmatmul.f32.gmra.mxu0 %v2688
        %v2803 = vpop.f32.mrf.mxu0
        %v2804 = vadd.f32 0.0, %v2803
        %2805 = vmatmul.f32.gmra.mxu0 %v2691
        %v2806 = vpop.f32.mrf.mxu0
        %v2807 = vadd.f32 0.0, %v2806
        %2808 = vmatmul.f32.gmra.mxu0 %v2694
        %v2809 = vpop.f32.mrf.mxu0
        %v2810 = vadd.f32 0.0, %v2809
        %2811 = vmatmul.f32.gmra.mxu0 %v2697
        %v2812 = vpop.f32.mrf.mxu0
        %v2813 = vadd.f32 0.0, %v2812
        %2814 = vmatmul.f32.gmra.mxu0 %v2700
        %v2815 = vpop.f32.mrf.mxu0
        %v2816 = vadd.f32 0.0, %v2815
        %2817 = vmatmul.f32.gmra.mxu0 %v2703
        %v2818 = vpop.f32.mrf.mxu0
        %v2819 = vadd.f32 0.0, %v2818
        %2820 = vmatmul.f32.gmra.mxu0 %v2706
        %v2821 = vpop.f32.mrf.mxu0
        %v2822 = vadd.f32 0.0, %v2821
        %2823 = vmatmul.f32.gmra.mxu0 %v2709
        %v2824 = vpop.f32.mrf.mxu0
        %v2825 = vadd.f32 0.0, %v2824
        %2826 = vmatmul.f32.gmra.mxu0 %v2712
        %v2827 = vpop.f32.mrf.mxu0
        %v2828 = vadd.f32 0.0, %v2827
        %2829 = vmatmul.f32.gmra.mxu0 %v2715
        %v2830 = vpop.f32.mrf.mxu0
        %v2831 = vadd.f32 0.0, %v2830
        %2832 = vmatmul.f32.gmra.mxu0 %v2718
        %v2833 = vpop.f32.mrf.mxu0
        %v2834 = vadd.f32 0.0, %v2833
        %2835 = vmatmul.f32.gmra.mxu0 %v2721
        %v2836 = vpop.f32.mrf.mxu0
        %v2837 = vadd.f32 0.0, %v2836
        %2838 = vmatmul.f32.gmra.mxu0 %v2724
        %v2839 = vpop.f32.mrf.mxu0
        %v2840 = vadd.f32 0.0, %v2839
        %2841 = vdwg.mxu0
        %v2842 = vadd.f32 %v2532, %v2747
        %v2843 = vadd.f32 %v2533, %v2750
        %v2844 = vadd.f32 %v2534, %v2753
        %v2845 = vadd.f32 %v2535, %v2756
        %v2846 = vadd.f32 %v2536, %v2759
        %v2847 = vadd.f32 %v2537, %v2762
        %v2848 = vadd.f32 %v2538, %v2765
        %v2849 = vadd.f32 %v2539, %v2768
        %v2850 = vadd.f32 %v2540, %v2771
        %v2851 = vadd.f32 %v2541, %v2774
        %v2852 = vadd.f32 %v2542, %v2777
        %v2853 = vadd.f32 %v2543, %v2780
        %v2854 = vadd.f32 %v2544, %v2783
        %v2855 = vadd.f32 %v2545, %v2786
        %v2856 = vadd.f32 %v2546, %v2789
        %v2857 = vadd.f32 %v2547, %v2792
        %v2858 = vadd.f32 %v2548, %v2795
        %v2859 = vadd.f32 %v2549, %v2798
        %v2860 = vadd.f32 %v2550, %v2801
        %v2861 = vadd.f32 %v2551, %v2804
        %v2862 = vadd.f32 %v2552, %v2807
        %v2863 = vadd.f32 %v2553, %v2810
        %v2864 = vadd.f32 %v2554, %v2813
        %v2865 = vadd.f32 %v2555, %v2816
        %v2866 = vadd.f32 %v2556, %v2819
        %v2867 = vadd.f32 %v2557, %v2822
        %v2868 = vadd.f32 %v2558, %v2825
        %v2869 = vadd.f32 %v2559, %v2828
        %v2870 = vadd.f32 %v2560, %v2831
        %v2871 = vadd.f32 %v2561, %v2834
        %v2872 = vadd.f32 %v2562, %v2837
        %v2873 = vadd.f32 %v2563, %v2840
        %v2874 = vld [vmem:[%s221 + $0x21] sm:$0xff]
        %v2875 = vld [vmem:[%s221 + $0x29] sm:$0xff]
        %v2876 = vld [vmem:[%s221 + $0x31] sm:$0xff]
        %v2877 = vld [vmem:[%s221 + $0x39] sm:$0xff]
        %v2878 = vld [vmem:[%s221 + $0x41] sm:$0xff]
        %v2879 = vld [vmem:[%s221 + $0x49] sm:$0xff]
        %v2880 = vld [vmem:[%s221 + $0x51] sm:$0xff]
        %v2881 = vld [vmem:[%s221 + $0x59] sm:$0xff]
        %v2882 = vld [vmem:[%s221 + $0x61] sm:$0xff]
        %v2883 = vld [vmem:[%s221 + $0x69] sm:$0xff]
        %v2884 = vld [vmem:[%s221 + $0x71] sm:$0xff]
        %v2885 = vld [vmem:[%s221 + $0x79] sm:$0xff]
        %v2886 = vld [vmem:[%s221 + $0x81] sm:$0xff]
        %v2887 = vld [vmem:[%s221 + $0x89] sm:$0xff]
        %v2888 = vld [vmem:[%s221 + $0x91] sm:$0xff]
        %v2889 = vld [vmem:[%s221 + $0x99] sm:$0xff]
        %v2890 = vld [vmem:[%s221 + $0xa1] sm:$0xff]
        %v2891 = vld [vmem:[%s221 + $0xa9] sm:$0xff]
        %v2892 = vld [vmem:[%s221 + $0xb1] sm:$0xff]
        %v2893 = vld [vmem:[%s221 + $0xb9] sm:$0xff]
        %v2894 = vld [vmem:[%s221 + $0xc1] sm:$0xff]
        %v2895 = vld [vmem:[%s221 + $0xc9] sm:$0xff]
        %v2896 = vld [vmem:[%s221 + $0xd1] sm:$0xff]
        %v2897 = vld [vmem:[%s221 + $0xd9] sm:$0xff]
        %v2898 = vld [vmem:[%s221 + $0xe1] sm:$0xff]
        %v2899 = vld [vmem:[%s221 + $0xe9] sm:$0xff]
        %v2900 = vld [vmem:[%s221 + $0xf1] sm:$0xff]
        %v2901 = vld [vmem:[%s221 + $0xf9] sm:$0xff]
        %v2902 = vld [vmem:[%s221 + $0x101] sm:$0xff]
        %v2903 = vld [vmem:[%s221 + $0x109] sm:$0xff]
        %v2904 = vld [vmem:[%s221 + $0x111] sm:$0xff]
        %v2905 = vld [vmem:[%s221 + $0x119] sm:$0xff]
        %s2906 = scalar_lea.vmem %s1, 28
        %v2907 = vld [vmem:[%s2906] sm:$0xf]
        %v2909 = vsel %vm866, %v2874, 0
        %v2912 = vsel %vm866, %v2875, 0
        %v2915 = vsel %vm866, %v2876, 0
        %v2918 = vsel %vm866, %v2877, 0
        %v2921 = vsel %vm866, %v2878, 0
        %v2924 = vsel %vm866, %v2879, 0
        %v2927 = vsel %vm866, %v2880, 0
        %v2930 = vsel %vm866, %v2881, 0
        %v2933 = vsel %vm866, %v2882, 0
        %v2936 = vsel %vm866, %v2883, 0
        %v2939 = vsel %vm866, %v2884, 0
        %v2942 = vsel %vm866, %v2885, 0
        %v2945 = vsel %vm866, %v2886, 0
        %v2948 = vsel %vm866, %v2887, 0
        %v2951 = vsel %vm866, %v2888, 0
        %v2954 = vsel %vm866, %v2889, 0
        %v2957 = vsel %vm866, %v2890, 0
        %v2960 = vsel %vm866, %v2891, 0
        %v2963 = vsel %vm866, %v2892, 0
        %v2966 = vsel %vm866, %v2893, 0
        %v2969 = vsel %vm866, %v2894, 0
        %v2972 = vsel %vm866, %v2895, 0
        %v2975 = vsel %vm866, %v2896, 0
        %v2978 = vsel %vm866, %v2897, 0
        %v2981 = vsel %vm866, %v2898, 0
        %v2984 = vsel %vm866, %v2899, 0
        %v2987 = vsel %vm866, %v2900, 0
        %v2990 = vsel %vm866, %v2901, 0
        %v2993 = vsel %vm866, %v2902, 0
        %v2996 = vsel %vm866, %v2903, 0
        %v2999 = vsel %vm866, %v2904, 0
        %v3002 = vsel %vm866, %v2905, 0
        %v3005 = vsel %vm963, %v2907, 0
        %3007 = vmatpush.msra.mxu0 0.0
        %3008 = vmatpush.msra.mxu0 0.0
        %3009 = vmatpush.msra.mxu0 0.0
        %3010 = vmatpush.msra.mxu0 0.0
        %3011 = vmatpush.msra.mxu0 0.0
        %3012 = vmatpush.msra.mxu0 0.0
        %3013 = vmatpush.msra.mxu0 0.0
        %3014 = vmatpush.msra.mxu0 0.0
        %3015 = vmatpush.msra.mxu0 0.0
        %3016 = vmatpush.msra.mxu0 0.0
        %3017 = vmatpush.msra.mxu0 0.0
        %3018 = vmatpush.msra.mxu0 0.0
        %3019 = vmatpush.msra.mxu0 0.0
        %3020 = vmatpush.msra.mxu0 0.0
        %3021 = vmatpush.msra.mxu0 0.0
        %3022 = vmatpush.msra.mxu0 %v3005
        %3023 = vmatmul.f32.gmra.mxu0 %v2909
        %v3024 = vpop.f32.mrf.mxu0
        %v3025 = vadd.f32 0.0, %v3024
        %3026 = vmatmul.f32.gmra.mxu0 %v2912
        %v3027 = vpop.f32.mrf.mxu0
        %v3028 = vadd.f32 0.0, %v3027
        %3029 = vmatmul.f32.gmra.mxu0 %v2915
        %v3030 = vpop.f32.mrf.mxu0
        %v3031 = vadd.f32 0.0, %v3030
        %3032 = vmatmul.f32.gmra.mxu0 %v2918
        %v3033 = vpop.f32.mrf.mxu0
        %v3034 = vadd.f32 0.0, %v3033
        %3035 = vmatmul.f32.gmra.mxu0 %v2921
        %v3036 = vpop.f32.mrf.mxu0
        %v3037 = vadd.f32 0.0, %v3036
        %3038 = vmatmul.f32.gmra.mxu0 %v2924
        %v3039 = vpop.f32.mrf.mxu0
        %v3040 = vadd.f32 0.0, %v3039
        %3041 = vmatmul.f32.gmra.mxu0 %v2927
        %v3042 = vpop.f32.mrf.mxu0
        %v3043 = vadd.f32 0.0, %v3042
        %3044 = vmatmul.f32.gmra.mxu0 %v2930
        %v3045 = vpop.f32.mrf.mxu0
        %v3046 = vadd.f32 0.0, %v3045
        %3047 = vmatmul.f32.gmra.mxu0 %v2933
        %v3048 = vpop.f32.mrf.mxu0
        %v3049 = vadd.f32 0.0, %v3048
        %3050 = vmatmul.f32.gmra.mxu0 %v2936
        %v3051 = vpop.f32.mrf.mxu0
        %v3052 = vadd.f32 0.0, %v3051
        %3053 = vmatmul.f32.gmra.mxu0 %v2939
        %v3054 = vpop.f32.mrf.mxu0
        %v3055 = vadd.f32 0.0, %v3054
        %3056 = vmatmul.f32.gmra.mxu0 %v2942
        %v3057 = vpop.f32.mrf.mxu0
        %v3058 = vadd.f32 0.0, %v3057
        %3059 = vmatmul.f32.gmra.mxu0 %v2945
        %v3060 = vpop.f32.mrf.mxu0
        %v3061 = vadd.f32 0.0, %v3060
        %3062 = vmatmul.f32.gmra.mxu0 %v2948
        %v3063 = vpop.f32.mrf.mxu0
        %v3064 = vadd.f32 0.0, %v3063
        %3065 = vmatmul.f32.gmra.mxu0 %v2951
        %v3066 = vpop.f32.mrf.mxu0
        %v3067 = vadd.f32 0.0, %v3066
        %3068 = vmatmul.f32.gmra.mxu0 %v2954
        %v3069 = vpop.f32.mrf.mxu0
        %v3070 = vadd.f32 0.0, %v3069
        %3071 = vmatmul.f32.gmra.mxu0 %v2957
        %v3072 = vpop.f32.mrf.mxu0
        %v3073 = vadd.f32 0.0, %v3072
        %3074 = vmatmul.f32.gmra.mxu0 %v2960
        %v3075 = vpop.f32.mrf.mxu0
        %v3076 = vadd.f32 0.0, %v3075
        %3077 = vmatmul.f32.gmra.mxu0 %v2963
        %v3078 = vpop.f32.mrf.mxu0
        %v3079 = vadd.f32 0.0, %v3078
        %3080 = vmatmul.f32.gmra.mxu0 %v2966
        %v3081 = vpop.f32.mrf.mxu0
        %v3082 = vadd.f32 0.0, %v3081
        %3083 = vmatmul.f32.gmra.mxu0 %v2969
        %v3084 = vpop.f32.mrf.mxu0
        %v3085 = vadd.f32 0.0, %v3084
        %3086 = vmatmul.f32.gmra.mxu0 %v2972
        %v3087 = vpop.f32.mrf.mxu0
        %v3088 = vadd.f32 0.0, %v3087
        %3089 = vmatmul.f32.gmra.mxu0 %v2975
        %v3090 = vpop.f32.mrf.mxu0
        %v3091 = vadd.f32 0.0, %v3090
        %3092 = vmatmul.f32.gmra.mxu0 %v2978
        %v3093 = vpop.f32.mrf.mxu0
        %v3094 = vadd.f32 0.0, %v3093
        %3095 = vmatmul.f32.gmra.mxu0 %v2981
        %v3096 = vpop.f32.mrf.mxu0
        %v3097 = vadd.f32 0.0, %v3096
        %3098 = vmatmul.f32.gmra.mxu0 %v2984
        %v3099 = vpop.f32.mrf.mxu0
        %v3100 = vadd.f32 0.0, %v3099
        %3101 = vmatmul.f32.gmra.mxu0 %v2987
        %v3102 = vpop.f32.mrf.mxu0
        %v3103 = vadd.f32 0.0, %v3102
        %3104 = vmatmul.f32.gmra.mxu0 %v2990
        %v3105 = vpop.f32.mrf.mxu0
        %v3106 = vadd.f32 0.0, %v3105
        %3107 = vmatmul.f32.gmra.mxu0 %v2993
        %v3108 = vpop.f32.mrf.mxu0
        %v3109 = vadd.f32 0.0, %v3108
        %3110 = vmatmul.f32.gmra.mxu0 %v2996
        %v3111 = vpop.f32.mrf.mxu0
        %v3112 = vadd.f32 0.0, %v3111
        %3113 = vmatmul.f32.gmra.mxu0 %v2999
        %v3114 = vpop.f32.mrf.mxu0
        %v3115 = vadd.f32 0.0, %v3114
        %3116 = vmatmul.f32.gmra.mxu0 %v3002
        %v3117 = vpop.f32.mrf.mxu0
        %v3118 = vadd.f32 0.0, %v3117
        %3119 = vdwg.mxu0
        %v3120 = vadd.f32 %v2842, %v3025
        %v3121 = vadd.f32 %v2843, %v3028
        %v3122 = vadd.f32 %v2844, %v3031
        %v3123 = vadd.f32 %v2845, %v3034
        %v3124 = vadd.f32 %v2846, %v3037
        %v3125 = vadd.f32 %v2847, %v3040
        %v3126 = vadd.f32 %v2848, %v3043
        %v3127 = vadd.f32 %v2849, %v3046
        %v3128 = vadd.f32 %v2850, %v3049
        %v3129 = vadd.f32 %v2851, %v3052
        %v3130 = vadd.f32 %v2852, %v3055
        %v3131 = vadd.f32 %v2853, %v3058
        %v3132 = vadd.f32 %v2854, %v3061
        %v3133 = vadd.f32 %v2855, %v3064
        %v3134 = vadd.f32 %v2856, %v3067
        %v3135 = vadd.f32 %v2857, %v3070
        %v3136 = vadd.f32 %v2858, %v3073
        %v3137 = vadd.f32 %v2859, %v3076
        %v3138 = vadd.f32 %v2860, %v3079
        %v3139 = vadd.f32 %v2861, %v3082
        %v3140 = vadd.f32 %v2862, %v3085
        %v3141 = vadd.f32 %v2863, %v3088
        %v3142 = vadd.f32 %v2864, %v3091
        %v3143 = vadd.f32 %v2865, %v3094
        %v3144 = vadd.f32 %v2866, %v3097
        %v3145 = vadd.f32 %v2867, %v3100
        %v3146 = vadd.f32 %v2868, %v3103
        %v3147 = vadd.f32 %v2869, %v3106
        %v3148 = vadd.f32 %v2870, %v3109
        %v3149 = vadd.f32 %v2871, %v3112
        %v3150 = vadd.f32 %v2872, %v3115
        %v3151 = vadd.f32 %v2873, %v3118
        %v3152 = vld [vmem:[%s221 + $0x22] sm:$0xff]
        %v3153 = vld [vmem:[%s221 + $0x2a] sm:$0xff]
        %v3154 = vld [vmem:[%s221 + $0x32] sm:$0xff]
        %v3155 = vld [vmem:[%s221 + $0x3a] sm:$0xff]
        %v3156 = vld [vmem:[%s221 + $0x42] sm:$0xff]
        %v3157 = vld [vmem:[%s221 + $0x4a] sm:$0xff]
        %v3158 = vld [vmem:[%s221 + $0x52] sm:$0xff]
        %v3159 = vld [vmem:[%s221 + $0x5a] sm:$0xff]
        %v3160 = vld [vmem:[%s221 + $0x62] sm:$0xff]
        %v3161 = vld [vmem:[%s221 + $0x6a] sm:$0xff]
        %v3162 = vld [vmem:[%s221 + $0x72] sm:$0xff]
        %v3163 = vld [vmem:[%s221 + $0x7a] sm:$0xff]
        %v3164 = vld [vmem:[%s221 + $0x82] sm:$0xff]
        %v3165 = vld [vmem:[%s221 + $0x8a] sm:$0xff]
        %v3166 = vld [vmem:[%s221 + $0x92] sm:$0xff]
        %v3167 = vld [vmem:[%s221 + $0x9a] sm:$0xff]
        %v3168 = vld [vmem:[%s221 + $0xa2] sm:$0xff]
        %v3169 = vld [vmem:[%s221 + $0xaa] sm:$0xff]
        %v3170 = vld [vmem:[%s221 + $0xb2] sm:$0xff]
        %v3171 = vld [vmem:[%s221 + $0xba] sm:$0xff]
        %v3172 = vld [vmem:[%s221 + $0xc2] sm:$0xff]
        %v3173 = vld [vmem:[%s221 + $0xca] sm:$0xff]
        %v3174 = vld [vmem:[%s221 + $0xd2] sm:$0xff]
        %v3175 = vld [vmem:[%s221 + $0xda] sm:$0xff]
        %v3176 = vld [vmem:[%s221 + $0xe2] sm:$0xff]
        %v3177 = vld [vmem:[%s221 + $0xea] sm:$0xff]
        %v3178 = vld [vmem:[%s221 + $0xf2] sm:$0xff]
        %v3179 = vld [vmem:[%s221 + $0xfa] sm:$0xff]
        %v3180 = vld [vmem:[%s221 + $0x102] sm:$0xff]
        %v3181 = vld [vmem:[%s221 + $0x10a] sm:$0xff]
        %v3182 = vld [vmem:[%s221 + $0x112] sm:$0xff]
        %v3183 = vld [vmem:[%s221 + $0x11a] sm:$0xff]
        %v3184 = vsel %vm1356, %v3152, 0.0
        %v3185 = vsel %vm1357, %v3153, 0.0
        %v3186 = vsel %vm1358, %v3154, 0.0
        %v3187 = vsel %vm1359, %v3155, 0.0
        %v3188 = vsel %vm1360, %v3156, 0.0
        %v3189 = vsel %vm1361, %v3157, 0.0
        %v3190 = vsel %vm1362, %v3158, 0.0
        %v3191 = vsel %vm1363, %v3159, 0.0
        %v3192 = vsel %vm1364, %v3160, 0.0
        %v3193 = vsel %vm1365, %v3161, 0.0
        %v3194 = vsel %vm1366, %v3162, 0.0
        %v3195 = vsel %vm1367, %v3163, 0.0
        %v3196 = vsel %vm1368, %v3164, 0.0
        %v3197 = vsel %vm1369, %v3165, 0.0
        %v3198 = vsel %vm1370, %v3166, 0.0
        %v3199 = vsel %vm1371, %v3167, 0.0
        %v3200 = vsel %vm1372, %v3168, 0.0
        %v3201 = vsel %vm1373, %v3169, 0.0
        %v3202 = vsel %vm1374, %v3170, 0.0
        %v3203 = vsel %vm1375, %v3171, 0.0
        %v3204 = vsel %vm1376, %v3172, 0.0
        %v3205 = vsel %vm1377, %v3173, 0.0
        %v3206 = vsel %vm1378, %v3174, 0.0
        %v3207 = vsel %vm1379, %v3175, 0.0
        %v3208 = vsel %vm1380, %v3176, 0.0
        %v3209 = vsel %vm1381, %v3177, 0.0
        %v3210 = vsel %vm1382, %v3178, 0.0
        %v3211 = vsel %vm1383, %v3179, 0.0
        %v3212 = vsel %vm1384, %v3180, 0.0
        %v3213 = vsel %vm1385, %v3181, 0.0
        %v3214 = vsel %vm1386, %v3182, 0.0
        %v3215 = vsel %vm1387, %v3183, 0.0
        %s3216 = scalar_lea.vmem %s1, 32
        %v3217 = vld [vmem:[%s3216] sm:$0xf]
        %v3219 = vsel %vm866, %v3184, 0
        %v3222 = vsel %vm866, %v3185, 0
        %v3225 = vsel %vm866, %v3186, 0
        %v3228 = vsel %vm866, %v3187, 0
        %v3231 = vsel %vm866, %v3188, 0
        %v3234 = vsel %vm866, %v3189, 0
        %v3237 = vsel %vm866, %v3190, 0
        %v3240 = vsel %vm866, %v3191, 0
        %v3243 = vsel %vm866, %v3192, 0
        %v3246 = vsel %vm866, %v3193, 0
        %v3249 = vsel %vm866, %v3194, 0
        %v3252 = vsel %vm866, %v3195, 0
        %v3255 = vsel %vm866, %v3196, 0
        %v3258 = vsel %vm866, %v3197, 0
        %v3261 = vsel %vm866, %v3198, 0
        %v3264 = vsel %vm866, %v3199, 0
        %v3267 = vsel %vm866, %v3200, 0
        %v3270 = vsel %vm866, %v3201, 0
        %v3273 = vsel %vm866, %v3202, 0
        %v3276 = vsel %vm866, %v3203, 0
        %v3279 = vsel %vm866, %v3204, 0
        %v3282 = vsel %vm866, %v3205, 0
        %v3285 = vsel %vm866, %v3206, 0
        %v3288 = vsel %vm866, %v3207, 0
        %v3291 = vsel %vm866, %v3208, 0
        %v3294 = vsel %vm866, %v3209, 0
        %v3297 = vsel %vm866, %v3210, 0
        %v3300 = vsel %vm866, %v3211, 0
        %v3303 = vsel %vm866, %v3212, 0
        %v3306 = vsel %vm866, %v3213, 0
        %v3309 = vsel %vm866, %v3214, 0
        %v3312 = vsel %vm866, %v3215, 0
        %v3315 = vsel %vm963, %v3217, 0
        %3317 = vmatpush.msra.mxu0 0.0
        %3318 = vmatpush.msra.mxu0 0.0
        %3319 = vmatpush.msra.mxu0 0.0
        %3320 = vmatpush.msra.mxu0 0.0
        %3321 = vmatpush.msra.mxu0 0.0
        %3322 = vmatpush.msra.mxu0 0.0
        %3323 = vmatpush.msra.mxu0 0.0
        %3324 = vmatpush.msra.mxu0 0.0
        %3325 = vmatpush.msra.mxu0 0.0
        %3326 = vmatpush.msra.mxu0 0.0
        %3327 = vmatpush.msra.mxu0 0.0
        %3328 = vmatpush.msra.mxu0 0.0
        %3329 = vmatpush.msra.mxu0 0.0
        %3330 = vmatpush.msra.mxu0 0.0
        %3331 = vmatpush.msra.mxu0 0.0
        %3332 = vmatpush.msra.mxu0 %v3315
        %3333 = vmatmul.f32.gmra.mxu0 %v3219
        %v3334 = vpop.f32.mrf.mxu0
        %v3335 = vadd.f32 0.0, %v3334
        %3336 = vmatmul.f32.gmra.mxu0 %v3222
        %v3337 = vpop.f32.mrf.mxu0
        %v3338 = vadd.f32 0.0, %v3337
        %3339 = vmatmul.f32.gmra.mxu0 %v3225
        %v3340 = vpop.f32.mrf.mxu0
        %v3341 = vadd.f32 0.0, %v3340
        %3342 = vmatmul.f32.gmra.mxu0 %v3228
        %v3343 = vpop.f32.mrf.mxu0
        %v3344 = vadd.f32 0.0, %v3343
        %3345 = vmatmul.f32.gmra.mxu0 %v3231
        %v3346 = vpop.f32.mrf.mxu0
        %v3347 = vadd.f32 0.0, %v3346
        %3348 = vmatmul.f32.gmra.mxu0 %v3234
        %v3349 = vpop.f32.mrf.mxu0
        %v3350 = vadd.f32 0.0, %v3349
        %3351 = vmatmul.f32.gmra.mxu0 %v3237
        %v3352 = vpop.f32.mrf.mxu0
        %v3353 = vadd.f32 0.0, %v3352
        %3354 = vmatmul.f32.gmra.mxu0 %v3240
        %v3355 = vpop.f32.mrf.mxu0
        %v3356 = vadd.f32 0.0, %v3355
        %3357 = vmatmul.f32.gmra.mxu0 %v3243
        %v3358 = vpop.f32.mrf.mxu0
        %v3359 = vadd.f32 0.0, %v3358
        %3360 = vmatmul.f32.gmra.mxu0 %v3246
        %v3361 = vpop.f32.mrf.mxu0
        %v3362 = vadd.f32 0.0, %v3361
        %3363 = vmatmul.f32.gmra.mxu0 %v3249
        %v3364 = vpop.f32.mrf.mxu0
        %v3365 = vadd.f32 0.0, %v3364
        %3366 = vmatmul.f32.gmra.mxu0 %v3252
        %v3367 = vpop.f32.mrf.mxu0
        %v3368 = vadd.f32 0.0, %v3367
        %3369 = vmatmul.f32.gmra.mxu0 %v3255
        %v3370 = vpop.f32.mrf.mxu0
        %v3371 = vadd.f32 0.0, %v3370
        %3372 = vmatmul.f32.gmra.mxu0 %v3258
        %v3373 = vpop.f32.mrf.mxu0
        %v3374 = vadd.f32 0.0, %v3373
        %3375 = vmatmul.f32.gmra.mxu0 %v3261
        %v3376 = vpop.f32.mrf.mxu0
        %v3377 = vadd.f32 0.0, %v3376
        %3378 = vmatmul.f32.gmra.mxu0 %v3264
        %v3379 = vpop.f32.mrf.mxu0
        %v3380 = vadd.f32 0.0, %v3379
        %3381 = vmatmul.f32.gmra.mxu0 %v3267
        %v3382 = vpop.f32.mrf.mxu0
        %v3383 = vadd.f32 0.0, %v3382
        %3384 = vmatmul.f32.gmra.mxu0 %v3270
        %v3385 = vpop.f32.mrf.mxu0
        %v3386 = vadd.f32 0.0, %v3385
        %3387 = vmatmul.f32.gmra.mxu0 %v3273
        %v3388 = vpop.f32.mrf.mxu0
        %v3389 = vadd.f32 0.0, %v3388
        %3390 = vmatmul.f32.gmra.mxu0 %v3276
        %v3391 = vpop.f32.mrf.mxu0
        %v3392 = vadd.f32 0.0, %v3391
        %3393 = vmatmul.f32.gmra.mxu0 %v3279
        %v3394 = vpop.f32.mrf.mxu0
        %v3395 = vadd.f32 0.0, %v3394
        %3396 = vmatmul.f32.gmra.mxu0 %v3282
        %v3397 = vpop.f32.mrf.mxu0
        %v3398 = vadd.f32 0.0, %v3397
        %3399 = vmatmul.f32.gmra.mxu0 %v3285
        %v3400 = vpop.f32.mrf.mxu0
        %v3401 = vadd.f32 0.0, %v3400
        %3402 = vmatmul.f32.gmra.mxu0 %v3288
        %v3403 = vpop.f32.mrf.mxu0
        %v3404 = vadd.f32 0.0, %v3403
        %3405 = vmatmul.f32.gmra.mxu0 %v3291
        %v3406 = vpop.f32.mrf.mxu0
        %v3407 = vadd.f32 0.0, %v3406
        %3408 = vmatmul.f32.gmra.mxu0 %v3294
        %v3409 = vpop.f32.mrf.mxu0
        %v3410 = vadd.f32 0.0, %v3409
        %3411 = vmatmul.f32.gmra.mxu0 %v3297
        %v3412 = vpop.f32.mrf.mxu0
        %v3413 = vadd.f32 0.0, %v3412
        %3414 = vmatmul.f32.gmra.mxu0 %v3300
        %v3415 = vpop.f32.mrf.mxu0
        %v3416 = vadd.f32 0.0, %v3415
        %3417 = vmatmul.f32.gmra.mxu0 %v3303
        %v3418 = vpop.f32.mrf.mxu0
        %v3419 = vadd.f32 0.0, %v3418
        %3420 = vmatmul.f32.gmra.mxu0 %v3306
        %v3421 = vpop.f32.mrf.mxu0
        %v3422 = vadd.f32 0.0, %v3421
        %3423 = vmatmul.f32.gmra.mxu0 %v3309
        %v3424 = vpop.f32.mrf.mxu0
        %v3425 = vadd.f32 0.0, %v3424
        %3426 = vmatmul.f32.gmra.mxu0 %v3312
        %v3427 = vpop.f32.mrf.mxu0
        %v3428 = vadd.f32 0.0, %v3427
        %3429 = vdwg.mxu0
        %v3430 = vadd.f32 %v3120, %v3335
        %v3431 = vadd.f32 %v3121, %v3338
        %v3432 = vadd.f32 %v3122, %v3341
        %v3433 = vadd.f32 %v3123, %v3344
        %v3434 = vadd.f32 %v3124, %v3347
        %v3435 = vadd.f32 %v3125, %v3350
        %v3436 = vadd.f32 %v3126, %v3353
        %v3437 = vadd.f32 %v3127, %v3356
        %v3438 = vadd.f32 %v3128, %v3359
        %v3439 = vadd.f32 %v3129, %v3362
        %v3440 = vadd.f32 %v3130, %v3365
        %v3441 = vadd.f32 %v3131, %v3368
        %v3442 = vadd.f32 %v3132, %v3371
        %v3443 = vadd.f32 %v3133, %v3374
        %v3444 = vadd.f32 %v3134, %v3377
        %v3445 = vadd.f32 %v3135, %v3380
        %v3446 = vadd.f32 %v3136, %v3383
        %v3447 = vadd.f32 %v3137, %v3386
        %v3448 = vadd.f32 %v3138, %v3389
        %v3449 = vadd.f32 %v3139, %v3392
        %v3450 = vadd.f32 %v3140, %v3395
        %v3451 = vadd.f32 %v3141, %v3398
        %v3452 = vadd.f32 %v3142, %v3401
        %v3453 = vadd.f32 %v3143, %v3404
        %v3454 = vadd.f32 %v3144, %v3407
        %v3455 = vadd.f32 %v3145, %v3410
        %v3456 = vadd.f32 %v3146, %v3413
        %v3457 = vadd.f32 %v3147, %v3416
        %v3458 = vadd.f32 %v3148, %v3419
        %v3459 = vadd.f32 %v3149, %v3422
        %v3460 = vadd.f32 %v3150, %v3425
        %v3461 = vadd.f32 %v3151, %v3428
        %v3462 = vld [vmem:[%s2] sm:$0x1]
        %v3464 = vperm.slane %v3462, 0
        %v3466 = vadd.f32 %v3430, %v3464
        %v3467 = vadd.f32 %v3431, %v3464
        %v3468 = vadd.f32 %v3432, %v3464
        %v3469 = vadd.f32 %v3433, %v3464
        %v3470 = vadd.f32 %v3434, %v3464
        %v3471 = vadd.f32 %v3435, %v3464
        %v3472 = vadd.f32 %v3436, %v3464
        %v3473 = vadd.f32 %v3437, %v3464
        %v3474 = vadd.f32 %v3438, %v3464
        %v3475 = vadd.f32 %v3439, %v3464
        %v3476 = vadd.f32 %v3440, %v3464
        %v3477 = vadd.f32 %v3441, %v3464
        %v3478 = vadd.f32 %v3442, %v3464
        %v3479 = vadd.f32 %v3443, %v3464
        %v3480 = vadd.f32 %v3444, %v3464
        %v3481 = vadd.f32 %v3445, %v3464
        %v3482 = vadd.f32 %v3446, %v3464
        %v3483 = vadd.f32 %v3447, %v3464
        %v3484 = vadd.f32 %v3448, %v3464
        %v3485 = vadd.f32 %v3449, %v3464
        %v3486 = vadd.f32 %v3450, %v3464
        %v3487 = vadd.f32 %v3451, %v3464
        %v3488 = vadd.f32 %v3452, %v3464
        %v3489 = vadd.f32 %v3453, %v3464
        %v3490 = vadd.f32 %v3454, %v3464
        %v3491 = vadd.f32 %v3455, %v3464
        %v3492 = vadd.f32 %v3456, %v3464
        %v3493 = vadd.f32 %v3457, %v3464
        %v3494 = vadd.f32 %v3458, %v3464
        %v3495 = vadd.f32 %v3459, %v3464
        %v3496 = vadd.f32 %v3460, %v3464
        %v3497 = vadd.f32 %v3461, %v3464
        %v3498 = vmax.f32 %v3466, 0.0
        %v3499 = vmax.f32 %v3467, 0.0
        %v3500 = vmax.f32 %v3468, 0.0
        %v3501 = vmax.f32 %v3469, 0.0
        %v3502 = vmax.f32 %v3470, 0.0
        %v3503 = vmax.f32 %v3471, 0.0
        %v3504 = vmax.f32 %v3472, 0.0
        %v3505 = vmax.f32 %v3473, 0.0
        %v3506 = vmax.f32 %v3474, 0.0
        %v3507 = vmax.f32 %v3475, 0.0
        %v3508 = vmax.f32 %v3476, 0.0
        %v3509 = vmax.f32 %v3477, 0.0
        %v3510 = vmax.f32 %v3478, 0.0
        %v3511 = vmax.f32 %v3479, 0.0
        %v3512 = vmax.f32 %v3480, 0.0
        %v3513 = vmax.f32 %v3481, 0.0
        %v3514 = vmax.f32 %v3482, 0.0
        %v3515 = vmax.f32 %v3483, 0.0
        %v3516 = vmax.f32 %v3484, 0.0
        %v3517 = vmax.f32 %v3485, 0.0
        %v3518 = vmax.f32 %v3486, 0.0
        %v3519 = vmax.f32 %v3487, 0.0
        %v3520 = vmax.f32 %v3488, 0.0
        %v3521 = vmax.f32 %v3489, 0.0
        %v3522 = vmax.f32 %v3490, 0.0
        %v3523 = vmax.f32 %v3491, 0.0
        %v3524 = vmax.f32 %v3492, 0.0
        %v3525 = vmax.f32 %v3493, 0.0
        %v3526 = vmax.f32 %v3494, 0.0
        %v3527 = vmax.f32 %v3495, 0.0
        %v3528 = vmax.f32 %v3496, 0.0
        %v3529 = vmax.f32 %v3497, 0.0
        %vm3530 = vcmask 261120
        %3531 = vst.msk [vmem:[#allocation2] sm:$0xff] %vm3530, 0.0
        %3532 = vst.msk [vmem:[#allocation2 + $0x8] sm:$0xff] %vm3530, 0.0
        %vm3533 = vcmask 253952
        %3534 = vst.msk [vmem:[#allocation2 + $0x10] sm:$0x1] %vm3533, 0.0
        %3535 = vst.msk [vmem:[#allocation2 + $0x111] sm:$0xff] %vm3530, 0.0
        %3536 = vst.msk [vmem:[#allocation2 + $0x119] sm:$0xff] %vm3530, 0.0
        %3537 = vst.msk [vmem:[#allocation2 + $0x121] sm:$0x1] %vm3533, 0.0
        %3538 = vst.msk [vmem:[#allocation2 + $0x11] sm:$0xff] %vm3530, %v3498
        %3539 = vst.msk [vmem:[#allocation2 + $0x19] sm:$0xff] %vm3530, %v3499
        %3540 = vst.msk [vmem:[#allocation2 + $0x21] sm:$0xff] %vm3530, %v3500
        %3541 = vst.msk [vmem:[#allocation2 + $0x29] sm:$0xff] %vm3530, %v3501
        %3542 = vst.msk [vmem:[#allocation2 + $0x31] sm:$0xff] %vm3530, %v3502
        %3543 = vst.msk [vmem:[#allocation2 + $0x39] sm:$0xff] %vm3530, %v3503
        %3544 = vst.msk [vmem:[#allocation2 + $0x41] sm:$0xff] %vm3530, %v3504
        %3545 = vst.msk [vmem:[#allocation2 + $0x49] sm:$0xff] %vm3530, %v3505
        %3546 = vst.msk [vmem:[#allocation2 + $0x51] sm:$0xff] %vm3530, %v3506
        %3547 = vst.msk [vmem:[#allocation2 + $0x59] sm:$0xff] %vm3530, %v3507
        %3548 = vst.msk [vmem:[#allocation2 + $0x61] sm:$0xff] %vm3530, %v3508
        %3549 = vst.msk [vmem:[#allocation2 + $0x69] sm:$0xff] %vm3530, %v3509
        %3550 = vst.msk [vmem:[#allocation2 + $0x71] sm:$0xff] %vm3530, %v3510
        %3551 = vst.msk [vmem:[#allocation2 + $0x79] sm:$0xff] %vm3530, %v3511
        %3552 = vst.msk [vmem:[#allocation2 + $0x81] sm:$0xff] %vm3530, %v3512
        %3553 = vst.msk [vmem:[#allocation2 + $0x89] sm:$0xff] %vm3530, %v3513
        %3554 = vst.msk [vmem:[#allocation2 + $0x91] sm:$0xff] %vm3530, %v3514
        %3555 = vst.msk [vmem:[#allocation2 + $0x99] sm:$0xff] %vm3530, %v3515
        %3556 = vst.msk [vmem:[#allocation2 + $0xa1] sm:$0xff] %vm3530, %v3516
        %3557 = vst.msk [vmem:[#allocation2 + $0xa9] sm:$0xff] %vm3530, %v3517
        %3558 = vst.msk [vmem:[#allocation2 + $0xb1] sm:$0xff] %vm3530, %v3518
        %3559 = vst.msk [vmem:[#allocation2 + $0xb9] sm:$0xff] %vm3530, %v3519
        %3560 = vst.msk [vmem:[#allocation2 + $0xc1] sm:$0xff] %vm3530, %v3520
        %3561 = vst.msk [vmem:[#allocation2 + $0xc9] sm:$0xff] %vm3530, %v3521
        %3562 = vst.msk [vmem:[#allocation2 + $0xd1] sm:$0xff] %vm3530, %v3522
        %3563 = vst.msk [vmem:[#allocation2 + $0xd9] sm:$0xff] %vm3530, %v3523
        %3564 = vst.msk [vmem:[#allocation2 + $0xe1] sm:$0xff] %vm3530, %v3524
        %3565 = vst.msk [vmem:[#allocation2 + $0xe9] sm:$0xff] %vm3530, %v3525
        %3566 = vst.msk [vmem:[#allocation2 + $0xf1] sm:$0xff] %vm3530, %v3526
        %3567 = vst.msk [vmem:[#allocation2 + $0xf9] sm:$0xff] %vm3530, %v3527
        %3568 = vst.msk [vmem:[#allocation2 + $0x101] sm:$0xff] %vm3530, %v3528
        %3569 = vst.msk [vmem:[#allocation2 + $0x109] sm:$0xff] %vm3530, %v3529
        %v3570 = vld [vmem:[#allocation2] sm:$0xff]
        %v3571 = vld [vmem:[#allocation2 + $0x8] sm:$0xff]
        %v3572 = vld [vmem:[#allocation2 + $0x10] sm:$0xff]
        %v3573 = vld [vmem:[#allocation2 + $0x18] sm:$0xff]
        %v3574 = vld [vmem:[#allocation2 + $0x20] sm:$0xff]
        %v3575 = vld [vmem:[#allocation2 + $0x28] sm:$0xff]
        %v3576 = vld [vmem:[#allocation2 + $0x30] sm:$0xff]
        %v3577 = vld [vmem:[#allocation2 + $0x38] sm:$0xff]
        %v3578 = vld [vmem:[#allocation2 + $0x40] sm:$0xff]
        %v3579 = vld [vmem:[#allocation2 + $0x48] sm:$0xff]
        %v3580 = vld [vmem:[#allocation2 + $0x50] sm:$0xff]
        %v3581 = vld [vmem:[#allocation2 + $0x58] sm:$0xff]
        %v3582 = vld [vmem:[#allocation2 + $0x60] sm:$0xff]
        %v3583 = vld [vmem:[#allocation2 + $0x68] sm:$0xff]
        %v3584 = vld [vmem:[#allocation2 + $0x70] sm:$0xff]
        %v3585 = vld [vmem:[#allocation2 + $0x78] sm:$0xff]
        %v3586 = vld [vmem:[#allocation2 + $0x80] sm:$0xff]
        %v3587 = vld [vmem:[#allocation2 + $0x88] sm:$0xff]
        %v3588 = vld [vmem:[#allocation2 + $0x90] sm:$0xff]
        %v3589 = vld [vmem:[#allocation2 + $0x98] sm:$0xff]
        %v3590 = vld [vmem:[#allocation2 + $0xa0] sm:$0xff]
        %v3591 = vld [vmem:[#allocation2 + $0xa8] sm:$0xff]
        %v3592 = vld [vmem:[#allocation2 + $0xb0] sm:$0xff]
        %v3593 = vld [vmem:[#allocation2 + $0xb8] sm:$0xff]
        %v3594 = vld [vmem:[#allocation2 + $0xc0] sm:$0xff]
        %v3595 = vld [vmem:[#allocation2 + $0xc8] sm:$0xff]
        %v3596 = vld [vmem:[#allocation2 + $0xd0] sm:$0xff]
        %v3597 = vld [vmem:[#allocation2 + $0xd8] sm:$0xff]
        %v3598 = vld [vmem:[#allocation2 + $0xe0] sm:$0xff]
        %v3599 = vld [vmem:[#allocation2 + $0xe8] sm:$0xff]
        %v3600 = vld [vmem:[#allocation2 + $0xf0] sm:$0xff]
        %v3601 = vld [vmem:[#allocation2 + $0xf8] sm:$0xff]
        %v3602 = vsel %vm767, %v3570, 0.0
        %v3603 = vsel %vm768, %v3571, 0.0
        %v3604 = vsel %vm769, %v3572, 0.0
        %v3605 = vsel %vm770, %v3573, 0.0
        %v3606 = vsel %vm771, %v3574, 0.0
        %v3607 = vsel %vm772, %v3575, 0.0
        %v3608 = vsel %vm773, %v3576, 0.0
        %v3609 = vsel %vm774, %v3577, 0.0
        %v3610 = vsel %vm775, %v3578, 0.0
        %v3611 = vsel %vm776, %v3579, 0.0
        %v3612 = vsel %vm777, %v3580, 0.0
        %v3613 = vsel %vm778, %v3581, 0.0
        %v3614 = vsel %vm779, %v3582, 0.0
        %v3615 = vsel %vm780, %v3583, 0.0
        %v3616 = vsel %vm781, %v3584, 0.0
        %v3617 = vsel %vm782, %v3585, 0.0
        %v3618 = vsel %vm783, %v3586, 0.0
        %v3619 = vsel %vm784, %v3587, 0.0
        %v3620 = vsel %vm785, %v3588, 0.0
        %v3621 = vsel %vm786, %v3589, 0.0
        %v3622 = vsel %vm787, %v3590, 0.0
        %v3623 = vsel %vm788, %v3591, 0.0
        %v3624 = vsel %vm789, %v3592, 0.0
        %v3625 = vsel %vm790, %v3593, 0.0
        %v3626 = vsel %vm791, %v3594, 0.0
        %v3627 = vsel %vm792, %v3595, 0.0
        %v3628 = vsel %vm793, %v3596, 0.0
        %v3629 = vsel %vm794, %v3597, 0.0
        %v3630 = vsel %vm795, %v3598, 0.0
        %v3631 = vsel %vm796, %v3599, 0.0
        %v3632 = vsel %vm797, %v3600, 0.0
        %v3633 = vsel %vm798, %v3601, 0.0
        %v3634 = vld [vmem:[%s3] sm:$0xff]
        %v3635 = vld [vmem:[%s3 + $0x8] sm:$0xff]
        %v3636 = vld [vmem:[%s3 + $0x10] sm:$0xff]
        %v3637 = vld [vmem:[%s3 + $0x18] sm:$0xff]
        %v3638 = vld [vmem:[#allocation2 + $0x1] sm:$0xff]
        %v3639 = vld [vmem:[#allocation2 + $0x9] sm:$0xff]
        %v3640 = vld [vmem:[#allocation2 + $0x11] sm:$0xff]
        %v3641 = vld [vmem:[#allocation2 + $0x19] sm:$0xff]
        %v3642 = vld [vmem:[#allocation2 + $0x21] sm:$0xff]
        %v3643 = vld [vmem:[#allocation2 + $0x29] sm:$0xff]
        %v3644 = vld [vmem:[#allocation2 + $0x31] sm:$0xff]
        %v3645 = vld [vmem:[#allocation2 + $0x39] sm:$0xff]
        %v3646 = vld [vmem:[#allocation2 + $0x41] sm:$0xff]
        %v3647 = vld [vmem:[#allocation2 + $0x49] sm:$0xff]
        %v3648 = vld [vmem:[#allocation2 + $0x51] sm:$0xff]
        %v3649 = vld [vmem:[#allocation2 + $0x59] sm:$0xff]
        %v3650 = vld [vmem:[#allocation2 + $0x61] sm:$0xff]
        %v3651 = vld [vmem:[#allocation2 + $0x69] sm:$0xff]
        %v3652 = vld [vmem:[#allocation2 + $0x71] sm:$0xff]
        %v3653 = vld [vmem:[#allocation2 + $0x79] sm:$0xff]
        %v3654 = vld [vmem:[#allocation2 + $0x81] sm:$0xff]
        %v3655 = vld [vmem:[#allocation2 + $0x89] sm:$0xff]
        %v3656 = vld [vmem:[#allocation2 + $0x91] sm:$0xff]
        %v3657 = vld [vmem:[#allocation2 + $0x99] sm:$0xff]
        %v3658 = vld [vmem:[#allocation2 + $0xa1] sm:$0xff]
        %v3659 = vld [vmem:[#allocation2 + $0xa9] sm:$0xff]
        %v3660 = vld [vmem:[#allocation2 + $0xb1] sm:$0xff]
        %v3661 = vld [vmem:[#allocation2 + $0xb9] sm:$0xff]
        %v3662 = vld [vmem:[#allocation2 + $0xc1] sm:$0xff]
        %v3663 = vld [vmem:[#allocation2 + $0xc9] sm:$0xff]
        %v3664 = vld [vmem:[#allocation2 + $0xd1] sm:$0xff]
        %v3665 = vld [vmem:[#allocation2 + $0xd9] sm:$0xff]
        %v3666 = vld [vmem:[#allocation2 + $0xe1] sm:$0xff]
        %v3667 = vld [vmem:[#allocation2 + $0xe9] sm:$0xff]
        %v3668 = vld [vmem:[#allocation2 + $0xf1] sm:$0xff]
        %v3669 = vld [vmem:[#allocation2 + $0xf9] sm:$0xff]
        %s3670 = scalar_lea.vmem %s3, 32
        %v3671 = vld [vmem:[%s3670] sm:$0xff]
        %v3672 = vld [vmem:[%s3670 + $0x8] sm:$0xff]
        %v3673 = vld [vmem:[%s3670 + $0x10] sm:$0xff]
        %v3674 = vld [vmem:[%s3670 + $0x18] sm:$0xff]
        %v3676 = vsel %vm3530, %v3638, 0
        %v3679 = vsel %vm3530, %v3639, 0
        %v3682 = vsel %vm3530, %v3640, 0
        %v3685 = vsel %vm3530, %v3641, 0
        %v3688 = vsel %vm3530, %v3642, 0
        %v3691 = vsel %vm3530, %v3643, 0
        %v3694 = vsel %vm3530, %v3644, 0
        %v3697 = vsel %vm3530, %v3645, 0
        %v3700 = vsel %vm3530, %v3646, 0
        %v3703 = vsel %vm3530, %v3647, 0
        %v3706 = vsel %vm3530, %v3648, 0
        %v3709 = vsel %vm3530, %v3649, 0
        %v3712 = vsel %vm3530, %v3650, 0
        %v3715 = vsel %vm3530, %v3651, 0
        %v3718 = vsel %vm3530, %v3652, 0
        %v3721 = vsel %vm3530, %v3653, 0
        %v3724 = vsel %vm3530, %v3654, 0
        %v3727 = vsel %vm3530, %v3655, 0
        %v3730 = vsel %vm3530, %v3656, 0
        %v3733 = vsel %vm3530, %v3657, 0
        %v3736 = vsel %vm3530, %v3658, 0
        %v3739 = vsel %vm3530, %v3659, 0
        %v3742 = vsel %vm3530, %v3660, 0
        %v3745 = vsel %vm3530, %v3661, 0
        %v3748 = vsel %vm3530, %v3662, 0
        %v3751 = vsel %vm3530, %v3663, 0
        %v3754 = vsel %vm3530, %v3664, 0
        %v3757 = vsel %vm3530, %v3665, 0
        %v3760 = vsel %vm3530, %v3666, 0
        %v3763 = vsel %vm3530, %v3667, 0
        %v3766 = vsel %vm3530, %v3668, 0
        %v3769 = vsel %vm3530, %v3669, 0
        %3771 = vmatpush.msra.mxu0 0.0
        %3772 = vmatpush.msra.mxu0 0.0
        %3773 = vmatpush.msra.mxu0 0.0
        %3774 = vmatpush.msra.mxu0 0.0
        %3775 = vmatpush.msra.mxu0 0.0
        %3776 = vmatpush.msra.mxu0 0.0
        %3777 = vmatpush.msra.mxu0 0.0
        %3778 = vmatpush.msra.mxu0 0.0
        %3779 = vmatpush.msra.mxu0 0.0
        %3780 = vmatpush.msra.mxu0 0.0
        %3781 = vmatpush.msra.mxu0 0.0
        %3782 = vmatpush.msra.mxu0 0.0
        %3783 = vmatpush.msra.mxu0 %v3674
        %3784 = vmatpush.msra.mxu0 %v3673
        %3785 = vmatpush.msra.mxu0 %v3672
        %3786 = vmatpush.msra.mxu0 %v3671
        %3787 = vmatmul.f32.gmra.mxu0 %v3676
        %v3788 = vpop.f32.mrf.mxu0
        %v3789 = vadd.f32 0.0, %v3788
        %3790 = vmatmul.f32.gmra.mxu0 %v3679
        %v3791 = vpop.f32.mrf.mxu0
        %v3792 = vadd.f32 0.0, %v3791
        %3793 = vmatmul.f32.gmra.mxu0 %v3682
        %v3794 = vpop.f32.mrf.mxu0
        %v3795 = vadd.f32 0.0, %v3794
        %3796 = vmatmul.f32.gmra.mxu0 %v3685
        %v3797 = vpop.f32.mrf.mxu0
        %v3798 = vadd.f32 0.0, %v3797
        %3799 = vmatmul.f32.gmra.mxu0 %v3688
        %v3800 = vpop.f32.mrf.mxu0
        %v3801 = vadd.f32 0.0, %v3800
        %3802 = vmatmul.f32.gmra.mxu0 %v3691
        %v3803 = vpop.f32.mrf.mxu0
        %v3804 = vadd.f32 0.0, %v3803
        %3805 = vmatmul.f32.gmra.mxu0 %v3694
        %v3806 = vpop.f32.mrf.mxu0
        %v3807 = vadd.f32 0.0, %v3806
        %3808 = vmatmul.f32.gmra.mxu0 %v3697
        %v3809 = vpop.f32.mrf.mxu0
        %v3810 = vadd.f32 0.0, %v3809
        %3811 = vmatmul.f32.gmra.mxu0 %v3700
        %v3812 = vpop.f32.mrf.mxu0
        %v3813 = vadd.f32 0.0, %v3812
        %3814 = vmatmul.f32.gmra.mxu0 %v3703
        %v3815 = vpop.f32.mrf.mxu0
        %v3816 = vadd.f32 0.0, %v3815
        %3817 = vmatmul.f32.gmra.mxu0 %v3706
        %v3818 = vpop.f32.mrf.mxu0
        %v3819 = vadd.f32 0.0, %v3818
        %3820 = vmatmul.f32.gmra.mxu0 %v3709
        %v3821 = vpop.f32.mrf.mxu0
        %v3822 = vadd.f32 0.0, %v3821
        %3823 = vmatmul.f32.gmra.mxu0 %v3712
        %v3824 = vpop.f32.mrf.mxu0
        %v3825 = vadd.f32 0.0, %v3824
        %3826 = vmatmul.f32.gmra.mxu0 %v3715
        %v3827 = vpop.f32.mrf.mxu0
        %v3828 = vadd.f32 0.0, %v3827
        %3829 = vmatmul.f32.gmra.mxu0 %v3718
        %v3830 = vpop.f32.mrf.mxu0
        %v3831 = vadd.f32 0.0, %v3830
        %3832 = vmatmul.f32.gmra.mxu0 %v3721
        %v3833 = vpop.f32.mrf.mxu0
        %v3834 = vadd.f32 0.0, %v3833
        %3835 = vmatmul.f32.gmra.mxu0 %v3724
        %v3836 = vpop.f32.mrf.mxu0
        %v3837 = vadd.f32 0.0, %v3836
        %3838 = vmatmul.f32.gmra.mxu0 %v3727
        %v3839 = vpop.f32.mrf.mxu0
        %v3840 = vadd.f32 0.0, %v3839
        %3841 = vmatmul.f32.gmra.mxu0 %v3730
        %v3842 = vpop.f32.mrf.mxu0
        %v3843 = vadd.f32 0.0, %v3842
        %3844 = vmatmul.f32.gmra.mxu0 %v3733
        %v3845 = vpop.f32.mrf.mxu0
        %v3846 = vadd.f32 0.0, %v3845
        %3847 = vmatmul.f32.gmra.mxu0 %v3736
        %v3848 = vpop.f32.mrf.mxu0
        %v3849 = vadd.f32 0.0, %v3848
        %3850 = vmatmul.f32.gmra.mxu0 %v3739
        %v3851 = vpop.f32.mrf.mxu0
        %v3852 = vadd.f32 0.0, %v3851
        %3853 = vmatmul.f32.gmra.mxu0 %v3742
        %v3854 = vpop.f32.mrf.mxu0
        %v3855 = vadd.f32 0.0, %v3854
        %3856 = vmatmul.f32.gmra.mxu0 %v3745
        %v3857 = vpop.f32.mrf.mxu0
        %v3858 = vadd.f32 0.0, %v3857
        %3859 = vmatmul.f32.gmra.mxu0 %v3748
        %v3860 = vpop.f32.mrf.mxu0
        %v3861 = vadd.f32 0.0, %v3860
        %3862 = vmatmul.f32.gmra.mxu0 %v3751
        %v3863 = vpop.f32.mrf.mxu0
        %v3864 = vadd.f32 0.0, %v3863
        %3865 = vmatmul.f32.gmra.mxu0 %v3754
        %v3866 = vpop.f32.mrf.mxu0
        %v3867 = vadd.f32 0.0, %v3866
        %3868 = vmatmul.f32.gmra.mxu0 %v3757
        %v3869 = vpop.f32.mrf.mxu0
        %v3870 = vadd.f32 0.0, %v3869
        %3871 = vmatmul.f32.gmra.mxu0 %v3760
        %v3872 = vpop.f32.mrf.mxu0
        %v3873 = vadd.f32 0.0, %v3872
        %3874 = vmatmul.f32.gmra.mxu0 %v3763
        %v3875 = vpop.f32.mrf.mxu0
        %v3876 = vadd.f32 0.0, %v3875
        %3877 = vmatmul.f32.gmra.mxu0 %v3766
        %v3878 = vpop.f32.mrf.mxu0
        %v3879 = vadd.f32 0.0, %v3878
        %3880 = vmatmul.f32.gmra.mxu0 %v3769
        %v3881 = vpop.f32.mrf.mxu0
        %v3882 = vadd.f32 0.0, %v3881
        %3883 = vdwg.mxu0
        %v3885 = vsel %vm3530, %v3602, 0
        %v3888 = vsel %vm3530, %v3603, 0
        %v3891 = vsel %vm3530, %v3604, 0
        %v3894 = vsel %vm3530, %v3605, 0
        %v3897 = vsel %vm3530, %v3606, 0
        %v3900 = vsel %vm3530, %v3607, 0
        %v3903 = vsel %vm3530, %v3608, 0
        %v3906 = vsel %vm3530, %v3609, 0
        %v3909 = vsel %vm3530, %v3610, 0
        %v3912 = vsel %vm3530, %v3611, 0
        %v3915 = vsel %vm3530, %v3612, 0
        %v3918 = vsel %vm3530, %v3613, 0
        %v3921 = vsel %vm3530, %v3614, 0
        %v3924 = vsel %vm3530, %v3615, 0
        %v3927 = vsel %vm3530, %v3616, 0
        %v3930 = vsel %vm3530, %v3617, 0
        %v3933 = vsel %vm3530, %v3618, 0
        %v3936 = vsel %vm3530, %v3619, 0
        %v3939 = vsel %vm3530, %v3620, 0
        %v3942 = vsel %vm3530, %v3621, 0
        %v3945 = vsel %vm3530, %v3622, 0
        %v3948 = vsel %vm3530, %v3623, 0
        %v3951 = vsel %vm3530, %v3624, 0
        %v3954 = vsel %vm3530, %v3625, 0
        %v3957 = vsel %vm3530, %v3626, 0
        %v3960 = vsel %vm3530, %v3627, 0
        %v3963 = vsel %vm3530, %v3628, 0
        %v3966 = vsel %vm3530, %v3629, 0
        %v3969 = vsel %vm3530, %v3630, 0
        %v3972 = vsel %vm3530, %v3631, 0
        %v3975 = vsel %vm3530, %v3632, 0
        %v3978 = vsel %vm3530, %v3633, 0
        %3980 = vmatpush.msra.mxu0 0.0
        %3981 = vmatpush.msra.mxu0 0.0
        %3982 = vmatpush.msra.mxu0 0.0
        %3983 = vmatpush.msra.mxu0 0.0
        %3984 = vmatpush.msra.mxu0 0.0
        %3985 = vmatpush.msra.mxu0 0.0
        %3986 = vmatpush.msra.mxu0 0.0
        %3987 = vmatpush.msra.mxu0 0.0
        %3988 = vmatpush.msra.mxu0 0.0
        %3989 = vmatpush.msra.mxu0 0.0
        %3990 = vmatpush.msra.mxu0 0.0
        %3991 = vmatpush.msra.mxu0 0.0
        %3992 = vmatpush.msra.mxu0 %v3637
        %3993 = vmatpush.msra.mxu0 %v3636
        %3994 = vmatpush.msra.mxu0 %v3635
        %3995 = vmatpush.msra.mxu0 %v3634
        %3996 = vmatmul.f32.gmra.mxu0 %v3885
        %v3997 = vpop.f32.mrf.mxu0
        %v3998 = vadd.f32 %v3789, %v3997
        %3999 = vmatmul.f32.gmra.mxu0 %v3888
        %v4000 = vpop.f32.mrf.mxu0
        %v4001 = vadd.f32 %v3792, %v4000
        %4002 = vmatmul.f32.gmra.mxu0 %v3891
        %v4003 = vpop.f32.mrf.mxu0
        %v4004 = vadd.f32 %v3795, %v4003
        %4005 = vmatmul.f32.gmra.mxu0 %v3894
        %v4006 = vpop.f32.mrf.mxu0
        %v4007 = vadd.f32 %v3798, %v4006
        %4008 = vmatmul.f32.gmra.mxu0 %v3897
        %v4009 = vpop.f32.mrf.mxu0
        %v4010 = vadd.f32 %v3801, %v4009
        %4011 = vmatmul.f32.gmra.mxu0 %v3900
        %v4012 = vpop.f32.mrf.mxu0
        %v4013 = vadd.f32 %v3804, %v4012
        %4014 = vmatmul.f32.gmra.mxu0 %v3903
        %v4015 = vpop.f32.mrf.mxu0
        %v4016 = vadd.f32 %v3807, %v4015
        %4017 = vmatmul.f32.gmra.mxu0 %v3906
        %v4018 = vpop.f32.mrf.mxu0
        %v4019 = vadd.f32 %v3810, %v4018
        %4020 = vmatmul.f32.gmra.mxu0 %v3909
        %v4021 = vpop.f32.mrf.mxu0
        %v4022 = vadd.f32 %v3813, %v4021
        %4023 = vmatmul.f32.gmra.mxu0 %v3912
        %v4024 = vpop.f32.mrf.mxu0
        %v4025 = vadd.f32 %v3816, %v4024
        %4026 = vmatmul.f32.gmra.mxu0 %v3915
        %v4027 = vpop.f32.mrf.mxu0
        %v4028 = vadd.f32 %v3819, %v4027
        %4029 = vmatmul.f32.gmra.mxu0 %v3918
        %v4030 = vpop.f32.mrf.mxu0
        %v4031 = vadd.f32 %v3822, %v4030
        %4032 = vmatmul.f32.gmra.mxu0 %v3921
        %v4033 = vpop.f32.mrf.mxu0
        %v4034 = vadd.f32 %v3825, %v4033
        %4035 = vmatmul.f32.gmra.mxu0 %v3924
        %v4036 = vpop.f32.mrf.mxu0
        %v4037 = vadd.f32 %v3828, %v4036
        %4038 = vmatmul.f32.gmra.mxu0 %v3927
        %v4039 = vpop.f32.mrf.mxu0
        %v4040 = vadd.f32 %v3831, %v4039
        %4041 = vmatmul.f32.gmra.mxu0 %v3930
        %v4042 = vpop.f32.mrf.mxu0
        %v4043 = vadd.f32 %v3834, %v4042
        %4044 = vmatmul.f32.gmra.mxu0 %v3933
        %v4045 = vpop.f32.mrf.mxu0
        %v4046 = vadd.f32 %v3837, %v4045
        %4047 = vmatmul.f32.gmra.mxu0 %v3936
        %v4048 = vpop.f32.mrf.mxu0
        %v4049 = vadd.f32 %v3840, %v4048
        %4050 = vmatmul.f32.gmra.mxu0 %v3939
        %v4051 = vpop.f32.mrf.mxu0
        %v4052 = vadd.f32 %v3843, %v4051
        %4053 = vmatmul.f32.gmra.mxu0 %v3942
        %v4054 = vpop.f32.mrf.mxu0
        %v4055 = vadd.f32 %v3846, %v4054
        %4056 = vmatmul.f32.gmra.mxu0 %v3945
        %v4057 = vpop.f32.mrf.mxu0
        %v4058 = vadd.f32 %v3849, %v4057
        %4059 = vmatmul.f32.gmra.mxu0 %v3948
        %v4060 = vpop.f32.mrf.mxu0
        %v4061 = vadd.f32 %v3852, %v4060
        %4062 = vmatmul.f32.gmra.mxu0 %v3951
        %v4063 = vpop.f32.mrf.mxu0
        %v4064 = vadd.f32 %v3855, %v4063
        %4065 = vmatmul.f32.gmra.mxu0 %v3954
        %v4066 = vpop.f32.mrf.mxu0
        %v4067 = vadd.f32 %v3858, %v4066
        %4068 = vmatmul.f32.gmra.mxu0 %v3957
        %v4069 = vpop.f32.mrf.mxu0
        %v4070 = vadd.f32 %v3861, %v4069
        %4071 = vmatmul.f32.gmra.mxu0 %v3960
        %v4072 = vpop.f32.mrf.mxu0
        %v4073 = vadd.f32 %v3864, %v4072
        %4074 = vmatmul.f32.gmra.mxu0 %v3963
        %v4075 = vpop.f32.mrf.mxu0
        %v4076 = vadd.f32 %v3867, %v4075
        %4077 = vmatmul.f32.gmra.mxu0 %v3966
        %v4078 = vpop.f32.mrf.mxu0
        %v4079 = vadd.f32 %v3870, %v4078
        %4080 = vmatmul.f32.gmra.mxu0 %v3969
        %v4081 = vpop.f32.mrf.mxu0
        %v4082 = vadd.f32 %v3873, %v4081
        %4083 = vmatmul.f32.gmra.mxu0 %v3972
        %v4084 = vpop.f32.mrf.mxu0
        %v4085 = vadd.f32 %v3876, %v4084
        %4086 = vmatmul.f32.gmra.mxu0 %v3975
        %v4087 = vpop.f32.mrf.mxu0
        %v4088 = vadd.f32 %v3879, %v4087
        %4089 = vmatmul.f32.gmra.mxu0 %v3978
        %v4090 = vpop.f32.mrf.mxu0
        %v4091 = vadd.f32 %v3882, %v4090
        %4092 = vdwg.mxu0
        %v4093 = vld [vmem:[#allocation2 + $0x2] sm:$0xff]
        %v4094 = vld [vmem:[#allocation2 + $0xa] sm:$0xff]
        %v4095 = vld [vmem:[#allocation2 + $0x12] sm:$0xff]
        %v4096 = vld [vmem:[#allocation2 + $0x1a] sm:$0xff]
        %v4097 = vld [vmem:[#allocation2 + $0x22] sm:$0xff]
        %v4098 = vld [vmem:[#allocation2 + $0x2a] sm:$0xff]
        %v4099 = vld [vmem:[#allocation2 + $0x32] sm:$0xff]
        %v4100 = vld [vmem:[#allocation2 + $0x3a] sm:$0xff]
        %v4101 = vld [vmem:[#allocation2 + $0x42] sm:$0xff]
        %v4102 = vld [vmem:[#allocation2 + $0x4a] sm:$0xff]
        %v4103 = vld [vmem:[#allocation2 + $0x52] sm:$0xff]
        %v4104 = vld [vmem:[#allocation2 + $0x5a] sm:$0xff]
        %v4105 = vld [vmem:[#allocation2 + $0x62] sm:$0xff]
        %v4106 = vld [vmem:[#allocation2 + $0x6a] sm:$0xff]
        %v4107 = vld [vmem:[#allocation2 + $0x72] sm:$0xff]
        %v4108 = vld [vmem:[#allocation2 + $0x7a] sm:$0xff]
        %v4109 = vld [vmem:[#allocation2 + $0x82] sm:$0xff]
        %v4110 = vld [vmem:[#allocation2 + $0x8a] sm:$0xff]
        %v4111 = vld [vmem:[#allocation2 + $0x92] sm:$0xff]
        %v4112 = vld [vmem:[#allocation2 + $0x9a] sm:$0xff]
        %v4113 = vld [vmem:[#allocation2 + $0xa2] sm:$0xff]
        %v4114 = vld [vmem:[#allocation2 + $0xaa] sm:$0xff]
        %v4115 = vld [vmem:[#allocation2 + $0xb2] sm:$0xff]
        %v4116 = vld [vmem:[#allocation2 + $0xba] sm:$0xff]
        %v4117 = vld [vmem:[#allocation2 + $0xc2] sm:$0xff]
        %v4118 = vld [vmem:[#allocation2 + $0xca] sm:$0xff]
        %v4119 = vld [vmem:[#allocation2 + $0xd2] sm:$0xff]
        %v4120 = vld [vmem:[#allocation2 + $0xda] sm:$0xff]
        %v4121 = vld [vmem:[#allocation2 + $0xe2] sm:$0xff]
        %v4122 = vld [vmem:[#allocation2 + $0xea] sm:$0xff]
        %v4123 = vld [vmem:[#allocation2 + $0xf2] sm:$0xff]
        %v4124 = vld [vmem:[#allocation2 + $0xfa] sm:$0xff]
        %v4125 = vsel %vm1356, %v4093, 0.0
        %v4126 = vsel %vm1357, %v4094, 0.0
        %v4127 = vsel %vm1358, %v4095, 0.0
        %v4128 = vsel %vm1359, %v4096, 0.0
        %v4129 = vsel %vm1360, %v4097, 0.0
        %v4130 = vsel %vm1361, %v4098, 0.0
        %v4131 = vsel %vm1362, %v4099, 0.0
        %v4132 = vsel %vm1363, %v4100, 0.0
        %v4133 = vsel %vm1364, %v4101, 0.0
        %v4134 = vsel %vm1365, %v4102, 0.0
        %v4135 = vsel %vm1366, %v4103, 0.0
        %v4136 = vsel %vm1367, %v4104, 0.0
        %v4137 = vsel %vm1368, %v4105, 0.0
        %v4138 = vsel %vm1369, %v4106, 0.0
        %v4139 = vsel %vm1370, %v4107, 0.0
        %v4140 = vsel %vm1371, %v4108, 0.0
        %v4141 = vsel %vm1372, %v4109, 0.0
        %v4142 = vsel %vm1373, %v4110, 0.0
        %v4143 = vsel %vm1374, %v4111, 0.0
        %v4144 = vsel %vm1375, %v4112, 0.0
        %v4145 = vsel %vm1376, %v4113, 0.0
        %v4146 = vsel %vm1377, %v4114, 0.0
        %v4147 = vsel %vm1378, %v4115, 0.0
        %v4148 = vsel %vm1379, %v4116, 0.0
        %v4149 = vsel %vm1380, %v4117, 0.0
        %v4150 = vsel %vm1381, %v4118, 0.0
        %v4151 = vsel %vm1382, %v4119, 0.0
        %v4152 = vsel %vm1383, %v4120, 0.0
        %v4153 = vsel %vm1384, %v4121, 0.0
        %v4154 = vsel %vm1385, %v4122, 0.0
        %v4155 = vsel %vm1386, %v4123, 0.0
        %v4156 = vsel %vm1387, %v4124, 0.0
        %s4157 = scalar_lea.vmem %s3, 64
        %v4158 = vld [vmem:[%s4157] sm:$0xff]
        %v4159 = vld [vmem:[%s4157 + $0x8] sm:$0xff]
        %v4160 = vld [vmem:[%s4157 + $0x10] sm:$0xff]
        %v4161 = vld [vmem:[%s4157 + $0x18] sm:$0xff]
        %v4163 = vsel %vm3530, %v4125, 0
        %v4166 = vsel %vm3530, %v4126, 0
        %v4169 = vsel %vm3530, %v4127, 0
        %v4172 = vsel %vm3530, %v4128, 0
        %v4175 = vsel %vm3530, %v4129, 0
        %v4178 = vsel %vm3530, %v4130, 0
        %v4181 = vsel %vm3530, %v4131, 0
        %v4184 = vsel %vm3530, %v4132, 0
        %v4187 = vsel %vm3530, %v4133, 0
        %v4190 = vsel %vm3530, %v4134, 0
        %v4193 = vsel %vm3530, %v4135, 0
        %v4196 = vsel %vm3530, %v4136, 0
        %v4199 = vsel %vm3530, %v4137, 0
        %v4202 = vsel %vm3530, %v4138, 0
        %v4205 = vsel %vm3530, %v4139, 0
        %v4208 = vsel %vm3530, %v4140, 0
        %v4211 = vsel %vm3530, %v4141, 0
        %v4214 = vsel %vm3530, %v4142, 0
        %v4217 = vsel %vm3530, %v4143, 0
        %v4220 = vsel %vm3530, %v4144, 0
        %v4223 = vsel %vm3530, %v4145, 0
        %v4226 = vsel %vm3530, %v4146, 0
        %v4229 = vsel %vm3530, %v4147, 0
        %v4232 = vsel %vm3530, %v4148, 0
        %v4235 = vsel %vm3530, %v4149, 0
        %v4238 = vsel %vm3530, %v4150, 0
        %v4241 = vsel %vm3530, %v4151, 0
        %v4244 = vsel %vm3530, %v4152, 0
        %v4247 = vsel %vm3530, %v4153, 0
        %v4250 = vsel %vm3530, %v4154, 0
        %v4253 = vsel %vm3530, %v4155, 0
        %v4256 = vsel %vm3530, %v4156, 0
        %4258 = vmatpush.msra.mxu0 0.0
        %4259 = vmatpush.msra.mxu0 0.0
        %4260 = vmatpush.msra.mxu0 0.0
        %4261 = vmatpush.msra.mxu0 0.0
        %4262 = vmatpush.msra.mxu0 0.0
        %4263 = vmatpush.msra.mxu0 0.0
        %4264 = vmatpush.msra.mxu0 0.0
        %4265 = vmatpush.msra.mxu0 0.0
        %4266 = vmatpush.msra.mxu0 0.0
        %4267 = vmatpush.msra.mxu0 0.0
        %4268 = vmatpush.msra.mxu0 0.0
        %4269 = vmatpush.msra.mxu0 0.0
        %4270 = vmatpush.msra.mxu0 %v4161
        %4271 = vmatpush.msra.mxu0 %v4160
        %4272 = vmatpush.msra.mxu0 %v4159
        %4273 = vmatpush.msra.mxu0 %v4158
        %4274 = vmatmul.f32.gmra.mxu0 %v4163
        %v4275 = vpop.f32.mrf.mxu0
        %v4276 = vadd.f32 0.0, %v4275
        %4277 = vmatmul.f32.gmra.mxu0 %v4166
        %v4278 = vpop.f32.mrf.mxu0
        %v4279 = vadd.f32 0.0, %v4278
        %4280 = vmatmul.f32.gmra.mxu0 %v4169
        %v4281 = vpop.f32.mrf.mxu0
        %v4282 = vadd.f32 0.0, %v4281
        %4283 = vmatmul.f32.gmra.mxu0 %v4172
        %v4284 = vpop.f32.mrf.mxu0
        %v4285 = vadd.f32 0.0, %v4284
        %4286 = vmatmul.f32.gmra.mxu0 %v4175
        %v4287 = vpop.f32.mrf.mxu0
        %v4288 = vadd.f32 0.0, %v4287
        %4289 = vmatmul.f32.gmra.mxu0 %v4178
        %v4290 = vpop.f32.mrf.mxu0
        %v4291 = vadd.f32 0.0, %v4290
        %4292 = vmatmul.f32.gmra.mxu0 %v4181
        %v4293 = vpop.f32.mrf.mxu0
        %v4294 = vadd.f32 0.0, %v4293
        %4295 = vmatmul.f32.gmra.mxu0 %v4184
        %v4296 = vpop.f32.mrf.mxu0
        %v4297 = vadd.f32 0.0, %v4296
        %4298 = vmatmul.f32.gmra.mxu0 %v4187
        %v4299 = vpop.f32.mrf.mxu0
        %v4300 = vadd.f32 0.0, %v4299
        %4301 = vmatmul.f32.gmra.mxu0 %v4190
        %v4302 = vpop.f32.mrf.mxu0
        %v4303 = vadd.f32 0.0, %v4302
        %4304 = vmatmul.f32.gmra.mxu0 %v4193
        %v4305 = vpop.f32.mrf.mxu0
        %v4306 = vadd.f32 0.0, %v4305
        %4307 = vmatmul.f32.gmra.mxu0 %v4196
        %v4308 = vpop.f32.mrf.mxu0
        %v4309 = vadd.f32 0.0, %v4308
        %4310 = vmatmul.f32.gmra.mxu0 %v4199
        %v4311 = vpop.f32.mrf.mxu0
        %v4312 = vadd.f32 0.0, %v4311
        %4313 = vmatmul.f32.gmra.mxu0 %v4202
        %v4314 = vpop.f32.mrf.mxu0
        %v4315 = vadd.f32 0.0, %v4314
        %4316 = vmatmul.f32.gmra.mxu0 %v4205
        %v4317 = vpop.f32.mrf.mxu0
        %v4318 = vadd.f32 0.0, %v4317
        %4319 = vmatmul.f32.gmra.mxu0 %v4208
        %v4320 = vpop.f32.mrf.mxu0
        %v4321 = vadd.f32 0.0, %v4320
        %4322 = vmatmul.f32.gmra.mxu0 %v4211
        %v4323 = vpop.f32.mrf.mxu0
        %v4324 = vadd.f32 0.0, %v4323
        %4325 = vmatmul.f32.gmra.mxu0 %v4214
        %v4326 = vpop.f32.mrf.mxu0
        %v4327 = vadd.f32 0.0, %v4326
        %4328 = vmatmul.f32.gmra.mxu0 %v4217
        %v4329 = vpop.f32.mrf.mxu0
        %v4330 = vadd.f32 0.0, %v4329
        %4331 = vmatmul.f32.gmra.mxu0 %v4220
        %v4332 = vpop.f32.mrf.mxu0
        %v4333 = vadd.f32 0.0, %v4332
        %4334 = vmatmul.f32.gmra.mxu0 %v4223
        %v4335 = vpop.f32.mrf.mxu0
        %v4336 = vadd.f32 0.0, %v4335
        %4337 = vmatmul.f32.gmra.mxu0 %v4226
        %v4338 = vpop.f32.mrf.mxu0
        %v4339 = vadd.f32 0.0, %v4338
        %4340 = vmatmul.f32.gmra.mxu0 %v4229
        %v4341 = vpop.f32.mrf.mxu0
        %v4342 = vadd.f32 0.0, %v4341
        %4343 = vmatmul.f32.gmra.mxu0 %v4232
        %v4344 = vpop.f32.mrf.mxu0
        %v4345 = vadd.f32 0.0, %v4344
        %4346 = vmatmul.f32.gmra.mxu0 %v4235
        %v4347 = vpop.f32.mrf.mxu0
        %v4348 = vadd.f32 0.0, %v4347
        %4349 = vmatmul.f32.gmra.mxu0 %v4238
        %v4350 = vpop.f32.mrf.mxu0
        %v4351 = vadd.f32 0.0, %v4350
        %4352 = vmatmul.f32.gmra.mxu0 %v4241
        %v4353 = vpop.f32.mrf.mxu0
        %v4354 = vadd.f32 0.0, %v4353
        %4355 = vmatmul.f32.gmra.mxu0 %v4244
        %v4356 = vpop.f32.mrf.mxu0
        %v4357 = vadd.f32 0.0, %v4356
        %4358 = vmatmul.f32.gmra.mxu0 %v4247
        %v4359 = vpop.f32.mrf.mxu0
        %v4360 = vadd.f32 0.0, %v4359
        %4361 = vmatmul.f32.gmra.mxu0 %v4250
        %v4362 = vpop.f32.mrf.mxu0
        %v4363 = vadd.f32 0.0, %v4362
        %4364 = vmatmul.f32.gmra.mxu0 %v4253
        %v4365 = vpop.f32.mrf.mxu0
        %v4366 = vadd.f32 0.0, %v4365
        %4367 = vmatmul.f32.gmra.mxu0 %v4256
        %v4368 = vpop.f32.mrf.mxu0
        %v4369 = vadd.f32 0.0, %v4368
        %4370 = vdwg.mxu0
        %v4371 = vadd.f32 %v3998, %v4276
        %v4372 = vadd.f32 %v4001, %v4279
        %v4373 = vadd.f32 %v4004, %v4282
        %v4374 = vadd.f32 %v4007, %v4285
        %v4375 = vadd.f32 %v4010, %v4288
        %v4376 = vadd.f32 %v4013, %v4291
        %v4377 = vadd.f32 %v4016, %v4294
        %v4378 = vadd.f32 %v4019, %v4297
        %v4379 = vadd.f32 %v4022, %v4300
        %v4380 = vadd.f32 %v4025, %v4303
        %v4381 = vadd.f32 %v4028, %v4306
        %v4382 = vadd.f32 %v4031, %v4309
        %v4383 = vadd.f32 %v4034, %v4312
        %v4384 = vadd.f32 %v4037, %v4315
        %v4385 = vadd.f32 %v4040, %v4318
        %v4386 = vadd.f32 %v4043, %v4321
        %v4387 = vadd.f32 %v4046, %v4324
        %v4388 = vadd.f32 %v4049, %v4327
        %v4389 = vadd.f32 %v4052, %v4330
        %v4390 = vadd.f32 %v4055, %v4333
        %v4391 = vadd.f32 %v4058, %v4336
        %v4392 = vadd.f32 %v4061, %v4339
        %v4393 = vadd.f32 %v4064, %v4342
        %v4394 = vadd.f32 %v4067, %v4345
        %v4395 = vadd.f32 %v4070, %v4348
        %v4396 = vadd.f32 %v4073, %v4351
        %v4397 = vadd.f32 %v4076, %v4354
        %v4398 = vadd.f32 %v4079, %v4357
        %v4399 = vadd.f32 %v4082, %v4360
        %v4400 = vadd.f32 %v4085, %v4363
        %v4401 = vadd.f32 %v4088, %v4366
        %v4402 = vadd.f32 %v4091, %v4369
        %v4403 = vld [vmem:[#allocation2 + $0x10] sm:$0xff]
        %v4404 = vld [vmem:[#allocation2 + $0x18] sm:$0xff]
        %v4405 = vld [vmem:[#allocation2 + $0x20] sm:$0xff]
        %v4406 = vld [vmem:[#allocation2 + $0x28] sm:$0xff]
        %v4407 = vld [vmem:[#allocation2 + $0x30] sm:$0xff]
        %v4408 = vld [vmem:[#allocation2 + $0x38] sm:$0xff]
        %v4409 = vld [vmem:[#allocation2 + $0x40] sm:$0xff]
        %v4410 = vld [vmem:[#allocation2 + $0x48] sm:$0xff]
        %v4411 = vld [vmem:[#allocation2 + $0x50] sm:$0xff]
        %v4412 = vld [vmem:[#allocation2 + $0x58] sm:$0xff]
        %v4413 = vld [vmem:[#allocation2 + $0x60] sm:$0xff]
        %v4414 = vld [vmem:[#allocation2 + $0x68] sm:$0xff]
        %v4415 = vld [vmem:[#allocation2 + $0x70] sm:$0xff]
        %v4416 = vld [vmem:[#allocation2 + $0x78] sm:$0xff]
        %v4417 = vld [vmem:[#allocation2 + $0x80] sm:$0xff]
        %v4418 = vld [vmem:[#allocation2 + $0x88] sm:$0xff]
        %v4419 = vld [vmem:[#allocation2 + $0x90] sm:$0xff]
        %v4420 = vld [vmem:[#allocation2 + $0x98] sm:$0xff]
        %v4421 = vld [vmem:[#allocation2 + $0xa0] sm:$0xff]
        %v4422 = vld [vmem:[#allocation2 + $0xa8] sm:$0xff]
        %v4423 = vld [vmem:[#allocation2 + $0xb0] sm:$0xff]
        %v4424 = vld [vmem:[#allocation2 + $0xb8] sm:$0xff]
        %v4425 = vld [vmem:[#allocation2 + $0xc0] sm:$0xff]
        %v4426 = vld [vmem:[#allocation2 + $0xc8] sm:$0xff]
        %v4427 = vld [vmem:[#allocation2 + $0xd0] sm:$0xff]
        %v4428 = vld [vmem:[#allocation2 + $0xd8] sm:$0xff]
        %v4429 = vld [vmem:[#allocation2 + $0xe0] sm:$0xff]
        %v4430 = vld [vmem:[#allocation2 + $0xe8] sm:$0xff]
        %v4431 = vld [vmem:[#allocation2 + $0xf0] sm:$0xff]
        %v4432 = vld [vmem:[#allocation2 + $0xf8] sm:$0xff]
        %v4433 = vld [vmem:[#allocation2 + $0x100] sm:$0xff]
        %v4434 = vld [vmem:[#allocation2 + $0x108] sm:$0xff]
        %v4435 = vsel %vm767, %v4403, 0.0
        %v4436 = vsel %vm768, %v4404, 0.0
        %v4437 = vsel %vm769, %v4405, 0.0
        %v4438 = vsel %vm770, %v4406, 0.0
        %v4439 = vsel %vm771, %v4407, 0.0
        %v4440 = vsel %vm772, %v4408, 0.0
        %v4441 = vsel %vm773, %v4409, 0.0
        %v4442 = vsel %vm774, %v4410, 0.0
        %v4443 = vsel %vm775, %v4411, 0.0
        %v4444 = vsel %vm776, %v4412, 0.0
        %v4445 = vsel %vm777, %v4413, 0.0
        %v4446 = vsel %vm778, %v4414, 0.0
        %v4447 = vsel %vm779, %v4415, 0.0
        %v4448 = vsel %vm780, %v4416, 0.0
        %v4449 = vsel %vm781, %v4417, 0.0
        %v4450 = vsel %vm782, %v4418, 0.0
        %v4451 = vsel %vm783, %v4419, 0.0
        %v4452 = vsel %vm784, %v4420, 0.0
        %v4453 = vsel %vm785, %v4421, 0.0
        %v4454 = vsel %vm786, %v4422, 0.0
        %v4455 = vsel %vm787, %v4423, 0.0
        %v4456 = vsel %vm788, %v4424, 0.0
        %v4457 = vsel %vm789, %v4425, 0.0
        %v4458 = vsel %vm790, %v4426, 0.0
        %v4459 = vsel %vm791, %v4427, 0.0
        %v4460 = vsel %vm792, %v4428, 0.0
        %v4461 = vsel %vm793, %v4429, 0.0
        %v4462 = vsel %vm794, %v4430, 0.0
        %v4463 = vsel %vm795, %v4431, 0.0
        %v4464 = vsel %vm796, %v4432, 0.0
        %v4465 = vsel %vm797, %v4433, 0.0
        %v4466 = vsel %vm798, %v4434, 0.0
        %s4467 = scalar_lea.vmem %s3, 96
        %v4468 = vld [vmem:[%s4467] sm:$0xff]
        %v4469 = vld [vmem:[%s4467 + $0x8] sm:$0xff]
        %v4470 = vld [vmem:[%s4467 + $0x10] sm:$0xff]
        %v4471 = vld [vmem:[%s4467 + $0x18] sm:$0xff]
        %v4473 = vsel %vm3530, %v4435, 0
        %v4476 = vsel %vm3530, %v4436, 0
        %v4479 = vsel %vm3530, %v4437, 0
        %v4482 = vsel %vm3530, %v4438, 0
        %v4485 = vsel %vm3530, %v4439, 0
        %v4488 = vsel %vm3530, %v4440, 0
        %v4491 = vsel %vm3530, %v4441, 0
        %v4494 = vsel %vm3530, %v4442, 0
        %v4497 = vsel %vm3530, %v4443, 0
        %v4500 = vsel %vm3530, %v4444, 0
        %v4503 = vsel %vm3530, %v4445, 0
        %v4506 = vsel %vm3530, %v4446, 0
        %v4509 = vsel %vm3530, %v4447, 0
        %v4512 = vsel %vm3530, %v4448, 0
        %v4515 = vsel %vm3530, %v4449, 0
        %v4518 = vsel %vm3530, %v4450, 0
        %v4521 = vsel %vm3530, %v4451, 0
        %v4524 = vsel %vm3530, %v4452, 0
        %v4527 = vsel %vm3530, %v4453, 0
        %v4530 = vsel %vm3530, %v4454, 0
        %v4533 = vsel %vm3530, %v4455, 0
        %v4536 = vsel %vm3530, %v4456, 0
        %v4539 = vsel %vm3530, %v4457, 0
        %v4542 = vsel %vm3530, %v4458, 0
        %v4545 = vsel %vm3530, %v4459, 0
        %v4548 = vsel %vm3530, %v4460, 0
        %v4551 = vsel %vm3530, %v4461, 0
        %v4554 = vsel %vm3530, %v4462, 0
        %v4557 = vsel %vm3530, %v4463, 0
        %v4560 = vsel %vm3530, %v4464, 0
        %v4563 = vsel %vm3530, %v4465, 0
        %v4566 = vsel %vm3530, %v4466, 0
        %4568 = vmatpush.msra.mxu0 0.0
        %4569 = vmatpush.msra.mxu0 0.0
        %4570 = vmatpush.msra.mxu0 0.0
        %4571 = vmatpush.msra.mxu0 0.0
        %4572 = vmatpush.msra.mxu0 0.0
        %4573 = vmatpush.msra.mxu0 0.0
        %4574 = vmatpush.msra.mxu0 0.0
        %4575 = vmatpush.msra.mxu0 0.0
        %4576 = vmatpush.msra.mxu0 0.0
        %4577 = vmatpush.msra.mxu0 0.0
        %4578 = vmatpush.msra.mxu0 0.0
        %4579 = vmatpush.msra.mxu0 0.0
        %4580 = vmatpush.msra.mxu0 %v4471
        %4581 = vmatpush.msra.mxu0 %v4470
        %4582 = vmatpush.msra.mxu0 %v4469
        %4583 = vmatpush.msra.mxu0 %v4468
        %4584 = vmatmul.f32.gmra.mxu0 %v4473
        %v4585 = vpop.f32.mrf.mxu0
        %v4586 = vadd.f32 0.0, %v4585
        %4587 = vmatmul.f32.gmra.mxu0 %v4476
        %v4588 = vpop.f32.mrf.mxu0
        %v4589 = vadd.f32 0.0, %v4588
        %4590 = vmatmul.f32.gmra.mxu0 %v4479
        %v4591 = vpop.f32.mrf.mxu0
        %v4592 = vadd.f32 0.0, %v4591
        %4593 = vmatmul.f32.gmra.mxu0 %v4482
        %v4594 = vpop.f32.mrf.mxu0
        %v4595 = vadd.f32 0.0, %v4594
        %4596 = vmatmul.f32.gmra.mxu0 %v4485
        %v4597 = vpop.f32.mrf.mxu0
        %v4598 = vadd.f32 0.0, %v4597
        %4599 = vmatmul.f32.gmra.mxu0 %v4488
        %v4600 = vpop.f32.mrf.mxu0
        %v4601 = vadd.f32 0.0, %v4600
        %4602 = vmatmul.f32.gmra.mxu0 %v4491
        %v4603 = vpop.f32.mrf.mxu0
        %v4604 = vadd.f32 0.0, %v4603
        %4605 = vmatmul.f32.gmra.mxu0 %v4494
        %v4606 = vpop.f32.mrf.mxu0
        %v4607 = vadd.f32 0.0, %v4606
        %4608 = vmatmul.f32.gmra.mxu0 %v4497
        %v4609 = vpop.f32.mrf.mxu0
        %v4610 = vadd.f32 0.0, %v4609
        %4611 = vmatmul.f32.gmra.mxu0 %v4500
        %v4612 = vpop.f32.mrf.mxu0
        %v4613 = vadd.f32 0.0, %v4612
        %4614 = vmatmul.f32.gmra.mxu0 %v4503
        %v4615 = vpop.f32.mrf.mxu0
        %v4616 = vadd.f32 0.0, %v4615
        %4617 = vmatmul.f32.gmra.mxu0 %v4506
        %v4618 = vpop.f32.mrf.mxu0
        %v4619 = vadd.f32 0.0, %v4618
        %4620 = vmatmul.f32.gmra.mxu0 %v4509
        %v4621 = vpop.f32.mrf.mxu0
        %v4622 = vadd.f32 0.0, %v4621
        %4623 = vmatmul.f32.gmra.mxu0 %v4512
        %v4624 = vpop.f32.mrf.mxu0
        %v4625 = vadd.f32 0.0, %v4624
        %4626 = vmatmul.f32.gmra.mxu0 %v4515
        %v4627 = vpop.f32.mrf.mxu0
        %v4628 = vadd.f32 0.0, %v4627
        %4629 = vmatmul.f32.gmra.mxu0 %v4518
        %v4630 = vpop.f32.mrf.mxu0
        %v4631 = vadd.f32 0.0, %v4630
        %4632 = vmatmul.f32.gmra.mxu0 %v4521
        %v4633 = vpop.f32.mrf.mxu0
        %v4634 = vadd.f32 0.0, %v4633
        %4635 = vmatmul.f32.gmra.mxu0 %v4524
        %v4636 = vpop.f32.mrf.mxu0
        %v4637 = vadd.f32 0.0, %v4636
        %4638 = vmatmul.f32.gmra.mxu0 %v4527
        %v4639 = vpop.f32.mrf.mxu0
        %v4640 = vadd.f32 0.0, %v4639
        %4641 = vmatmul.f32.gmra.mxu0 %v4530
        %v4642 = vpop.f32.mrf.mxu0
        %v4643 = vadd.f32 0.0, %v4642
        %4644 = vmatmul.f32.gmra.mxu0 %v4533
        %v4645 = vpop.f32.mrf.mxu0
        %v4646 = vadd.f32 0.0, %v4645
        %4647 = vmatmul.f32.gmra.mxu0 %v4536
        %v4648 = vpop.f32.mrf.mxu0
        %v4649 = vadd.f32 0.0, %v4648
        %4650 = vmatmul.f32.gmra.mxu0 %v4539
        %v4651 = vpop.f32.mrf.mxu0
        %v4652 = vadd.f32 0.0, %v4651
        %4653 = vmatmul.f32.gmra.mxu0 %v4542
        %v4654 = vpop.f32.mrf.mxu0
        %v4655 = vadd.f32 0.0, %v4654
        %4656 = vmatmul.f32.gmra.mxu0 %v4545
        %v4657 = vpop.f32.mrf.mxu0
        %v4658 = vadd.f32 0.0, %v4657
        %4659 = vmatmul.f32.gmra.mxu0 %v4548
        %v4660 = vpop.f32.mrf.mxu0
        %v4661 = vadd.f32 0.0, %v4660
        %4662 = vmatmul.f32.gmra.mxu0 %v4551
        %v4663 = vpop.f32.mrf.mxu0
        %v4664 = vadd.f32 0.0, %v4663
        %4665 = vmatmul.f32.gmra.mxu0 %v4554
        %v4666 = vpop.f32.mrf.mxu0
        %v4667 = vadd.f32 0.0, %v4666
        %4668 = vmatmul.f32.gmra.mxu0 %v4557
        %v4669 = vpop.f32.mrf.mxu0
        %v4670 = vadd.f32 0.0, %v4669
        %4671 = vmatmul.f32.gmra.mxu0 %v4560
        %v4672 = vpop.f32.mrf.mxu0
        %v4673 = vadd.f32 0.0, %v4672
        %4674 = vmatmul.f32.gmra.mxu0 %v4563
        %v4675 = vpop.f32.mrf.mxu0
        %v4676 = vadd.f32 0.0, %v4675
        %4677 = vmatmul.f32.gmra.mxu0 %v4566
        %v4678 = vpop.f32.mrf.mxu0
        %v4679 = vadd.f32 0.0, %v4678
        %4680 = vdwg.mxu0
        %v4681 = vadd.f32 %v4371, %v4586
        %v4682 = vadd.f32 %v4372, %v4589
        %v4683 = vadd.f32 %v4373, %v4592
        %v4684 = vadd.f32 %v4374, %v4595
        %v4685 = vadd.f32 %v4375, %v4598
        %v4686 = vadd.f32 %v4376, %v4601
        %v4687 = vadd.f32 %v4377, %v4604
        %v4688 = vadd.f32 %v4378, %v4607
        %v4689 = vadd.f32 %v4379, %v4610
        %v4690 = vadd.f32 %v4380, %v4613
        %v4691 = vadd.f32 %v4381, %v4616
        %v4692 = vadd.f32 %v4382, %v4619
        %v4693 = vadd.f32 %v4383, %v4622
        %v4694 = vadd.f32 %v4384, %v4625
        %v4695 = vadd.f32 %v4385, %v4628
        %v4696 = vadd.f32 %v4386, %v4631
        %v4697 = vadd.f32 %v4387, %v4634
        %v4698 = vadd.f32 %v4388, %v4637
        %v4699 = vadd.f32 %v4389, %v4640
        %v4700 = vadd.f32 %v4390, %v4643
        %v4701 = vadd.f32 %v4391, %v4646
        %v4702 = vadd.f32 %v4392, %v4649
        %v4703 = vadd.f32 %v4393, %v4652
        %v4704 = vadd.f32 %v4394, %v4655
        %v4705 = vadd.f32 %v4395, %v4658
        %v4706 = vadd.f32 %v4396, %v4661
        %v4707 = vadd.f32 %v4397, %v4664
        %v4708 = vadd.f32 %v4398, %v4667
        %v4709 = vadd.f32 %v4399, %v4670
        %v4710 = vadd.f32 %v4400, %v4673
        %v4711 = vadd.f32 %v4401, %v4676
        %v4712 = vadd.f32 %v4402, %v4679
        %v4713 = vld [vmem:[#allocation2 + $0x11] sm:$0xff]
        %v4714 = vld [vmem:[#allocation2 + $0x19] sm:$0xff]
        %v4715 = vld [vmem:[#allocation2 + $0x21] sm:$0xff]
        %v4716 = vld [vmem:[#allocation2 + $0x29] sm:$0xff]
        %v4717 = vld [vmem:[#allocation2 + $0x31] sm:$0xff]
        %v4718 = vld [vmem:[#allocation2 + $0x39] sm:$0xff]
        %v4719 = vld [vmem:[#allocation2 + $0x41] sm:$0xff]
        %v4720 = vld [vmem:[#allocation2 + $0x49] sm:$0xff]
        %v4721 = vld [vmem:[#allocation2 + $0x51] sm:$0xff]
        %v4722 = vld [vmem:[#allocation2 + $0x59] sm:$0xff]
        %v4723 = vld [vmem:[#allocation2 + $0x61] sm:$0xff]
        %v4724 = vld [vmem:[#allocation2 + $0x69] sm:$0xff]
        %v4725 = vld [vmem:[#allocation2 + $0x71] sm:$0xff]
        %v4726 = vld [vmem:[#allocation2 + $0x79] sm:$0xff]
        %v4727 = vld [vmem:[#allocation2 + $0x81] sm:$0xff]
        %v4728 = vld [vmem:[#allocation2 + $0x89] sm:$0xff]
        %v4729 = vld [vmem:[#allocation2 + $0x91] sm:$0xff]
        %v4730 = vld [vmem:[#allocation2 + $0x99] sm:$0xff]
        %v4731 = vld [vmem:[#allocation2 + $0xa1] sm:$0xff]
        %v4732 = vld [vmem:[#allocation2 + $0xa9] sm:$0xff]
        %v4733 = vld [vmem:[#allocation2 + $0xb1] sm:$0xff]
        %v4734 = vld [vmem:[#allocation2 + $0xb9] sm:$0xff]
        %v4735 = vld [vmem:[#allocation2 + $0xc1] sm:$0xff]
        %v4736 = vld [vmem:[#allocation2 + $0xc9] sm:$0xff]
        %v4737 = vld [vmem:[#allocation2 + $0xd1] sm:$0xff]
        %v4738 = vld [vmem:[#allocation2 + $0xd9] sm:$0xff]
        %v4739 = vld [vmem:[#allocation2 + $0xe1] sm:$0xff]
        %v4740 = vld [vmem:[#allocation2 + $0xe9] sm:$0xff]
        %v4741 = vld [vmem:[#allocation2 + $0xf1] sm:$0xff]
        %v4742 = vld [vmem:[#allocation2 + $0xf9] sm:$0xff]
        %v4743 = vld [vmem:[#allocation2 + $0x101] sm:$0xff]
        %v4744 = vld [vmem:[#allocation2 + $0x109] sm:$0xff]
        %s4745 = scalar_lea.vmem %s3, 128
        %v4746 = vld [vmem:[%s4745] sm:$0xff]
        %v4747 = vld [vmem:[%s4745 + $0x8] sm:$0xff]
        %v4748 = vld [vmem:[%s4745 + $0x10] sm:$0xff]
        %v4749 = vld [vmem:[%s4745 + $0x18] sm:$0xff]
        %v4751 = vsel %vm3530, %v4713, 0
        %v4754 = vsel %vm3530, %v4714, 0
        %v4757 = vsel %vm3530, %v4715, 0
        %v4760 = vsel %vm3530, %v4716, 0
        %v4763 = vsel %vm3530, %v4717, 0
        %v4766 = vsel %vm3530, %v4718, 0
        %v4769 = vsel %vm3530, %v4719, 0
        %v4772 = vsel %vm3530, %v4720, 0
        %v4775 = vsel %vm3530, %v4721, 0
        %v4778 = vsel %vm3530, %v4722, 0
        %v4781 = vsel %vm3530, %v4723, 0
        %v4784 = vsel %vm3530, %v4724, 0
        %v4787 = vsel %vm3530, %v4725, 0
        %v4790 = vsel %vm3530, %v4726, 0
        %v4793 = vsel %vm3530, %v4727, 0
        %v4796 = vsel %vm3530, %v4728, 0
        %v4799 = vsel %vm3530, %v4729, 0
        %v4802 = vsel %vm3530, %v4730, 0
        %v4805 = vsel %vm3530, %v4731, 0
        %v4808 = vsel %vm3530, %v4732, 0
        %v4811 = vsel %vm3530, %v4733, 0
        %v4814 = vsel %vm3530, %v4734, 0
        %v4817 = vsel %vm3530, %v4735, 0
        %v4820 = vsel %vm3530, %v4736, 0
        %v4823 = vsel %vm3530, %v4737, 0
        %v4826 = vsel %vm3530, %v4738, 0
        %v4829 = vsel %vm3530, %v4739, 0
        %v4832 = vsel %vm3530, %v4740, 0
        %v4835 = vsel %vm3530, %v4741, 0
        %v4838 = vsel %vm3530, %v4742, 0
        %v4841 = vsel %vm3530, %v4743, 0
        %v4844 = vsel %vm3530, %v4744, 0
        %4846 = vmatpush.msra.mxu0 0.0
        %4847 = vmatpush.msra.mxu0 0.0
        %4848 = vmatpush.msra.mxu0 0.0
        %4849 = vmatpush.msra.mxu0 0.0
        %4850 = vmatpush.msra.mxu0 0.0
        %4851 = vmatpush.msra.mxu0 0.0
        %4852 = vmatpush.msra.mxu0 0.0
        %4853 = vmatpush.msra.mxu0 0.0
        %4854 = vmatpush.msra.mxu0 0.0
        %4855 = vmatpush.msra.mxu0 0.0
        %4856 = vmatpush.msra.mxu0 0.0
        %4857 = vmatpush.msra.mxu0 0.0
        %4858 = vmatpush.msra.mxu0 %v4749
        %4859 = vmatpush.msra.mxu0 %v4748
        %4860 = vmatpush.msra.mxu0 %v4747
        %4861 = vmatpush.msra.mxu0 %v4746
        %4862 = vmatmul.f32.gmra.mxu0 %v4751
        %v4863 = vpop.f32.mrf.mxu0
        %v4864 = vadd.f32 0.0, %v4863
        %4865 = vmatmul.f32.gmra.mxu0 %v4754
        %v4866 = vpop.f32.mrf.mxu0
        %v4867 = vadd.f32 0.0, %v4866
        %4868 = vmatmul.f32.gmra.mxu0 %v4757
        %v4869 = vpop.f32.mrf.mxu0
        %v4870 = vadd.f32 0.0, %v4869
        %4871 = vmatmul.f32.gmra.mxu0 %v4760
        %v4872 = vpop.f32.mrf.mxu0
        %v4873 = vadd.f32 0.0, %v4872
        %4874 = vmatmul.f32.gmra.mxu0 %v4763
        %v4875 = vpop.f32.mrf.mxu0
        %v4876 = vadd.f32 0.0, %v4875
        %4877 = vmatmul.f32.gmra.mxu0 %v4766
        %v4878 = vpop.f32.mrf.mxu0
        %v4879 = vadd.f32 0.0, %v4878
        %4880 = vmatmul.f32.gmra.mxu0 %v4769
        %v4881 = vpop.f32.mrf.mxu0
        %v4882 = vadd.f32 0.0, %v4881
        %4883 = vmatmul.f32.gmra.mxu0 %v4772
        %v4884 = vpop.f32.mrf.mxu0
        %v4885 = vadd.f32 0.0, %v4884
        %4886 = vmatmul.f32.gmra.mxu0 %v4775
        %v4887 = vpop.f32.mrf.mxu0
        %v4888 = vadd.f32 0.0, %v4887
        %4889 = vmatmul.f32.gmra.mxu0 %v4778
        %v4890 = vpop.f32.mrf.mxu0
        %v4891 = vadd.f32 0.0, %v4890
        %4892 = vmatmul.f32.gmra.mxu0 %v4781
        %v4893 = vpop.f32.mrf.mxu0
        %v4894 = vadd.f32 0.0, %v4893
        %4895 = vmatmul.f32.gmra.mxu0 %v4784
        %v4896 = vpop.f32.mrf.mxu0
        %v4897 = vadd.f32 0.0, %v4896
        %4898 = vmatmul.f32.gmra.mxu0 %v4787
        %v4899 = vpop.f32.mrf.mxu0
        %v4900 = vadd.f32 0.0, %v4899
        %4901 = vmatmul.f32.gmra.mxu0 %v4790
        %v4902 = vpop.f32.mrf.mxu0
        %v4903 = vadd.f32 0.0, %v4902
        %4904 = vmatmul.f32.gmra.mxu0 %v4793
        %v4905 = vpop.f32.mrf.mxu0
        %v4906 = vadd.f32 0.0, %v4905
        %4907 = vmatmul.f32.gmra.mxu0 %v4796
        %v4908 = vpop.f32.mrf.mxu0
        %v4909 = vadd.f32 0.0, %v4908
        %4910 = vmatmul.f32.gmra.mxu0 %v4799
        %v4911 = vpop.f32.mrf.mxu0
        %v4912 = vadd.f32 0.0, %v4911
        %4913 = vmatmul.f32.gmra.mxu0 %v4802
        %v4914 = vpop.f32.mrf.mxu0
        %v4915 = vadd.f32 0.0, %v4914
        %4916 = vmatmul.f32.gmra.mxu0 %v4805
        %v4917 = vpop.f32.mrf.mxu0
        %v4918 = vadd.f32 0.0, %v4917
        %4919 = vmatmul.f32.gmra.mxu0 %v4808
        %v4920 = vpop.f32.mrf.mxu0
        %v4921 = vadd.f32 0.0, %v4920
        %4922 = vmatmul.f32.gmra.mxu0 %v4811
        %v4923 = vpop.f32.mrf.mxu0
        %v4924 = vadd.f32 0.0, %v4923
        %4925 = vmatmul.f32.gmra.mxu0 %v4814
        %v4926 = vpop.f32.mrf.mxu0
        %v4927 = vadd.f32 0.0, %v4926
        %4928 = vmatmul.f32.gmra.mxu0 %v4817
        %v4929 = vpop.f32.mrf.mxu0
        %v4930 = vadd.f32 0.0, %v4929
        %4931 = vmatmul.f32.gmra.mxu0 %v4820
        %v4932 = vpop.f32.mrf.mxu0
        %v4933 = vadd.f32 0.0, %v4932
        %4934 = vmatmul.f32.gmra.mxu0 %v4823
        %v4935 = vpop.f32.mrf.mxu0
        %v4936 = vadd.f32 0.0, %v4935
        %4937 = vmatmul.f32.gmra.mxu0 %v4826
        %v4938 = vpop.f32.mrf.mxu0
        %v4939 = vadd.f32 0.0, %v4938
        %4940 = vmatmul.f32.gmra.mxu0 %v4829
        %v4941 = vpop.f32.mrf.mxu0
        %v4942 = vadd.f32 0.0, %v4941
        %4943 = vmatmul.f32.gmra.mxu0 %v4832
        %v4944 = vpop.f32.mrf.mxu0
        %v4945 = vadd.f32 0.0, %v4944
        %4946 = vmatmul.f32.gmra.mxu0 %v4835
        %v4947 = vpop.f32.mrf.mxu0
        %v4948 = vadd.f32 0.0, %v4947
        %4949 = vmatmul.f32.gmra.mxu0 %v4838
        %v4950 = vpop.f32.mrf.mxu0
        %v4951 = vadd.f32 0.0, %v4950
        %4952 = vmatmul.f32.gmra.mxu0 %v4841
        %v4953 = vpop.f32.mrf.mxu0
        %v4954 = vadd.f32 0.0, %v4953
        %4955 = vmatmul.f32.gmra.mxu0 %v4844
        %v4956 = vpop.f32.mrf.mxu0
        %v4957 = vadd.f32 0.0, %v4956
        %4958 = vdwg.mxu0
        %v4959 = vadd.f32 %v4681, %v4864
        %v4960 = vadd.f32 %v4682, %v4867
        %v4961 = vadd.f32 %v4683, %v4870
        %v4962 = vadd.f32 %v4684, %v4873
        %v4963 = vadd.f32 %v4685, %v4876
        %v4964 = vadd.f32 %v4686, %v4879
        %v4965 = vadd.f32 %v4687, %v4882
        %v4966 = vadd.f32 %v4688, %v4885
        %v4967 = vadd.f32 %v4689, %v4888
        %v4968 = vadd.f32 %v4690, %v4891
        %v4969 = vadd.f32 %v4691, %v4894
        %v4970 = vadd.f32 %v4692, %v4897
        %v4971 = vadd.f32 %v4693, %v4900
        %v4972 = vadd.f32 %v4694, %v4903
        %v4973 = vadd.f32 %v4695, %v4906
        %v4974 = vadd.f32 %v4696, %v4909
        %v4975 = vadd.f32 %v4697, %v4912
        %v4976 = vadd.f32 %v4698, %v4915
        %v4977 = vadd.f32 %v4699, %v4918
        %v4978 = vadd.f32 %v4700, %v4921
        %v4979 = vadd.f32 %v4701, %v4924
        %v4980 = vadd.f32 %v4702, %v4927
        %v4981 = vadd.f32 %v4703, %v4930
        %v4982 = vadd.f32 %v4704, %v4933
        %v4983 = vadd.f32 %v4705, %v4936
        %v4984 = vadd.f32 %v4706, %v4939
        %v4985 = vadd.f32 %v4707, %v4942
        %v4986 = vadd.f32 %v4708, %v4945
        %v4987 = vadd.f32 %v4709, %v4948
        %v4988 = vadd.f32 %v4710, %v4951
        %v4989 = vadd.f32 %v4711, %v4954
        %v4990 = vadd.f32 %v4712, %v4957
        %v4991 = vld [vmem:[#allocation2 + $0x12] sm:$0xff]
        %v4992 = vld [vmem:[#allocation2 + $0x1a] sm:$0xff]
        %v4993 = vld [vmem:[#allocation2 + $0x22] sm:$0xff]
        %v4994 = vld [vmem:[#allocation2 + $0x2a] sm:$0xff]
        %v4995 = vld [vmem:[#allocation2 + $0x32] sm:$0xff]
        %v4996 = vld [vmem:[#allocation2 + $0x3a] sm:$0xff]
        %v4997 = vld [vmem:[#allocation2 + $0x42] sm:$0xff]
        %v4998 = vld [vmem:[#allocation2 + $0x4a] sm:$0xff]
        %v4999 = vld [vmem:[#allocation2 + $0x52] sm:$0xff]
        %v5000 = vld [vmem:[#allocation2 + $0x5a] sm:$0xff]
        %v5001 = vld [vmem:[#allocation2 + $0x62] sm:$0xff]
        %v5002 = vld [vmem:[#allocation2 + $0x6a] sm:$0xff]
        %v5003 = vld [vmem:[#allocation2 + $0x72] sm:$0xff]
        %v5004 = vld [vmem:[#allocation2 + $0x7a] sm:$0xff]
        %v5005 = vld [vmem:[#allocation2 + $0x82] sm:$0xff]
        %v5006 = vld [vmem:[#allocation2 + $0x8a] sm:$0xff]
        %v5007 = vld [vmem:[#allocation2 + $0x92] sm:$0xff]
        %v5008 = vld [vmem:[#allocation2 + $0x9a] sm:$0xff]
        %v5009 = vld [vmem:[#allocation2 + $0xa2] sm:$0xff]
        %v5010 = vld [vmem:[#allocation2 + $0xaa] sm:$0xff]
        %v5011 = vld [vmem:[#allocation2 + $0xb2] sm:$0xff]
        %v5012 = vld [vmem:[#allocation2 + $0xba] sm:$0xff]
        %v5013 = vld [vmem:[#allocation2 + $0xc2] sm:$0xff]
        %v5014 = vld [vmem:[#allocation2 + $0xca] sm:$0xff]
        %v5015 = vld [vmem:[#allocation2 + $0xd2] sm:$0xff]
        %v5016 = vld [vmem:[#allocation2 + $0xda] sm:$0xff]
        %v5017 = vld [vmem:[#allocation2 + $0xe2] sm:$0xff]
        %v5018 = vld [vmem:[#allocation2 + $0xea] sm:$0xff]
        %v5019 = vld [vmem:[#allocation2 + $0xf2] sm:$0xff]
        %v5020 = vld [vmem:[#allocation2 + $0xfa] sm:$0xff]
        %v5021 = vld [vmem:[#allocation2 + $0x102] sm:$0xff]
        %v5022 = vld [vmem:[#allocation2 + $0x10a] sm:$0xff]
        %v5023 = vsel %vm1356, %v4991, 0.0
        %v5024 = vsel %vm1357, %v4992, 0.0
        %v5025 = vsel %vm1358, %v4993, 0.0
        %v5026 = vsel %vm1359, %v4994, 0.0
        %v5027 = vsel %vm1360, %v4995, 0.0
        %v5028 = vsel %vm1361, %v4996, 0.0
        %v5029 = vsel %vm1362, %v4997, 0.0
        %v5030 = vsel %vm1363, %v4998, 0.0
        %v5031 = vsel %vm1364, %v4999, 0.0
        %v5032 = vsel %vm1365, %v5000, 0.0
        %v5033 = vsel %vm1366, %v5001, 0.0
        %v5034 = vsel %vm1367, %v5002, 0.0
        %v5035 = vsel %vm1368, %v5003, 0.0
        %v5036 = vsel %vm1369, %v5004, 0.0
        %v5037 = vsel %vm1370, %v5005, 0.0
        %v5038 = vsel %vm1371, %v5006, 0.0
        %v5039 = vsel %vm1372, %v5007, 0.0
        %v5040 = vsel %vm1373, %v5008, 0.0
        %v5041 = vsel %vm1374, %v5009, 0.0
        %v5042 = vsel %vm1375, %v5010, 0.0
        %v5043 = vsel %vm1376, %v5011, 0.0
        %v5044 = vsel %vm1377, %v5012, 0.0
        %v5045 = vsel %vm1378, %v5013, 0.0
        %v5046 = vsel %vm1379, %v5014, 0.0
        %v5047 = vsel %vm1380, %v5015, 0.0
        %v5048 = vsel %vm1381, %v5016, 0.0
        %v5049 = vsel %vm1382, %v5017, 0.0
        %v5050 = vsel %vm1383, %v5018, 0.0
        %v5051 = vsel %vm1384, %v5019, 0.0
        %v5052 = vsel %vm1385, %v5020, 0.0
        %v5053 = vsel %vm1386, %v5021, 0.0
        %v5054 = vsel %vm1387, %v5022, 0.0
        %s5055 = scalar_lea.vmem %s3, 160
        %v5056 = vld [vmem:[%s5055] sm:$0xff]
        %v5057 = vld [vmem:[%s5055 + $0x8] sm:$0xff]
        %v5058 = vld [vmem:[%s5055 + $0x10] sm:$0xff]
        %v5059 = vld [vmem:[%s5055 + $0x18] sm:$0xff]
        %v5061 = vsel %vm3530, %v5023, 0
        %v5064 = vsel %vm3530, %v5024, 0
        %v5067 = vsel %vm3530, %v5025, 0
        %v5070 = vsel %vm3530, %v5026, 0
        %v5073 = vsel %vm3530, %v5027, 0
        %v5076 = vsel %vm3530, %v5028, 0
        %v5079 = vsel %vm3530, %v5029, 0
        %v5082 = vsel %vm3530, %v5030, 0
        %v5085 = vsel %vm3530, %v5031, 0
        %v5088 = vsel %vm3530, %v5032, 0
        %v5091 = vsel %vm3530, %v5033, 0
        %v5094 = vsel %vm3530, %v5034, 0
        %v5097 = vsel %vm3530, %v5035, 0
        %v5100 = vsel %vm3530, %v5036, 0
        %v5103 = vsel %vm3530, %v5037, 0
        %v5106 = vsel %vm3530, %v5038, 0
        %v5109 = vsel %vm3530, %v5039, 0
        %v5112 = vsel %vm3530, %v5040, 0
        %v5115 = vsel %vm3530, %v5041, 0
        %v5118 = vsel %vm3530, %v5042, 0
        %v5121 = vsel %vm3530, %v5043, 0
        %v5124 = vsel %vm3530, %v5044, 0
        %v5127 = vsel %vm3530, %v5045, 0
        %v5130 = vsel %vm3530, %v5046, 0
        %v5133 = vsel %vm3530, %v5047, 0
        %v5136 = vsel %vm3530, %v5048, 0
        %v5139 = vsel %vm3530, %v5049, 0
        %v5142 = vsel %vm3530, %v5050, 0
        %v5145 = vsel %vm3530, %v5051, 0
        %v5148 = vsel %vm3530, %v5052, 0
        %v5151 = vsel %vm3530, %v5053, 0
        %v5154 = vsel %vm3530, %v5054, 0
        %5156 = vmatpush.msra.mxu0 0.0
        %5157 = vmatpush.msra.mxu0 0.0
        %5158 = vmatpush.msra.mxu0 0.0
        %5159 = vmatpush.msra.mxu0 0.0
        %5160 = vmatpush.msra.mxu0 0.0
        %5161 = vmatpush.msra.mxu0 0.0
        %5162 = vmatpush.msra.mxu0 0.0
        %5163 = vmatpush.msra.mxu0 0.0
        %5164 = vmatpush.msra.mxu0 0.0
        %5165 = vmatpush.msra.mxu0 0.0
        %5166 = vmatpush.msra.mxu0 0.0
        %5167 = vmatpush.msra.mxu0 0.0
        %5168 = vmatpush.msra.mxu0 %v5059
        %5169 = vmatpush.msra.mxu0 %v5058
        %5170 = vmatpush.msra.mxu0 %v5057
        %5171 = vmatpush.msra.mxu0 %v5056
        %5172 = vmatmul.f32.gmra.mxu0 %v5061
        %v5173 = vpop.f32.mrf.mxu0
        %v5174 = vadd.f32 0.0, %v5173
        %5175 = vmatmul.f32.gmra.mxu0 %v5064
        %v5176 = vpop.f32.mrf.mxu0
        %v5177 = vadd.f32 0.0, %v5176
        %5178 = vmatmul.f32.gmra.mxu0 %v5067
        %v5179 = vpop.f32.mrf.mxu0
        %v5180 = vadd.f32 0.0, %v5179
        %5181 = vmatmul.f32.gmra.mxu0 %v5070
        %v5182 = vpop.f32.mrf.mxu0
        %v5183 = vadd.f32 0.0, %v5182
        %5184 = vmatmul.f32.gmra.mxu0 %v5073
        %v5185 = vpop.f32.mrf.mxu0
        %v5186 = vadd.f32 0.0, %v5185
        %5187 = vmatmul.f32.gmra.mxu0 %v5076
        %v5188 = vpop.f32.mrf.mxu0
        %v5189 = vadd.f32 0.0, %v5188
        %5190 = vmatmul.f32.gmra.mxu0 %v5079
        %v5191 = vpop.f32.mrf.mxu0
        %v5192 = vadd.f32 0.0, %v5191
        %5193 = vmatmul.f32.gmra.mxu0 %v5082
        %v5194 = vpop.f32.mrf.mxu0
        %v5195 = vadd.f32 0.0, %v5194
        %5196 = vmatmul.f32.gmra.mxu0 %v5085
        %v5197 = vpop.f32.mrf.mxu0
        %v5198 = vadd.f32 0.0, %v5197
        %5199 = vmatmul.f32.gmra.mxu0 %v5088
        %v5200 = vpop.f32.mrf.mxu0
        %v5201 = vadd.f32 0.0, %v5200
        %5202 = vmatmul.f32.gmra.mxu0 %v5091
        %v5203 = vpop.f32.mrf.mxu0
        %v5204 = vadd.f32 0.0, %v5203
        %5205 = vmatmul.f32.gmra.mxu0 %v5094
        %v5206 = vpop.f32.mrf.mxu0
        %v5207 = vadd.f32 0.0, %v5206
        %5208 = vmatmul.f32.gmra.mxu0 %v5097
        %v5209 = vpop.f32.mrf.mxu0
        %v5210 = vadd.f32 0.0, %v5209
        %5211 = vmatmul.f32.gmra.mxu0 %v5100
        %v5212 = vpop.f32.mrf.mxu0
        %v5213 = vadd.f32 0.0, %v5212
        %5214 = vmatmul.f32.gmra.mxu0 %v5103
        %v5215 = vpop.f32.mrf.mxu0
        %v5216 = vadd.f32 0.0, %v5215
        %5217 = vmatmul.f32.gmra.mxu0 %v5106
        %v5218 = vpop.f32.mrf.mxu0
        %v5219 = vadd.f32 0.0, %v5218
        %5220 = vmatmul.f32.gmra.mxu0 %v5109
        %v5221 = vpop.f32.mrf.mxu0
        %v5222 = vadd.f32 0.0, %v5221
        %5223 = vmatmul.f32.gmra.mxu0 %v5112
        %v5224 = vpop.f32.mrf.mxu0
        %v5225 = vadd.f32 0.0, %v5224
        %5226 = vmatmul.f32.gmra.mxu0 %v5115
        %v5227 = vpop.f32.mrf.mxu0
        %v5228 = vadd.f32 0.0, %v5227
        %5229 = vmatmul.f32.gmra.mxu0 %v5118
        %v5230 = vpop.f32.mrf.mxu0
        %v5231 = vadd.f32 0.0, %v5230
        %5232 = vmatmul.f32.gmra.mxu0 %v5121
        %v5233 = vpop.f32.mrf.mxu0
        %v5234 = vadd.f32 0.0, %v5233
        %5235 = vmatmul.f32.gmra.mxu0 %v5124
        %v5236 = vpop.f32.mrf.mxu0
        %v5237 = vadd.f32 0.0, %v5236
        %5238 = vmatmul.f32.gmra.mxu0 %v5127
        %v5239 = vpop.f32.mrf.mxu0
        %v5240 = vadd.f32 0.0, %v5239
        %5241 = vmatmul.f32.gmra.mxu0 %v5130
        %v5242 = vpop.f32.mrf.mxu0
        %v5243 = vadd.f32 0.0, %v5242
        %5244 = vmatmul.f32.gmra.mxu0 %v5133
        %v5245 = vpop.f32.mrf.mxu0
        %v5246 = vadd.f32 0.0, %v5245
        %5247 = vmatmul.f32.gmra.mxu0 %v5136
        %v5248 = vpop.f32.mrf.mxu0
        %v5249 = vadd.f32 0.0, %v5248
        %5250 = vmatmul.f32.gmra.mxu0 %v5139
        %v5251 = vpop.f32.mrf.mxu0
        %v5252 = vadd.f32 0.0, %v5251
        %5253 = vmatmul.f32.gmra.mxu0 %v5142
        %v5254 = vpop.f32.mrf.mxu0
        %v5255 = vadd.f32 0.0, %v5254
        %5256 = vmatmul.f32.gmra.mxu0 %v5145
        %v5257 = vpop.f32.mrf.mxu0
        %v5258 = vadd.f32 0.0, %v5257
        %5259 = vmatmul.f32.gmra.mxu0 %v5148
        %v5260 = vpop.f32.mrf.mxu0
        %v5261 = vadd.f32 0.0, %v5260
        %5262 = vmatmul.f32.gmra.mxu0 %v5151
        %v5263 = vpop.f32.mrf.mxu0
        %v5264 = vadd.f32 0.0, %v5263
        %5265 = vmatmul.f32.gmra.mxu0 %v5154
        %v5266 = vpop.f32.mrf.mxu0
        %v5267 = vadd.f32 0.0, %v5266
        %5268 = vdwg.mxu0
        %v5269 = vadd.f32 %v4959, %v5174
        %v5270 = vadd.f32 %v4960, %v5177
        %v5271 = vadd.f32 %v4961, %v5180
        %v5272 = vadd.f32 %v4962, %v5183
        %v5273 = vadd.f32 %v4963, %v5186
        %v5274 = vadd.f32 %v4964, %v5189
        %v5275 = vadd.f32 %v4965, %v5192
        %v5276 = vadd.f32 %v4966, %v5195
        %v5277 = vadd.f32 %v4967, %v5198
        %v5278 = vadd.f32 %v4968, %v5201
        %v5279 = vadd.f32 %v4969, %v5204
        %v5280 = vadd.f32 %v4970, %v5207
        %v5281 = vadd.f32 %v4971, %v5210
        %v5282 = vadd.f32 %v4972, %v5213
        %v5283 = vadd.f32 %v4973, %v5216
        %v5284 = vadd.f32 %v4974, %v5219
        %v5285 = vadd.f32 %v4975, %v5222
        %v5286 = vadd.f32 %v4976, %v5225
        %v5287 = vadd.f32 %v4977, %v5228
        %v5288 = vadd.f32 %v4978, %v5231
        %v5289 = vadd.f32 %v4979, %v5234
        %v5290 = vadd.f32 %v4980, %v5237
        %v5291 = vadd.f32 %v4981, %v5240
        %v5292 = vadd.f32 %v4982, %v5243
        %v5293 = vadd.f32 %v4983, %v5246
        %v5294 = vadd.f32 %v4984, %v5249
        %v5295 = vadd.f32 %v4985, %v5252
        %v5296 = vadd.f32 %v4986, %v5255
        %v5297 = vadd.f32 %v4987, %v5258
        %v5298 = vadd.f32 %v4988, %v5261
        %v5299 = vadd.f32 %v4989, %v5264
        %v5300 = vadd.f32 %v4990, %v5267
        %v5301 = vld [vmem:[#allocation2 + $0x20] sm:$0xff]
        %v5302 = vld [vmem:[#allocation2 + $0x28] sm:$0xff]
        %v5303 = vld [vmem:[#allocation2 + $0x30] sm:$0xff]
        %v5304 = vld [vmem:[#allocation2 + $0x38] sm:$0xff]
        %v5305 = vld [vmem:[#allocation2 + $0x40] sm:$0xff]
        %v5306 = vld [vmem:[#allocation2 + $0x48] sm:$0xff]
        %v5307 = vld [vmem:[#allocation2 + $0x50] sm:$0xff]
        %v5308 = vld [vmem:[#allocation2 + $0x58] sm:$0xff]
        %v5309 = vld [vmem:[#allocation2 + $0x60] sm:$0xff]
        %v5310 = vld [vmem:[#allocation2 + $0x68] sm:$0xff]
        %v5311 = vld [vmem:[#allocation2 + $0x70] sm:$0xff]
        %v5312 = vld [vmem:[#allocation2 + $0x78] sm:$0xff]
        %v5313 = vld [vmem:[#allocation2 + $0x80] sm:$0xff]
        %v5314 = vld [vmem:[#allocation2 + $0x88] sm:$0xff]
        %v5315 = vld [vmem:[#allocation2 + $0x90] sm:$0xff]
        %v5316 = vld [vmem:[#allocation2 + $0x98] sm:$0xff]
        %v5317 = vld [vmem:[#allocation2 + $0xa0] sm:$0xff]
        %v5318 = vld [vmem:[#allocation2 + $0xa8] sm:$0xff]
        %v5319 = vld [vmem:[#allocation2 + $0xb0] sm:$0xff]
        %v5320 = vld [vmem:[#allocation2 + $0xb8] sm:$0xff]
        %v5321 = vld [vmem:[#allocation2 + $0xc0] sm:$0xff]
        %v5322 = vld [vmem:[#allocation2 + $0xc8] sm:$0xff]
        %v5323 = vld [vmem:[#allocation2 + $0xd0] sm:$0xff]
        %v5324 = vld [vmem:[#allocation2 + $0xd8] sm:$0xff]
        %v5325 = vld [vmem:[#allocation2 + $0xe0] sm:$0xff]
        %v5326 = vld [vmem:[#allocation2 + $0xe8] sm:$0xff]
        %v5327 = vld [vmem:[#allocation2 + $0xf0] sm:$0xff]
        %v5328 = vld [vmem:[#allocation2 + $0xf8] sm:$0xff]
        %v5329 = vld [vmem:[#allocation2 + $0x100] sm:$0xff]
        %v5330 = vld [vmem:[#allocation2 + $0x108] sm:$0xff]
        %v5331 = vld [vmem:[#allocation2 + $0x110] sm:$0xff]
        %v5332 = vld [vmem:[#allocation2 + $0x118] sm:$0xff]
        %v5333 = vsel %vm767, %v5301, 0.0
        %v5334 = vsel %vm768, %v5302, 0.0
        %v5335 = vsel %vm769, %v5303, 0.0
        %v5336 = vsel %vm770, %v5304, 0.0
        %v5337 = vsel %vm771, %v5305, 0.0
        %v5338 = vsel %vm772, %v5306, 0.0
        %v5339 = vsel %vm773, %v5307, 0.0
        %v5340 = vsel %vm774, %v5308, 0.0
        %v5341 = vsel %vm775, %v5309, 0.0
        %v5342 = vsel %vm776, %v5310, 0.0
        %v5343 = vsel %vm777, %v5311, 0.0
        %v5344 = vsel %vm778, %v5312, 0.0
        %v5345 = vsel %vm779, %v5313, 0.0
        %v5346 = vsel %vm780, %v5314, 0.0
        %v5347 = vsel %vm781, %v5315, 0.0
        %v5348 = vsel %vm782, %v5316, 0.0
        %v5349 = vsel %vm783, %v5317, 0.0
        %v5350 = vsel %vm784, %v5318, 0.0
        %v5351 = vsel %vm785, %v5319, 0.0
        %v5352 = vsel %vm786, %v5320, 0.0
        %v5353 = vsel %vm787, %v5321, 0.0
        %v5354 = vsel %vm788, %v5322, 0.0
        %v5355 = vsel %vm789, %v5323, 0.0
        %v5356 = vsel %vm790, %v5324, 0.0
        %v5357 = vsel %vm791, %v5325, 0.0
        %v5358 = vsel %vm792, %v5326, 0.0
        %v5359 = vsel %vm793, %v5327, 0.0
        %v5360 = vsel %vm794, %v5328, 0.0
        %v5361 = vsel %vm795, %v5329, 0.0
        %v5362 = vsel %vm796, %v5330, 0.0
        %v5363 = vsel %vm797, %v5331, 0.0
        %v5364 = vsel %vm798, %v5332, 0.0
        %s5365 = scalar_lea.vmem %s3, 192
        %v5366 = vld [vmem:[%s5365] sm:$0xff]
        %v5367 = vld [vmem:[%s5365 + $0x8] sm:$0xff]
        %v5368 = vld [vmem:[%s5365 + $0x10] sm:$0xff]
        %v5369 = vld [vmem:[%s5365 + $0x18] sm:$0xff]
        %v5371 = vsel %vm3530, %v5333, 0
        %v5374 = vsel %vm3530, %v5334, 0
        %v5377 = vsel %vm3530, %v5335, 0
        %v5380 = vsel %vm3530, %v5336, 0
        %v5383 = vsel %vm3530, %v5337, 0
        %v5386 = vsel %vm3530, %v5338, 0
        %v5389 = vsel %vm3530, %v5339, 0
        %v5392 = vsel %vm3530, %v5340, 0
        %v5395 = vsel %vm3530, %v5341, 0
        %v5398 = vsel %vm3530, %v5342, 0
        %v5401 = vsel %vm3530, %v5343, 0
        %v5404 = vsel %vm3530, %v5344, 0
        %v5407 = vsel %vm3530, %v5345, 0
        %v5410 = vsel %vm3530, %v5346, 0
        %v5413 = vsel %vm3530, %v5347, 0
        %v5416 = vsel %vm3530, %v5348, 0
        %v5419 = vsel %vm3530, %v5349, 0
        %v5422 = vsel %vm3530, %v5350, 0
        %v5425 = vsel %vm3530, %v5351, 0
        %v5428 = vsel %vm3530, %v5352, 0
        %v5431 = vsel %vm3530, %v5353, 0
        %v5434 = vsel %vm3530, %v5354, 0
        %v5437 = vsel %vm3530, %v5355, 0
        %v5440 = vsel %vm3530, %v5356, 0
        %v5443 = vsel %vm3530, %v5357, 0
        %v5446 = vsel %vm3530, %v5358, 0
        %v5449 = vsel %vm3530, %v5359, 0
        %v5452 = vsel %vm3530, %v5360, 0
        %v5455 = vsel %vm3530, %v5361, 0
        %v5458 = vsel %vm3530, %v5362, 0
        %v5461 = vsel %vm3530, %v5363, 0
        %v5464 = vsel %vm3530, %v5364, 0
        %5466 = vmatpush.msra.mxu0 0.0
        %5467 = vmatpush.msra.mxu0 0.0
        %5468 = vmatpush.msra.mxu0 0.0
        %5469 = vmatpush.msra.mxu0 0.0
        %5470 = vmatpush.msra.mxu0 0.0
        %5471 = vmatpush.msra.mxu0 0.0
        %5472 = vmatpush.msra.mxu0 0.0
        %5473 = vmatpush.msra.mxu0 0.0
        %5474 = vmatpush.msra.mxu0 0.0
        %5475 = vmatpush.msra.mxu0 0.0
        %5476 = vmatpush.msra.mxu0 0.0
        %5477 = vmatpush.msra.mxu0 0.0
        %5478 = vmatpush.msra.mxu0 %v5369
        %5479 = vmatpush.msra.mxu0 %v5368
        %5480 = vmatpush.msra.mxu0 %v5367
        %5481 = vmatpush.msra.mxu0 %v5366
        %5482 = vmatmul.f32.gmra.mxu0 %v5371
        %v5483 = vpop.f32.mrf.mxu0
        %v5484 = vadd.f32 0.0, %v5483
        %5485 = vmatmul.f32.gmra.mxu0 %v5374
        %v5486 = vpop.f32.mrf.mxu0
        %v5487 = vadd.f32 0.0, %v5486
        %5488 = vmatmul.f32.gmra.mxu0 %v5377
        %v5489 = vpop.f32.mrf.mxu0
        %v5490 = vadd.f32 0.0, %v5489
        %5491 = vmatmul.f32.gmra.mxu0 %v5380
        %v5492 = vpop.f32.mrf.mxu0
        %v5493 = vadd.f32 0.0, %v5492
        %5494 = vmatmul.f32.gmra.mxu0 %v5383
        %v5495 = vpop.f32.mrf.mxu0
        %v5496 = vadd.f32 0.0, %v5495
        %5497 = vmatmul.f32.gmra.mxu0 %v5386
        %v5498 = vpop.f32.mrf.mxu0
        %v5499 = vadd.f32 0.0, %v5498
        %5500 = vmatmul.f32.gmra.mxu0 %v5389
        %v5501 = vpop.f32.mrf.mxu0
        %v5502 = vadd.f32 0.0, %v5501
        %5503 = vmatmul.f32.gmra.mxu0 %v5392
        %v5504 = vpop.f32.mrf.mxu0
        %v5505 = vadd.f32 0.0, %v5504
        %5506 = vmatmul.f32.gmra.mxu0 %v5395
        %v5507 = vpop.f32.mrf.mxu0
        %v5508 = vadd.f32 0.0, %v5507
        %5509 = vmatmul.f32.gmra.mxu0 %v5398
        %v5510 = vpop.f32.mrf.mxu0
        %v5511 = vadd.f32 0.0, %v5510
        %5512 = vmatmul.f32.gmra.mxu0 %v5401
        %v5513 = vpop.f32.mrf.mxu0
        %v5514 = vadd.f32 0.0, %v5513
        %5515 = vmatmul.f32.gmra.mxu0 %v5404
        %v5516 = vpop.f32.mrf.mxu0
        %v5517 = vadd.f32 0.0, %v5516
        %5518 = vmatmul.f32.gmra.mxu0 %v5407
        %v5519 = vpop.f32.mrf.mxu0
        %v5520 = vadd.f32 0.0, %v5519
        %5521 = vmatmul.f32.gmra.mxu0 %v5410
        %v5522 = vpop.f32.mrf.mxu0
        %v5523 = vadd.f32 0.0, %v5522
        %5524 = vmatmul.f32.gmra.mxu0 %v5413
        %v5525 = vpop.f32.mrf.mxu0
        %v5526 = vadd.f32 0.0, %v5525
        %5527 = vmatmul.f32.gmra.mxu0 %v5416
        %v5528 = vpop.f32.mrf.mxu0
        %v5529 = vadd.f32 0.0, %v5528
        %5530 = vmatmul.f32.gmra.mxu0 %v5419
        %v5531 = vpop.f32.mrf.mxu0
        %v5532 = vadd.f32 0.0, %v5531
        %5533 = vmatmul.f32.gmra.mxu0 %v5422
        %v5534 = vpop.f32.mrf.mxu0
        %v5535 = vadd.f32 0.0, %v5534
        %5536 = vmatmul.f32.gmra.mxu0 %v5425
        %v5537 = vpop.f32.mrf.mxu0
        %v5538 = vadd.f32 0.0, %v5537
        %5539 = vmatmul.f32.gmra.mxu0 %v5428
        %v5540 = vpop.f32.mrf.mxu0
        %v5541 = vadd.f32 0.0, %v5540
        %5542 = vmatmul.f32.gmra.mxu0 %v5431
        %v5543 = vpop.f32.mrf.mxu0
        %v5544 = vadd.f32 0.0, %v5543
        %5545 = vmatmul.f32.gmra.mxu0 %v5434
        %v5546 = vpop.f32.mrf.mxu0
        %v5547 = vadd.f32 0.0, %v5546
        %5548 = vmatmul.f32.gmra.mxu0 %v5437
        %v5549 = vpop.f32.mrf.mxu0
        %v5550 = vadd.f32 0.0, %v5549
        %5551 = vmatmul.f32.gmra.mxu0 %v5440
        %v5552 = vpop.f32.mrf.mxu0
        %v5553 = vadd.f32 0.0, %v5552
        %5554 = vmatmul.f32.gmra.mxu0 %v5443
        %v5555 = vpop.f32.mrf.mxu0
        %v5556 = vadd.f32 0.0, %v5555
        %5557 = vmatmul.f32.gmra.mxu0 %v5446
        %v5558 = vpop.f32.mrf.mxu0
        %v5559 = vadd.f32 0.0, %v5558
        %5560 = vmatmul.f32.gmra.mxu0 %v5449
        %v5561 = vpop.f32.mrf.mxu0
        %v5562 = vadd.f32 0.0, %v5561
        %5563 = vmatmul.f32.gmra.mxu0 %v5452
        %v5564 = vpop.f32.mrf.mxu0
        %v5565 = vadd.f32 0.0, %v5564
        %5566 = vmatmul.f32.gmra.mxu0 %v5455
        %v5567 = vpop.f32.mrf.mxu0
        %v5568 = vadd.f32 0.0, %v5567
        %5569 = vmatmul.f32.gmra.mxu0 %v5458
        %v5570 = vpop.f32.mrf.mxu0
        %v5571 = vadd.f32 0.0, %v5570
        %5572 = vmatmul.f32.gmra.mxu0 %v5461
        %v5573 = vpop.f32.mrf.mxu0
        %v5574 = vadd.f32 0.0, %v5573
        %5575 = vmatmul.f32.gmra.mxu0 %v5464
        %v5576 = vpop.f32.mrf.mxu0
        %v5577 = vadd.f32 0.0, %v5576
        %5578 = vdwg.mxu0
        %v5579 = vadd.f32 %v5269, %v5484
        %v5580 = vadd.f32 %v5270, %v5487
        %v5581 = vadd.f32 %v5271, %v5490
        %v5582 = vadd.f32 %v5272, %v5493
        %v5583 = vadd.f32 %v5273, %v5496
        %v5584 = vadd.f32 %v5274, %v5499
        %v5585 = vadd.f32 %v5275, %v5502
        %v5586 = vadd.f32 %v5276, %v5505
        %v5587 = vadd.f32 %v5277, %v5508
        %v5588 = vadd.f32 %v5278, %v5511
        %v5589 = vadd.f32 %v5279, %v5514
        %v5590 = vadd.f32 %v5280, %v5517
        %v5591 = vadd.f32 %v5281, %v5520
        %v5592 = vadd.f32 %v5282, %v5523
        %v5593 = vadd.f32 %v5283, %v5526
        %v5594 = vadd.f32 %v5284, %v5529
        %v5595 = vadd.f32 %v5285, %v5532
        %v5596 = vadd.f32 %v5286, %v5535
        %v5597 = vadd.f32 %v5287, %v5538
        %v5598 = vadd.f32 %v5288, %v5541
        %v5599 = vadd.f32 %v5289, %v5544
        %v5600 = vadd.f32 %v5290, %v5547
        %v5601 = vadd.f32 %v5291, %v5550
        %v5602 = vadd.f32 %v5292, %v5553
        %v5603 = vadd.f32 %v5293, %v5556
        %v5604 = vadd.f32 %v5294, %v5559
        %v5605 = vadd.f32 %v5295, %v5562
        %v5606 = vadd.f32 %v5296, %v5565
        %v5607 = vadd.f32 %v5297, %v5568
        %v5608 = vadd.f32 %v5298, %v5571
        %v5609 = vadd.f32 %v5299, %v5574
        %v5610 = vadd.f32 %v5300, %v5577
        %v5611 = vld [vmem:[#allocation2 + $0x21] sm:$0xff]
        %v5612 = vld [vmem:[#allocation2 + $0x29] sm:$0xff]
        %v5613 = vld [vmem:[#allocation2 + $0x31] sm:$0xff]
        %v5614 = vld [vmem:[#allocation2 + $0x39] sm:$0xff]
        %v5615 = vld [vmem:[#allocation2 + $0x41] sm:$0xff]
        %v5616 = vld [vmem:[#allocation2 + $0x49] sm:$0xff]
        %v5617 = vld [vmem:[#allocation2 + $0x51] sm:$0xff]
        %v5618 = vld [vmem:[#allocation2 + $0x59] sm:$0xff]
        %v5619 = vld [vmem:[#allocation2 + $0x61] sm:$0xff]
        %v5620 = vld [vmem:[#allocation2 + $0x69] sm:$0xff]
        %v5621 = vld [vmem:[#allocation2 + $0x71] sm:$0xff]
        %v5622 = vld [vmem:[#allocation2 + $0x79] sm:$0xff]
        %v5623 = vld [vmem:[#allocation2 + $0x81] sm:$0xff]
        %v5624 = vld [vmem:[#allocation2 + $0x89] sm:$0xff]
        %v5625 = vld [vmem:[#allocation2 + $0x91] sm:$0xff]
        %v5626 = vld [vmem:[#allocation2 + $0x99] sm:$0xff]
        %v5627 = vld [vmem:[#allocation2 + $0xa1] sm:$0xff]
        %v5628 = vld [vmem:[#allocation2 + $0xa9] sm:$0xff]
        %v5629 = vld [vmem:[#allocation2 + $0xb1] sm:$0xff]
        %v5630 = vld [vmem:[#allocation2 + $0xb9] sm:$0xff]
        %v5631 = vld [vmem:[#allocation2 + $0xc1] sm:$0xff]
        %v5632 = vld [vmem:[#allocation2 + $0xc9] sm:$0xff]
        %v5633 = vld [vmem:[#allocation2 + $0xd1] sm:$0xff]
        %v5634 = vld [vmem:[#allocation2 + $0xd9] sm:$0xff]
        %v5635 = vld [vmem:[#allocation2 + $0xe1] sm:$0xff]
        %v5636 = vld [vmem:[#allocation2 + $0xe9] sm:$0xff]
        %v5637 = vld [vmem:[#allocation2 + $0xf1] sm:$0xff]
        %v5638 = vld [vmem:[#allocation2 + $0xf9] sm:$0xff]
        %v5639 = vld [vmem:[#allocation2 + $0x101] sm:$0xff]
        %v5640 = vld [vmem:[#allocation2 + $0x109] sm:$0xff]
        %v5641 = vld [vmem:[#allocation2 + $0x111] sm:$0xff]
        %v5642 = vld [vmem:[#allocation2 + $0x119] sm:$0xff]
        %s5643 = scalar_lea.vmem %s3, 224
        %v5644 = vld [vmem:[%s5643] sm:$0xff]
        %v5645 = vld [vmem:[%s5643 + $0x8] sm:$0xff]
        %v5646 = vld [vmem:[%s5643 + $0x10] sm:$0xff]
        %v5647 = vld [vmem:[%s5643 + $0x18] sm:$0xff]
        %v5649 = vsel %vm3530, %v5611, 0
        %v5652 = vsel %vm3530, %v5612, 0
        %v5655 = vsel %vm3530, %v5613, 0
        %v5658 = vsel %vm3530, %v5614, 0
        %v5661 = vsel %vm3530, %v5615, 0
        %v5664 = vsel %vm3530, %v5616, 0
        %v5667 = vsel %vm3530, %v5617, 0
        %v5670 = vsel %vm3530, %v5618, 0
        %v5673 = vsel %vm3530, %v5619, 0
        %v5676 = vsel %vm3530, %v5620, 0
        %v5679 = vsel %vm3530, %v5621, 0
        %v5682 = vsel %vm3530, %v5622, 0
        %v5685 = vsel %vm3530, %v5623, 0
        %v5688 = vsel %vm3530, %v5624, 0
        %v5691 = vsel %vm3530, %v5625, 0
        %v5694 = vsel %vm3530, %v5626, 0
        %v5697 = vsel %vm3530, %v5627, 0
        %v5700 = vsel %vm3530, %v5628, 0
        %v5703 = vsel %vm3530, %v5629, 0
        %v5706 = vsel %vm3530, %v5630, 0
        %v5709 = vsel %vm3530, %v5631, 0
        %v5712 = vsel %vm3530, %v5632, 0
        %v5715 = vsel %vm3530, %v5633, 0
        %v5718 = vsel %vm3530, %v5634, 0
        %v5721 = vsel %vm3530, %v5635, 0
        %v5724 = vsel %vm3530, %v5636, 0
        %v5727 = vsel %vm3530, %v5637, 0
        %v5730 = vsel %vm3530, %v5638, 0
        %v5733 = vsel %vm3530, %v5639, 0
        %v5736 = vsel %vm3530, %v5640, 0
        %v5739 = vsel %vm3530, %v5641, 0
        %v5742 = vsel %vm3530, %v5642, 0
        %5744 = vmatpush.msra.mxu0 0.0
        %5745 = vmatpush.msra.mxu0 0.0
        %5746 = vmatpush.msra.mxu0 0.0
        %5747 = vmatpush.msra.mxu0 0.0
        %5748 = vmatpush.msra.mxu0 0.0
        %5749 = vmatpush.msra.mxu0 0.0
        %5750 = vmatpush.msra.mxu0 0.0
        %5751 = vmatpush.msra.mxu0 0.0
        %5752 = vmatpush.msra.mxu0 0.0
        %5753 = vmatpush.msra.mxu0 0.0
        %5754 = vmatpush.msra.mxu0 0.0
        %5755 = vmatpush.msra.mxu0 0.0
        %5756 = vmatpush.msra.mxu0 %v5647
        %5757 = vmatpush.msra.mxu0 %v5646
        %5758 = vmatpush.msra.mxu0 %v5645
        %5759 = vmatpush.msra.mxu0 %v5644
        %5760 = vmatmul.f32.gmra.mxu0 %v5649
        %v5761 = vpop.f32.mrf.mxu0
        %v5762 = vadd.f32 0.0, %v5761
        %5763 = vmatmul.f32.gmra.mxu0 %v5652
        %v5764 = vpop.f32.mrf.mxu0
        %v5765 = vadd.f32 0.0, %v5764
        %5766 = vmatmul.f32.gmra.mxu0 %v5655
        %v5767 = vpop.f32.mrf.mxu0
        %v5768 = vadd.f32 0.0, %v5767
        %5769 = vmatmul.f32.gmra.mxu0 %v5658
        %v5770 = vpop.f32.mrf.mxu0
        %v5771 = vadd.f32 0.0, %v5770
        %5772 = vmatmul.f32.gmra.mxu0 %v5661
        %v5773 = vpop.f32.mrf.mxu0
        %v5774 = vadd.f32 0.0, %v5773
        %5775 = vmatmul.f32.gmra.mxu0 %v5664
        %v5776 = vpop.f32.mrf.mxu0
        %v5777 = vadd.f32 0.0, %v5776
        %5778 = vmatmul.f32.gmra.mxu0 %v5667
        %v5779 = vpop.f32.mrf.mxu0
        %v5780 = vadd.f32 0.0, %v5779
        %5781 = vmatmul.f32.gmra.mxu0 %v5670
        %v5782 = vpop.f32.mrf.mxu0
        %v5783 = vadd.f32 0.0, %v5782
        %5784 = vmatmul.f32.gmra.mxu0 %v5673
        %v5785 = vpop.f32.mrf.mxu0
        %v5786 = vadd.f32 0.0, %v5785
        %5787 = vmatmul.f32.gmra.mxu0 %v5676
        %v5788 = vpop.f32.mrf.mxu0
        %v5789 = vadd.f32 0.0, %v5788
        %5790 = vmatmul.f32.gmra.mxu0 %v5679
        %v5791 = vpop.f32.mrf.mxu0
        %v5792 = vadd.f32 0.0, %v5791
        %5793 = vmatmul.f32.gmra.mxu0 %v5682
        %v5794 = vpop.f32.mrf.mxu0
        %v5795 = vadd.f32 0.0, %v5794
        %5796 = vmatmul.f32.gmra.mxu0 %v5685
        %v5797 = vpop.f32.mrf.mxu0
        %v5798 = vadd.f32 0.0, %v5797
        %5799 = vmatmul.f32.gmra.mxu0 %v5688
        %v5800 = vpop.f32.mrf.mxu0
        %v5801 = vadd.f32 0.0, %v5800
        %5802 = vmatmul.f32.gmra.mxu0 %v5691
        %v5803 = vpop.f32.mrf.mxu0
        %v5804 = vadd.f32 0.0, %v5803
        %5805 = vmatmul.f32.gmra.mxu0 %v5694
        %v5806 = vpop.f32.mrf.mxu0
        %v5807 = vadd.f32 0.0, %v5806
        %5808 = vmatmul.f32.gmra.mxu0 %v5697
        %v5809 = vpop.f32.mrf.mxu0
        %v5810 = vadd.f32 0.0, %v5809
        %5811 = vmatmul.f32.gmra.mxu0 %v5700
        %v5812 = vpop.f32.mrf.mxu0
        %v5813 = vadd.f32 0.0, %v5812
        %5814 = vmatmul.f32.gmra.mxu0 %v5703
        %v5815 = vpop.f32.mrf.mxu0
        %v5816 = vadd.f32 0.0, %v5815
        %5817 = vmatmul.f32.gmra.mxu0 %v5706
        %v5818 = vpop.f32.mrf.mxu0
        %v5819 = vadd.f32 0.0, %v5818
        %5820 = vmatmul.f32.gmra.mxu0 %v5709
        %v5821 = vpop.f32.mrf.mxu0
        %v5822 = vadd.f32 0.0, %v5821
        %5823 = vmatmul.f32.gmra.mxu0 %v5712
        %v5824 = vpop.f32.mrf.mxu0
        %v5825 = vadd.f32 0.0, %v5824
        %5826 = vmatmul.f32.gmra.mxu0 %v5715
        %v5827 = vpop.f32.mrf.mxu0
        %v5828 = vadd.f32 0.0, %v5827
        %5829 = vmatmul.f32.gmra.mxu0 %v5718
        %v5830 = vpop.f32.mrf.mxu0
        %v5831 = vadd.f32 0.0, %v5830
        %5832 = vmatmul.f32.gmra.mxu0 %v5721
        %v5833 = vpop.f32.mrf.mxu0
        %v5834 = vadd.f32 0.0, %v5833
        %5835 = vmatmul.f32.gmra.mxu0 %v5724
        %v5836 = vpop.f32.mrf.mxu0
        %v5837 = vadd.f32 0.0, %v5836
        %5838 = vmatmul.f32.gmra.mxu0 %v5727
        %v5839 = vpop.f32.mrf.mxu0
        %v5840 = vadd.f32 0.0, %v5839
        %5841 = vmatmul.f32.gmra.mxu0 %v5730
        %v5842 = vpop.f32.mrf.mxu0
        %v5843 = vadd.f32 0.0, %v5842
        %5844 = vmatmul.f32.gmra.mxu0 %v5733
        %v5845 = vpop.f32.mrf.mxu0
        %v5846 = vadd.f32 0.0, %v5845
        %5847 = vmatmul.f32.gmra.mxu0 %v5736
        %v5848 = vpop.f32.mrf.mxu0
        %v5849 = vadd.f32 0.0, %v5848
        %5850 = vmatmul.f32.gmra.mxu0 %v5739
        %v5851 = vpop.f32.mrf.mxu0
        %v5852 = vadd.f32 0.0, %v5851
        %5853 = vmatmul.f32.gmra.mxu0 %v5742
        %v5854 = vpop.f32.mrf.mxu0
        %v5855 = vadd.f32 0.0, %v5854
        %5856 = vdwg.mxu0
        %v5857 = vadd.f32 %v5579, %v5762
        %v5858 = vadd.f32 %v5580, %v5765
        %v5859 = vadd.f32 %v5581, %v5768
        %v5860 = vadd.f32 %v5582, %v5771
        %v5861 = vadd.f32 %v5583, %v5774
        %v5862 = vadd.f32 %v5584, %v5777
        %v5863 = vadd.f32 %v5585, %v5780
        %v5864 = vadd.f32 %v5586, %v5783
        %v5865 = vadd.f32 %v5587, %v5786
        %v5866 = vadd.f32 %v5588, %v5789
        %v5867 = vadd.f32 %v5589, %v5792
        %v5868 = vadd.f32 %v5590, %v5795
        %v5869 = vadd.f32 %v5591, %v5798
        %v5870 = vadd.f32 %v5592, %v5801
        %v5871 = vadd.f32 %v5593, %v5804
        %v5872 = vadd.f32 %v5594, %v5807
        %v5873 = vadd.f32 %v5595, %v5810
        %v5874 = vadd.f32 %v5596, %v5813
        %v5875 = vadd.f32 %v5597, %v5816
        %v5876 = vadd.f32 %v5598, %v5819
        %v5877 = vadd.f32 %v5599, %v5822
        %v5878 = vadd.f32 %v5600, %v5825
        %v5879 = vadd.f32 %v5601, %v5828
        %v5880 = vadd.f32 %v5602, %v5831
        %v5881 = vadd.f32 %v5603, %v5834
        %v5882 = vadd.f32 %v5604, %v5837
        %v5883 = vadd.f32 %v5605, %v5840
        %v5884 = vadd.f32 %v5606, %v5843
        %v5885 = vadd.f32 %v5607, %v5846
        %v5886 = vadd.f32 %v5608, %v5849
        %v5887 = vadd.f32 %v5609, %v5852
        %v5888 = vadd.f32 %v5610, %v5855
        %v5889 = vld [vmem:[#allocation2 + $0x22] sm:$0xff]
        %v5890 = vld [vmem:[#allocation2 + $0x2a] sm:$0xff]
        %v5891 = vld [vmem:[#allocation2 + $0x32] sm:$0xff]
        %v5892 = vld [vmem:[#allocation2 + $0x3a] sm:$0xff]
        %v5893 = vld [vmem:[#allocation2 + $0x42] sm:$0xff]
        %v5894 = vld [vmem:[#allocation2 + $0x4a] sm:$0xff]
        %v5895 = vld [vmem:[#allocation2 + $0x52] sm:$0xff]
        %v5896 = vld [vmem:[#allocation2 + $0x5a] sm:$0xff]
        %v5897 = vld [vmem:[#allocation2 + $0x62] sm:$0xff]
        %v5898 = vld [vmem:[#allocation2 + $0x6a] sm:$0xff]
        %v5899 = vld [vmem:[#allocation2 + $0x72] sm:$0xff]
        %v5900 = vld [vmem:[#allocation2 + $0x7a] sm:$0xff]
        %v5901 = vld [vmem:[#allocation2 + $0x82] sm:$0xff]
        %v5902 = vld [vmem:[#allocation2 + $0x8a] sm:$0xff]
        %v5903 = vld [vmem:[#allocation2 + $0x92] sm:$0xff]
        %v5904 = vld [vmem:[#allocation2 + $0x9a] sm:$0xff]
        %v5905 = vld [vmem:[#allocation2 + $0xa2] sm:$0xff]
        %v5906 = vld [vmem:[#allocation2 + $0xaa] sm:$0xff]
        %v5907 = vld [vmem:[#allocation2 + $0xb2] sm:$0xff]
        %v5908 = vld [vmem:[#allocation2 + $0xba] sm:$0xff]
        %v5909 = vld [vmem:[#allocation2 + $0xc2] sm:$0xff]
        %v5910 = vld [vmem:[#allocation2 + $0xca] sm:$0xff]
        %v5911 = vld [vmem:[#allocation2 + $0xd2] sm:$0xff]
        %v5912 = vld [vmem:[#allocation2 + $0xda] sm:$0xff]
        %v5913 = vld [vmem:[#allocation2 + $0xe2] sm:$0xff]
        %v5914 = vld [vmem:[#allocation2 + $0xea] sm:$0xff]
        %v5915 = vld [vmem:[#allocation2 + $0xf2] sm:$0xff]
        %v5916 = vld [vmem:[#allocation2 + $0xfa] sm:$0xff]
        %v5917 = vld [vmem:[#allocation2 + $0x102] sm:$0xff]
        %v5918 = vld [vmem:[#allocation2 + $0x10a] sm:$0xff]
        %v5919 = vld [vmem:[#allocation2 + $0x112] sm:$0xff]
        %v5920 = vld [vmem:[#allocation2 + $0x11a] sm:$0xff]
        %v5921 = vsel %vm1356, %v5889, 0.0
        %v5922 = vsel %vm1357, %v5890, 0.0
        %v5923 = vsel %vm1358, %v5891, 0.0
        %v5924 = vsel %vm1359, %v5892, 0.0
        %v5925 = vsel %vm1360, %v5893, 0.0
        %v5926 = vsel %vm1361, %v5894, 0.0
        %v5927 = vsel %vm1362, %v5895, 0.0
        %v5928 = vsel %vm1363, %v5896, 0.0
        %v5929 = vsel %vm1364, %v5897, 0.0
        %v5930 = vsel %vm1365, %v5898, 0.0
        %v5931 = vsel %vm1366, %v5899, 0.0
        %v5932 = vsel %vm1367, %v5900, 0.0
        %v5933 = vsel %vm1368, %v5901, 0.0
        %v5934 = vsel %vm1369, %v5902, 0.0
        %v5935 = vsel %vm1370, %v5903, 0.0
        %v5936 = vsel %vm1371, %v5904, 0.0
        %v5937 = vsel %vm1372, %v5905, 0.0
        %v5938 = vsel %vm1373, %v5906, 0.0
        %v5939 = vsel %vm1374, %v5907, 0.0
        %v5940 = vsel %vm1375, %v5908, 0.0
        %v5941 = vsel %vm1376, %v5909, 0.0
        %v5942 = vsel %vm1377, %v5910, 0.0
        %v5943 = vsel %vm1378, %v5911, 0.0
        %v5944 = vsel %vm1379, %v5912, 0.0
        %v5945 = vsel %vm1380, %v5913, 0.0
        %v5946 = vsel %vm1381, %v5914, 0.0
        %v5947 = vsel %vm1382, %v5915, 0.0
        %v5948 = vsel %vm1383, %v5916, 0.0
        %v5949 = vsel %vm1384, %v5917, 0.0
        %v5950 = vsel %vm1385, %v5918, 0.0
        %v5951 = vsel %vm1386, %v5919, 0.0
        %v5952 = vsel %vm1387, %v5920, 0.0
        %s5953 = scalar_lea.vmem %s3, 256
        %v5954 = vld [vmem:[%s5953] sm:$0xff]
        %v5955 = vld [vmem:[%s5953 + $0x8] sm:$0xff]
        %v5956 = vld [vmem:[%s5953 + $0x10] sm:$0xff]
        %v5957 = vld [vmem:[%s5953 + $0x18] sm:$0xff]
        %v5959 = vsel %vm3530, %v5921, 0
        %v5962 = vsel %vm3530, %v5922, 0
        %v5965 = vsel %vm3530, %v5923, 0
        %v5968 = vsel %vm3530, %v5924, 0
        %v5971 = vsel %vm3530, %v5925, 0
        %v5974 = vsel %vm3530, %v5926, 0
        %v5977 = vsel %vm3530, %v5927, 0
        %v5980 = vsel %vm3530, %v5928, 0
        %v5983 = vsel %vm3530, %v5929, 0
        %v5986 = vsel %vm3530, %v5930, 0
        %v5989 = vsel %vm3530, %v5931, 0
        %v5992 = vsel %vm3530, %v5932, 0
        %v5995 = vsel %vm3530, %v5933, 0
        %v5998 = vsel %vm3530, %v5934, 0
        %v6001 = vsel %vm3530, %v5935, 0
        %v6004 = vsel %vm3530, %v5936, 0
        %v6007 = vsel %vm3530, %v5937, 0
        %v6010 = vsel %vm3530, %v5938, 0
        %v6013 = vsel %vm3530, %v5939, 0
        %v6016 = vsel %vm3530, %v5940, 0
        %v6019 = vsel %vm3530, %v5941, 0
        %v6022 = vsel %vm3530, %v5942, 0
        %v6025 = vsel %vm3530, %v5943, 0
        %v6028 = vsel %vm3530, %v5944, 0
        %v6031 = vsel %vm3530, %v5945, 0
        %v6034 = vsel %vm3530, %v5946, 0
        %v6037 = vsel %vm3530, %v5947, 0
        %v6040 = vsel %vm3530, %v5948, 0
        %v6043 = vsel %vm3530, %v5949, 0
        %v6046 = vsel %vm3530, %v5950, 0
        %v6049 = vsel %vm3530, %v5951, 0
        %v6052 = vsel %vm3530, %v5952, 0
        %6054 = vmatpush.msra.mxu0 0.0
        %6055 = vmatpush.msra.mxu0 0.0
        %6056 = vmatpush.msra.mxu0 0.0
        %6057 = vmatpush.msra.mxu0 0.0
        %6058 = vmatpush.msra.mxu0 0.0
        %6059 = vmatpush.msra.mxu0 0.0
        %6060 = vmatpush.msra.mxu0 0.0
        %6061 = vmatpush.msra.mxu0 0.0
        %6062 = vmatpush.msra.mxu0 0.0
        %6063 = vmatpush.msra.mxu0 0.0
        %6064 = vmatpush.msra.mxu0 0.0
        %6065 = vmatpush.msra.mxu0 0.0
        %6066 = vmatpush.msra.mxu0 %v5957
        %6067 = vmatpush.msra.mxu0 %v5956
        %6068 = vmatpush.msra.mxu0 %v5955
        %6069 = vmatpush.msra.mxu0 %v5954
        %6070 = vmatmul.f32.gmra.mxu0 %v5959
        %v6071 = vpop.f32.mrf.mxu0
        %v6072 = vadd.f32 0.0, %v6071
        %6073 = vmatmul.f32.gmra.mxu0 %v5962
        %v6074 = vpop.f32.mrf.mxu0
        %v6075 = vadd.f32 0.0, %v6074
        %6076 = vmatmul.f32.gmra.mxu0 %v5965
        %v6077 = vpop.f32.mrf.mxu0
        %v6078 = vadd.f32 0.0, %v6077
        %6079 = vmatmul.f32.gmra.mxu0 %v5968
        %v6080 = vpop.f32.mrf.mxu0
        %v6081 = vadd.f32 0.0, %v6080
        %6082 = vmatmul.f32.gmra.mxu0 %v5971
        %v6083 = vpop.f32.mrf.mxu0
        %v6084 = vadd.f32 0.0, %v6083
        %6085 = vmatmul.f32.gmra.mxu0 %v5974
        %v6086 = vpop.f32.mrf.mxu0
        %v6087 = vadd.f32 0.0, %v6086
        %6088 = vmatmul.f32.gmra.mxu0 %v5977
        %v6089 = vpop.f32.mrf.mxu0
        %v6090 = vadd.f32 0.0, %v6089
        %6091 = vmatmul.f32.gmra.mxu0 %v5980
        %v6092 = vpop.f32.mrf.mxu0
        %v6093 = vadd.f32 0.0, %v6092
        %6094 = vmatmul.f32.gmra.mxu0 %v5983
        %v6095 = vpop.f32.mrf.mxu0
        %v6096 = vadd.f32 0.0, %v6095
        %6097 = vmatmul.f32.gmra.mxu0 %v5986
        %v6098 = vpop.f32.mrf.mxu0
        %v6099 = vadd.f32 0.0, %v6098
        %6100 = vmatmul.f32.gmra.mxu0 %v5989
        %v6101 = vpop.f32.mrf.mxu0
        %v6102 = vadd.f32 0.0, %v6101
        %6103 = vmatmul.f32.gmra.mxu0 %v5992
        %v6104 = vpop.f32.mrf.mxu0
        %v6105 = vadd.f32 0.0, %v6104
        %6106 = vmatmul.f32.gmra.mxu0 %v5995
        %v6107 = vpop.f32.mrf.mxu0
        %v6108 = vadd.f32 0.0, %v6107
        %6109 = vmatmul.f32.gmra.mxu0 %v5998
        %v6110 = vpop.f32.mrf.mxu0
        %v6111 = vadd.f32 0.0, %v6110
        %6112 = vmatmul.f32.gmra.mxu0 %v6001
        %v6113 = vpop.f32.mrf.mxu0
        %v6114 = vadd.f32 0.0, %v6113
        %6115 = vmatmul.f32.gmra.mxu0 %v6004
        %v6116 = vpop.f32.mrf.mxu0
        %v6117 = vadd.f32 0.0, %v6116
        %6118 = vmatmul.f32.gmra.mxu0 %v6007
        %v6119 = vpop.f32.mrf.mxu0
        %v6120 = vadd.f32 0.0, %v6119
        %6121 = vmatmul.f32.gmra.mxu0 %v6010
        %v6122 = vpop.f32.mrf.mxu0
        %v6123 = vadd.f32 0.0, %v6122
        %6124 = vmatmul.f32.gmra.mxu0 %v6013
        %v6125 = vpop.f32.mrf.mxu0
        %v6126 = vadd.f32 0.0, %v6125
        %6127 = vmatmul.f32.gmra.mxu0 %v6016
        %v6128 = vpop.f32.mrf.mxu0
        %v6129 = vadd.f32 0.0, %v6128
        %6130 = vmatmul.f32.gmra.mxu0 %v6019
        %v6131 = vpop.f32.mrf.mxu0
        %v6132 = vadd.f32 0.0, %v6131
        %6133 = vmatmul.f32.gmra.mxu0 %v6022
        %v6134 = vpop.f32.mrf.mxu0
        %v6135 = vadd.f32 0.0, %v6134
        %6136 = vmatmul.f32.gmra.mxu0 %v6025
        %v6137 = vpop.f32.mrf.mxu0
        %v6138 = vadd.f32 0.0, %v6137
        %6139 = vmatmul.f32.gmra.mxu0 %v6028
        %v6140 = vpop.f32.mrf.mxu0
        %v6141 = vadd.f32 0.0, %v6140
        %6142 = vmatmul.f32.gmra.mxu0 %v6031
        %v6143 = vpop.f32.mrf.mxu0
        %v6144 = vadd.f32 0.0, %v6143
        %6145 = vmatmul.f32.gmra.mxu0 %v6034
        %v6146 = vpop.f32.mrf.mxu0
        %v6147 = vadd.f32 0.0, %v6146
        %6148 = vmatmul.f32.gmra.mxu0 %v6037
        %v6149 = vpop.f32.mrf.mxu0
        %v6150 = vadd.f32 0.0, %v6149
        %6151 = vmatmul.f32.gmra.mxu0 %v6040
        %v6152 = vpop.f32.mrf.mxu0
        %v6153 = vadd.f32 0.0, %v6152
        %6154 = vmatmul.f32.gmra.mxu0 %v6043
        %v6155 = vpop.f32.mrf.mxu0
        %v6156 = vadd.f32 0.0, %v6155
        %6157 = vmatmul.f32.gmra.mxu0 %v6046
        %v6158 = vpop.f32.mrf.mxu0
        %v6159 = vadd.f32 0.0, %v6158
        %6160 = vmatmul.f32.gmra.mxu0 %v6049
        %v6161 = vpop.f32.mrf.mxu0
        %v6162 = vadd.f32 0.0, %v6161
        %6163 = vmatmul.f32.gmra.mxu0 %v6052
        %v6164 = vpop.f32.mrf.mxu0
        %v6165 = vadd.f32 0.0, %v6164
        %6166 = vdwg.mxu0
        %v6167 = vadd.f32 %v5857, %v6072
        %v6168 = vadd.f32 %v5858, %v6075
        %v6169 = vadd.f32 %v5859, %v6078
        %v6170 = vadd.f32 %v5860, %v6081
        %v6171 = vadd.f32 %v5861, %v6084
        %v6172 = vadd.f32 %v5862, %v6087
        %v6173 = vadd.f32 %v5863, %v6090
        %v6174 = vadd.f32 %v5864, %v6093
        %v6175 = vadd.f32 %v5865, %v6096
        %v6176 = vadd.f32 %v5866, %v6099
        %v6177 = vadd.f32 %v5867, %v6102
        %v6178 = vadd.f32 %v5868, %v6105
        %v6179 = vadd.f32 %v5869, %v6108
        %v6180 = vadd.f32 %v5870, %v6111
        %v6181 = vadd.f32 %v5871, %v6114
        %v6182 = vadd.f32 %v5872, %v6117
        %v6183 = vadd.f32 %v5873, %v6120
        %v6184 = vadd.f32 %v5874, %v6123
        %v6185 = vadd.f32 %v5875, %v6126
        %v6186 = vadd.f32 %v5876, %v6129
        %v6187 = vadd.f32 %v5877, %v6132
        %v6188 = vadd.f32 %v5878, %v6135
        %v6189 = vadd.f32 %v5879, %v6138
        %v6190 = vadd.f32 %v5880, %v6141
        %v6191 = vadd.f32 %v5881, %v6144
        %v6192 = vadd.f32 %v5882, %v6147
        %v6193 = vadd.f32 %v5883, %v6150
        %v6194 = vadd.f32 %v5884, %v6153
        %v6195 = vadd.f32 %v5885, %v6156
        %v6196 = vadd.f32 %v5886, %v6159
        %v6197 = vadd.f32 %v5887, %v6162
        %v6198 = vadd.f32 %v5888, %v6165
        %v6199 = vld [vmem:[%s4] sm:$0x1]
        %v6201 = vperm.slane %v6199, 0
        %v6203 = vadd.f32 %v6167, %v6201
        %v6204 = vadd.f32 %v6168, %v6201
        %v6205 = vadd.f32 %v6169, %v6201
        %v6206 = vadd.f32 %v6170, %v6201
        %v6207 = vadd.f32 %v6171, %v6201
        %v6208 = vadd.f32 %v6172, %v6201
        %v6209 = vadd.f32 %v6173, %v6201
        %v6210 = vadd.f32 %v6174, %v6201
        %v6211 = vadd.f32 %v6175, %v6201
        %v6212 = vadd.f32 %v6176, %v6201
        %v6213 = vadd.f32 %v6177, %v6201
        %v6214 = vadd.f32 %v6178, %v6201
        %v6215 = vadd.f32 %v6179, %v6201
        %v6216 = vadd.f32 %v6180, %v6201
        %v6217 = vadd.f32 %v6181, %v6201
        %v6218 = vadd.f32 %v6182, %v6201
        %v6219 = vadd.f32 %v6183, %v6201
        %v6220 = vadd.f32 %v6184, %v6201
        %v6221 = vadd.f32 %v6185, %v6201
        %v6222 = vadd.f32 %v6186, %v6201
        %v6223 = vadd.f32 %v6187, %v6201
        %v6224 = vadd.f32 %v6188, %v6201
        %v6225 = vadd.f32 %v6189, %v6201
        %v6226 = vadd.f32 %v6190, %v6201
        %v6227 = vadd.f32 %v6191, %v6201
        %v6228 = vadd.f32 %v6192, %v6201
        %v6229 = vadd.f32 %v6193, %v6201
        %v6230 = vadd.f32 %v6194, %v6201
        %v6231 = vadd.f32 %v6195, %v6201
        %v6232 = vadd.f32 %v6196, %v6201
        %v6233 = vadd.f32 %v6197, %v6201
        %v6234 = vadd.f32 %v6198, %v6201
        %v6235 = vmax.f32 %v6203, 0.0
        %v6236 = vmax.f32 %v6204, 0.0
        %v6237 = vmax.f32 %v6205, 0.0
        %v6238 = vmax.f32 %v6206, 0.0
        %v6239 = vmax.f32 %v6207, 0.0
        %v6240 = vmax.f32 %v6208, 0.0
        %v6241 = vmax.f32 %v6209, 0.0
        %v6242 = vmax.f32 %v6210, 0.0
        %v6243 = vmax.f32 %v6211, 0.0
        %v6244 = vmax.f32 %v6212, 0.0
        %v6245 = vmax.f32 %v6213, 0.0
        %v6246 = vmax.f32 %v6214, 0.0
        %v6247 = vmax.f32 %v6215, 0.0
        %v6248 = vmax.f32 %v6216, 0.0
        %v6249 = vmax.f32 %v6217, 0.0
        %v6250 = vmax.f32 %v6218, 0.0
        %v6251 = vmax.f32 %v6219, 0.0
        %v6252 = vmax.f32 %v6220, 0.0
        %v6253 = vmax.f32 %v6221, 0.0
        %v6254 = vmax.f32 %v6222, 0.0
        %v6255 = vmax.f32 %v6223, 0.0
        %v6256 = vmax.f32 %v6224, 0.0
        %v6257 = vmax.f32 %v6225, 0.0
        %v6258 = vmax.f32 %v6226, 0.0
        %v6259 = vmax.f32 %v6227, 0.0
        %v6260 = vmax.f32 %v6228, 0.0
        %v6261 = vmax.f32 %v6229, 0.0
        %v6262 = vmax.f32 %v6230, 0.0
        %v6263 = vmax.f32 %v6231, 0.0
        %v6264 = vmax.f32 %v6232, 0.0
        %v6265 = vmax.f32 %v6233, 0.0
        %v6266 = vmax.f32 %v6234, 0.0
        %v6267 = vmax.f32 %v6235, 1e-06
        %v6268 = vmax.f32 %v6236, 1e-06
        %v6269 = vmax.f32 %v6237, 1e-06
        %v6270 = vmax.f32 %v6238, 1e-06
        %v6271 = vmax.f32 %v6239, 1e-06
        %v6272 = vmax.f32 %v6240, 1e-06
        %v6273 = vmax.f32 %v6241, 1e-06
        %v6274 = vmax.f32 %v6242, 1e-06
        %v6275 = vmax.f32 %v6243, 1e-06
        %v6276 = vmax.f32 %v6244, 1e-06
        %v6277 = vmax.f32 %v6245, 1e-06
        %v6278 = vmax.f32 %v6246, 1e-06
        %v6279 = vmax.f32 %v6247, 1e-06
        %v6280 = vmax.f32 %v6248, 1e-06
        %v6281 = vmax.f32 %v6249, 1e-06
        %v6282 = vmax.f32 %v6250, 1e-06
        %v6283 = vmax.f32 %v6251, 1e-06
        %v6284 = vmax.f32 %v6252, 1e-06
        %v6285 = vmax.f32 %v6253, 1e-06
        %v6286 = vmax.f32 %v6254, 1e-06
        %v6287 = vmax.f32 %v6255, 1e-06
        %v6288 = vmax.f32 %v6256, 1e-06
        %v6289 = vmax.f32 %v6257, 1e-06
        %v6290 = vmax.f32 %v6258, 1e-06
        %v6291 = vmax.f32 %v6259, 1e-06
        %v6292 = vmax.f32 %v6260, 1e-06
        %v6293 = vmax.f32 %v6261, 1e-06
        %v6294 = vmax.f32 %v6262, 1e-06
        %v6295 = vmax.f32 %v6263, 1e-06
        %v6296 = vmax.f32 %v6264, 1e-06
        %v6297 = vmax.f32 %v6265, 1e-06
        %v6298 = vmax.f32 %v6266, 1e-06
        %v6299 = vmul.f32 %v6267, %v6267
        %v6300 = vmul.f32 %v6268, %v6268
        %v6301 = vmul.f32 %v6269, %v6269
        %v6302 = vmul.f32 %v6270, %v6270
        %v6303 = vmul.f32 %v6271, %v6271
        %v6304 = vmul.f32 %v6272, %v6272
        %v6305 = vmul.f32 %v6273, %v6273
        %v6306 = vmul.f32 %v6274, %v6274
        %v6307 = vmul.f32 %v6275, %v6275
        %v6308 = vmul.f32 %v6276, %v6276
        %v6309 = vmul.f32 %v6277, %v6277
        %v6310 = vmul.f32 %v6278, %v6278
        %v6311 = vmul.f32 %v6279, %v6279
        %v6312 = vmul.f32 %v6280, %v6280
        %v6313 = vmul.f32 %v6281, %v6281
        %v6314 = vmul.f32 %v6282, %v6282
        %v6315 = vmul.f32 %v6283, %v6283
        %v6316 = vmul.f32 %v6284, %v6284
        %v6317 = vmul.f32 %v6285, %v6285
        %v6318 = vmul.f32 %v6286, %v6286
        %v6319 = vmul.f32 %v6287, %v6287
        %v6320 = vmul.f32 %v6288, %v6288
        %v6321 = vmul.f32 %v6289, %v6289
        %v6322 = vmul.f32 %v6290, %v6290
        %v6323 = vmul.f32 %v6291, %v6291
        %v6324 = vmul.f32 %v6292, %v6292
        %v6325 = vmul.f32 %v6293, %v6293
        %v6326 = vmul.f32 %v6294, %v6294
        %v6327 = vmul.f32 %v6295, %v6295
        %v6328 = vmul.f32 %v6296, %v6296
        %v6329 = vmul.f32 %v6297, %v6297
        %v6330 = vmul.f32 %v6298, %v6298
        %v6331 = vmul.f32 %v6299, %v6267
        %v6332 = vmul.f32 %v6300, %v6268
        %v6333 = vmul.f32 %v6301, %v6269
        %v6334 = vmul.f32 %v6302, %v6270
        %v6335 = vmul.f32 %v6303, %v6271
        %v6336 = vmul.f32 %v6304, %v6272
        %v6337 = vmul.f32 %v6305, %v6273
        %v6338 = vmul.f32 %v6306, %v6274
        %v6339 = vmul.f32 %v6307, %v6275
        %v6340 = vmul.f32 %v6308, %v6276
        %v6341 = vmul.f32 %v6309, %v6277
        %v6342 = vmul.f32 %v6310, %v6278
        %v6343 = vmul.f32 %v6311, %v6279
        %v6344 = vmul.f32 %v6312, %v6280
        %v6345 = vmul.f32 %v6313, %v6281
        %v6346 = vmul.f32 %v6314, %v6282
        %v6347 = vmul.f32 %v6315, %v6283
        %v6348 = vmul.f32 %v6316, %v6284
        %v6349 = vmul.f32 %v6317, %v6285
        %v6350 = vmul.f32 %v6318, %v6286
        %v6351 = vmul.f32 %v6319, %v6287
        %v6352 = vmul.f32 %v6320, %v6288
        %v6353 = vmul.f32 %v6321, %v6289
        %v6354 = vmul.f32 %v6322, %v6290
        %v6355 = vmul.f32 %v6323, %v6291
        %v6356 = vmul.f32 %v6324, %v6292
        %v6357 = vmul.f32 %v6325, %v6293
        %v6358 = vmul.f32 %v6326, %v6294
        %v6359 = vmul.f32 %v6327, %v6295
        %v6360 = vmul.f32 %v6328, %v6296
        %v6361 = vmul.f32 %v6329, %v6297
        %v6362 = vmul.f32 %v6330, %v6298
        %v6363 = vadd.f32 %v6331, %v6332
        %v6364 = vadd.f32 %v6363, %v6333
        %v6365 = vadd.f32 %v6364, %v6334
        %v6366 = vadd.f32 %v6365, %v6335
        %v6367 = vadd.f32 %v6366, %v6336
        %v6368 = vadd.f32 %v6367, %v6337
        %v6369 = vadd.f32 %v6368, %v6338
        %v6370 = vadd.f32 %v6369, %v6339
        %v6371 = vadd.f32 %v6370, %v6340
        %v6372 = vadd.f32 %v6371, %v6341
        %v6373 = vadd.f32 %v6372, %v6342
        %v6374 = vadd.f32 %v6373, %v6343
        %v6375 = vadd.f32 %v6374, %v6344
        %v6376 = vadd.f32 %v6375, %v6345
        %v6377 = vadd.f32 %v6376, %v6346
        %v6378 = vadd.f32 %v6377, %v6347
        %v6379 = vadd.f32 %v6378, %v6348
        %v6380 = vadd.f32 %v6379, %v6349
        %v6381 = vadd.f32 %v6380, %v6350
        %v6382 = vadd.f32 %v6381, %v6351
        %v6383 = vadd.f32 %v6382, %v6352
        %v6384 = vadd.f32 %v6383, %v6353
        %v6385 = vadd.f32 %v6384, %v6354
        %v6386 = vadd.f32 %v6385, %v6355
        %v6387 = vadd.f32 %v6386, %v6356
        %v6388 = vadd.f32 %v6387, %v6357
        %v6389 = vadd.f32 %v6388, %v6358
        %v6390 = vadd.f32 %v6389, %v6359
        %v6391 = vadd.f32 %v6390, %v6360
        %v6392 = vadd.f32 %v6391, %v6361
        %v6393 = vadd.f32 %v6392, %v6362
        %v6394 = vrot.slane %v6393, 4
        %v6395 = vadd.f32 %v6393, %v6394
        %v6396 = vrot.slane %v6395, 2
        %v6397 = vadd.f32 %v6395, %v6396
        %v6398 = vrot.slane %v6397, 1
        %v6399 = vadd.f32 %v6397, %v6398
        %v6400 = vmul.f32 %v6399, 0.00390625
        %v6401 = vlog2.pop %v6400
        %v6402 = vmul.f32 %v6401, 0.6931472
        %v6403 = vmul.f32 %v6402, 0.33333334
        %v6404 = vmul.f32 %v6403, 1.442695
        %v6405 = vpow.pop %v6404
        %6406 = vst [vmem:[%s216] sm:$0x1] %v6405
        %s6407 = sand.u32 %s137, 1
        %s6408 = scalar_lea.sflag [#allocation4], %s6407
        %s6409 = sand.u32 %s137, 1
        %s6410 = scalar_lea.vmem [#allocation3], %s6409
        // Predicated region
        $region41: #{tpu_custom_call.1} parent=39 // pred_check
          %p6411 = pneg %p147
        $region42: #{tpu_custom_call.1} parent=39 // pred_check_branch
          %6413 = sbr.rel (%p6411) target = $region44
        $region43: #{tpu_custom_call.1} parent=39 // pred_region
          %6415 = vsyncadd %s6408, 0
          %s6416 = scalar_lea.hbm %s5, %s19
          %s6418 = sshll.u32 %s6410, 4
          %s6419 = int_to_ptr.vmem [resolvable:$true] %s6418
          %s6420 = sshll.u32 %s6416, 4
          %s6421 = int_to_ptr.hbm [resolvable:$true] %s6420
          %6423 = dma.vmem_to_hbm [thread:$0]  %s6419, 16, %s6421, %s6408
        $region44: #{tpu_custom_call.1} parent=39 // pred_fallthru
          _
      $region40: #{tpu_custom_call.1} parent=5 // pred_fallthru
        _
      %p6424 = scmp.le.s32.totalorder 2, %s14
      // Predicated region
      $region45: #{tpu_custom_call.1} parent=5 // pred_check
        %p6425 = pneg %p6424
      $region46: #{tpu_custom_call.1} parent=5 // pred_check_branch
        %6427 = sbr.rel (%p6425) target = $region48
      $region47: #{tpu_custom_call.1} parent=5 // pred_region
        %s6428 = ssub.s32 %s14, 2
        // Predicated region
        $region49: #{tpu_custom_call.1} parent=47 // pred_check
          %p6429 = pneg %p153
        $region50: #{tpu_custom_call.1} parent=47 // pred_check_branch
          %6431 = sbr.rel (%p6429) target = $region52
        $region51: #{tpu_custom_call.1} parent=47 // pred_region
          %s6432 = sand.u32 %s138, 1
          %s6433 = scalar_lea.sflag [#allocation4], %s6432
          %s6434 = sand.u32 %s138, 1
          %s6435 = scalar_lea.vmem [#allocation3], %s6434
          %6437 = dma.done %s6433, 16
        $region52: #{tpu_custom_call.1} parent=47 // pred_fallthru
          _
      $region48: #{tpu_custom_call.1} parent=5 // pred_fallthru
        _
    $region6: #{tpu_custom_call.1} parent=1 // loop_footer
      %s18 = sadd.s32 1, %s14
    $region7: #{tpu_custom_call.1} parent=1 // loop_footer_branch
      %13 = sbr.rel target = $region3
    $region8: #{tpu_custom_call.1} parent=1 // loop_exit
      _
    %6438 = vsyncpa [#allocation4], 1
    %s6439 = scalar_lea.sflag [#allocation4], 1
    %6440 = vsyncpa %s6439, 1

</llo_original>
